<compile_context>
chip_gen: v7x
topology: tpu7x:2x2x1
jax: 0.10.0
libtpu: 0.0.40
codegen_flags: <defaults>
</compile_context>

<pallas_src>
import functools

import jax
import jax.numpy as jnp
from jax.experimental import pallas as pl
from jax.experimental.pallas import tpu as pltpu


# ----------------------------------------------------------------------------
# Fused decoder-block kernel: one (batch, Lq-tile) per grid step
# ----------------------------------------------------------------------------
def _decoder_block_kernel(
    xq_ref, xf_ref, val_ref, key_ref, trg_bias_ref, src_bias_ref,
    # masked self-attention params (true, un-padded, shared-head weights)
    a_wq_ref, a_wkv_ref, a_wo_ref, a_bo_ref,
    # norm after self-attention
    n0_g_ref, n0_b_ref,
    # cross-attention params
    c_wq_ref, c_wk_ref, c_wv_ref, c_wo_ref, c_bo_ref,
    # norm1
    n1_g_ref, n1_b_ref,
    # feed-forward
    w1_ref, b1_ref, w2_ref, b2_ref,
    # norm2
    n2_g_ref, n2_b_ref,
    o_ref,
    *, heads, head_dim, eps):
    f32 = jnp.float32
    bf16 = jnp.bfloat16
    D = head_dim

    def layer_norm(s, g, b):
        mu = jnp.mean(s, axis=-1, keepdims=True)
        var = jnp.mean((s - mu) ** 2, axis=-1, keepdims=True)   # biased, torch
        return (s - mu) * jax.lax.rsqrt(var + eps) * g + b

    def attend_head(q_h, k_h, v_h, bias):
        """q_h:(tq,D) k_h/v_h:(Lk,D) bf16, bias:(tq,Lk) f32 additive mask."""
        energy = jax.lax.dot_general(
            q_h, k_h, (((1,), (1,)), ((), ())),
            preferred_element_type=f32) + bias                   # (tq, Lk)
        m = jnp.max(energy, axis=-1, keepdims=True)
        p = jnp.exp(energy - m)
        attn = p * pl.reciprocal(jnp.sum(p, axis=-1, keepdims=True), approx=True)
        return jnp.dot(attn.astype(bf16), v_h, preferred_element_type=f32)

    # ---- loads ------------------------------------------------------------
    xq32 = xq_ref[0].astype(f32)        # (tq, E)  residual path (f32)
    xq = xq_ref[0].astype(bf16)         # (tq, E)  query rows of this tile
    xf = xf_ref[0].astype(bf16)         # (Lq, E)  full rows: self-attn K/V
    trg_bias = trg_bias_ref[0].astype(f32)   # (tq, Lq)
    src_bias = src_bias_ref[0].astype(f32)   # (tq, Lk)

    # ---- masked self-attention: attention(x, x, x, trg_mask) ---------------
    acc = None
    for h in range(heads):
        sl = slice(h * D, (h + 1) * D)
        q_h = jnp.dot(xq[:, sl], a_wq_ref[...],
                      preferred_element_type=f32).astype(bf16)      # (tq, D)
        kv_h = jnp.dot(xf[:, sl], a_wkv_ref[...],
                       preferred_element_type=f32).astype(bf16)     # (Lq, 2D)
        ctx_h = attend_head(q_h, kv_h[:, :D], kv_h[:, D:], trg_bias)
        part = jnp.dot(ctx_h.astype(bf16), a_wo_ref[sl, :],
                       preferred_element_type=f32)                  # (tq, E)
        acc = part if acc is None else acc + part
    attn1 = acc + a_bo_ref[...]
    # query = dropout(norm(attention + x))  (dropout == identity, inference)
    query32 = layer_norm(attn1 + xq32, n0_g_ref[...], n0_b_ref[...])

    # ---- transformer block: cross-attention(value, key, query, src_mask) ---
    qb = query32.astype(bf16)
    keyb = key_ref[0].astype(bf16)       # (Lk, E)
    valb = val_ref[0].astype(bf16)       # (Lk, E)
    acc = None
    for h in range(heads):
        sl = slice(h * D, (h + 1) * D)
        q_h = jnp.dot(qb[:, sl], c_wq_ref[...],
                      preferred_element_type=f32).astype(bf16)
        k_h = jnp.dot(keyb[:, sl], c_wk_ref[...],
                      preferred_element_type=f32).astype(bf16)
        v_h = jnp.dot(valb[:, sl], c_wv_ref[...],
                      preferred_element_type=f32).astype(bf16)
        ctx_h = attend_head(q_h, k_h, v_h, src_bias)
        part = jnp.dot(ctx_h.astype(bf16), c_wo_ref[sl, :],
                       preferred_element_type=f32)
        acc = part if acc is None else acc + part
    attn2 = acc + c_bo_ref[...]
    hmid = layer_norm(attn2 + query32, n1_g_ref[...], n1_b_ref[...])

    # ---- feed-forward + final add&norm -------------------------------------
    hidden = jnp.maximum(
        jnp.dot(hmid.astype(bf16), w1_ref[...],
                preferred_element_type=f32) + b1_ref[...], 0.0)
    ff = jnp.dot(hidden.astype(bf16), w2_ref[...],
                 preferred_element_type=f32) + b2_ref[...]
    out = layer_norm(ff + hmid, n2_g_ref[...], n2_b_ref[...])

    o_ref[0] = out.astype(o_ref.dtype)


# ----------------------------------------------------------------------------
# Wrapper: weight packing (bf16, scale folding, KV fusion) + single pallas_call
# ----------------------------------------------------------------------------
def decoder_block(x, value, key, src_mask, trg_mask, params, heads):
    N, Lq, E = x.shape
    Lk = value.shape[1]
    assert E % heads == 0
    D = E // heads
    Fh = params["ffn"]["w1"].shape[1]
    bf16 = jnp.bfloat16
    scale = 1.0 / (float(E) ** 0.5)

    # Lq tile: biggest of (512, 256, 128) that divides Lq, else full Lq.
    tq = Lq
    for cand in (512, 256, 128):
        if Lq % cand == 0:
            tq = cand
            break
    n_qt = Lq // tq

    a, c, f = params["attn"], params["tb_attn"], params["ffn"]

    # True (un-padded) weights, bf16, 1/sqrt(E) folded into Wq; self-attention
    # K/V fused into one (D, 2D) weight for a wider MXU output tile.
    a_wq = (a["wq"] * scale).astype(bf16)                       # (D, D)
    a_wkv = jnp.concatenate([a["wk"], a["wv"]], axis=1).astype(bf16)  # (D, 2D)
    a_wo = a["wo"].astype(bf16)                                 # (E, E)
    c_wq = (c["wq"] * scale).astype(bf16)
    c_wk = c["wk"].astype(bf16)
    c_wv = c["wv"].astype(bf16)
    c_wo = c["wo"].astype(bf16)
    w1 = f["w1"].astype(bf16)                                   # (E, Fh)
    w2 = f["w2"].astype(bf16)                                   # (Fh, E)

    # Masks -> additive bf16 bias (0 where attended, -1e20 where masked).
    neg = jnp.float32(-1e20)
    trg_bias = jnp.where(trg_mask == 0, neg, 0.0).astype(bf16)  # (N, Lq, Lq)
    src_bias = jnp.where(src_mask == 0, neg, 0.0).astype(bf16)  # (N, Lq, Lk)

    inputs = (
        x, x, value, key, trg_bias, src_bias,
        a_wq, a_wkv, a_wo, a["bo"],
        params["norm"]["gamma"], params["norm"]["beta"],
        c_wq, c_wk, c_wv, c_wo, c["bo"],
        params["norm1"]["gamma"], params["norm1"]["beta"],
        w1, f["b1"], w2, f["b2"],
        params["norm2"]["gamma"], params["norm2"]["beta"],
    )

    def rep(shape):
        nd = len(shape)
        return pl.BlockSpec(shape, lambda b, t, _n=nd: (0,) * _n)

    in_specs = [
        pl.BlockSpec((1, tq, E), lambda b, t: (b, t, 0)),   # x (query tile)
        pl.BlockSpec((1, Lq, E), lambda b, t: (b, 0, 0)),   # x (full, self K/V)
        pl.BlockSpec((1, Lk, E), lambda b, t: (b, 0, 0)),   # value
        pl.BlockSpec((1, Lk, E), lambda b, t: (b, 0, 0)),   # key
        pl.BlockSpec((1, tq, Lq), lambda b, t: (b, t, 0)),  # trg additive bias
        pl.BlockSpec((1, tq, Lk), lambda b, t: (b, t, 0)),  # src additive bias
        rep((D, D)), rep((D, 2 * D)), rep((E, E)), rep((1, E)),
        rep((1, E)), rep((1, E)),
        rep((D, D)), rep((D, D)), rep((D, D)), rep((E, E)), rep((1, E)),
        rep((1, E)), rep((1, E)),
        rep((E, Fh)), rep((1, Fh)), rep((Fh, E)), rep((1, E)),
        rep((1, E)), rep((1, E)),
    ]

    # Advisory cost estimate for XLA scheduling around the fused call.
    flops = 2 * N * (
        heads * Lq * D * D                 # self q proj
        + heads * Lq * D * 2 * D           # self fused kv proj
        + 2 * heads * Lq * Lq * D          # self energy + ctx
        + heads * Lq * D * E               # self out-proj
        + heads * Lq * D * D               # cross q proj
        + 2 * heads * Lk * D * D           # cross k, v proj
        + 2 * heads * Lq * Lk * D          # cross energy + ctx
        + heads * Lq * D * E               # cross out-proj
        + 2 * Lq * E * Fh                  # FFN
    )
    transcendentals = N * heads * Lq * (Lq + Lk)
    bytes_accessed = int(
        sum(int(arr.size) * arr.dtype.itemsize for arr in inputs)
        + N * Lq * E * x.dtype.itemsize)

    kernel = functools.partial(
        _decoder_block_kernel, heads=heads, head_dim=D, eps=1e-5)

    return pl.pallas_call(
        kernel,
        out_shape=jax.ShapeDtypeStruct((N, Lq, E), x.dtype),
        grid=(N, n_qt),
        in_specs=in_specs,
        out_specs=pl.BlockSpec((1, tq, E), lambda b, t: (b, t, 0)),
        compiler_params=pltpu.CompilerParams(
            dimension_semantics=("parallel", "parallel"),
            vmem_limit_bytes=48 * 1024 * 1024),
        cost_estimate=pl.CostEstimate(
            flops=flops, transcendentals=transcendentals,
            bytes_accessed=bytes_accessed),
    )(*inputs)


# ----------------------------------------------------------------------------
# Deterministic parameter init (weights stored pre-transposed: (fan_in, fan_out))
# ----------------------------------------------------------------------------
def init_params(rng, embed_size, heads, forward_expansion):
    D = embed_size // heads
    Fh = forward_expansion * embed_size
    ks = jax.random.split(rng, 16)

    def lin(k, fan_in, fan_out):
        return (jax.random.normal(k, (fan_in, fan_out), jnp.float32)
                / jnp.sqrt(jnp.float32(fan_in)))

    def bias(k, n):
        return 0.02 * jax.random.normal(k, (1, n), jnp.float32)

    def attn_params(k0, k1, k2, k3, k4):
        return {"wq": lin(k0, D, D), "wk": lin(k1, D, D), "wv": lin(k2, D, D),
                "wo": lin(k3, embed_size, embed_size),
                "bo": bias(k4, embed_size)}

    ln = lambda: {"gamma": jnp.ones((1, embed_size), jnp.float32),
                  "beta": jnp.zeros((1, embed_size), jnp.float32)}

    return {
        "attn": attn_params(*ks[0:5]),
        "norm": ln(),
        "tb_attn": attn_params(*ks[5:10]),
        "norm1": ln(),
        "norm2": ln(),
        "ffn": {"w1": lin(ks[10], embed_size, Fh), "b1": bias(ks[11], Fh),
                "w2": lin(ks[12], Fh, embed_size), "b2": bias(ks[13], embed_size)},
    }


# ----------------------------------------------------------------------------
if __name__ == "__main__":
    N, L_TRG, L_SRC = 2, 8, 8
    EMBED, HEADS, FWD_EXP = 32, 4, 4

    root = jax.random.PRNGKey(0)
    k_par, k_x, k_v, k_k = jax.random.split(root, 4)

    params = init_params(k_par, EMBED, HEADS, FWD_EXP)

    x = jax.random.normal(k_x, (N, L_TRG, EMBED), jnp.float32)
    value = jax.random.normal(k_v, (N, L_SRC, EMBED), jnp.float32)
    key = jax.random.normal(k_k, (N, L_SRC, EMBED), jnp.float32)

    # causal target mask; source mask pads the last 2 positions of batch 1
    trg_mask = jnp.broadcast_to(
        jnp.tril(jnp.ones((L_TRG, L_TRG), jnp.float32)), (N, L_TRG, L_TRG))
    src_mask = jnp.ones((N, L_TRG, L_SRC), jnp.float32)
    src_mask = src_mask.at[1, :, L_SRC - 2:].set(0.0)

    fwd = jax.jit(decoder_block, static_argnames=("heads",))
    out = fwd(x, value, key, src_mask, trg_mask, params, heads=HEADS)
    jax.block_until_ready(out)

    assert out.shape == (N, L_TRG, EMBED) and out.dtype == jnp.float32
    assert bool(jnp.all(jnp.isfinite(out)))
    print("KERNEL_OK")
</pallas_src>

<mosaic_0001>
module attributes {stable_mosaic.version = 11 : i64} {
  func.func @_decoder_block_kernel(%arg0: i32, %arg1: i32, %arg2: memref<1x8x32xf32, #tpu.memory_space<vmem>>, %arg3: memref<1x8x32xf32, #tpu.memory_space<vmem>>, %arg4: memref<1x8x32xf32, #tpu.memory_space<vmem>>, %arg5: memref<1x8x32xf32, #tpu.memory_space<vmem>>, %arg6: memref<1x8x8xbf16, #tpu.memory_space<vmem>>, %arg7: memref<1x8x8xbf16, #tpu.memory_space<vmem>>, %arg8: memref<8x8xbf16, #tpu.memory_space<vmem>>, %arg9: memref<8x16xbf16, #tpu.memory_space<vmem>>, %arg10: memref<32x32xbf16, #tpu.memory_space<vmem>>, %arg11: memref<1x32xf32, #tpu.memory_space<vmem>>, %arg12: memref<1x32xf32, #tpu.memory_space<vmem>>, %arg13: memref<1x32xf32, #tpu.memory_space<vmem>>, %arg14: memref<8x8xbf16, #tpu.memory_space<vmem>>, %arg15: memref<8x8xbf16, #tpu.memory_space<vmem>>, %arg16: memref<8x8xbf16, #tpu.memory_space<vmem>>, %arg17: memref<32x32xbf16, #tpu.memory_space<vmem>>, %arg18: memref<1x32xf32, #tpu.memory_space<vmem>>, %arg19: memref<1x32xf32, #tpu.memory_space<vmem>>, %arg20: memref<1x32xf32, #tpu.memory_space<vmem>>, %arg21: memref<32x128xbf16, #tpu.memory_space<vmem>>, %arg22: memref<1x128xf32, #tpu.memory_space<vmem>>, %arg23: memref<128x32xbf16, #tpu.memory_space<vmem>>, %arg24: memref<1x32xf32, #tpu.memory_space<vmem>>, %arg25: memref<1x32xf32, #tpu.memory_space<vmem>>, %arg26: memref<1x32xf32, #tpu.memory_space<vmem>>, %arg27: memref<1x8x32xf32, #tpu.memory_space<vmem>>) attributes {dimension_semantics = [#tpu.dimension_semantics<parallel>, #tpu.dimension_semantics<parallel>], iteration_bounds = array<i64: 2, 1>, scalar_prefetch = 0 : i64, scratch_operands = 0 : i64, tpu.core_type = #tpu.core_type<tc>, window_params = [{transform_indices = @transform_0, window_bounds = array<i64: 1, 8, 32>}, {transform_indices = @transform_1, window_bounds = array<i64: 1, 8, 32>}, {transform_indices = @transform_2, window_bounds = array<i64: 1, 8, 32>}, {transform_indices = @transform_3, window_bounds = array<i64: 1, 8, 32>}, {transform_indices = @transform_4, window_bounds = array<i64: 1, 8, 8>}, {transform_indices = @transform_5, window_bounds = array<i64: 1, 8, 8>}, {pipeline_mode = #tpu.pipeline_mode<synchronous>, transform_indices = @transform_6, window_bounds = array<i64: 8, 8>}, {pipeline_mode = #tpu.pipeline_mode<synchronous>, transform_indices = @transform_7, window_bounds = array<i64: 8, 16>}, {pipeline_mode = #tpu.pipeline_mode<synchronous>, transform_indices = @transform_8, window_bounds = array<i64: 32, 32>}, {pipeline_mode = #tpu.pipeline_mode<synchronous>, transform_indices = @transform_9, window_bounds = array<i64: 1, 32>}, {pipeline_mode = #tpu.pipeline_mode<synchronous>, transform_indices = @transform_10, window_bounds = array<i64: 1, 32>}, {pipeline_mode = #tpu.pipeline_mode<synchronous>, transform_indices = @transform_11, window_bounds = array<i64: 1, 32>}, {pipeline_mode = #tpu.pipeline_mode<synchronous>, transform_indices = @transform_12, window_bounds = array<i64: 8, 8>}, {pipeline_mode = #tpu.pipeline_mode<synchronous>, transform_indices = @transform_13, window_bounds = array<i64: 8, 8>}, {pipeline_mode = #tpu.pipeline_mode<synchronous>, transform_indices = @transform_14, window_bounds = array<i64: 8, 8>}, {pipeline_mode = #tpu.pipeline_mode<synchronous>, transform_indices = @transform_15, window_bounds = array<i64: 32, 32>}, {pipeline_mode = #tpu.pipeline_mode<synchronous>, transform_indices = @transform_16, window_bounds = array<i64: 1, 32>}, {pipeline_mode = #tpu.pipeline_mode<synchronous>, transform_indices = @transform_17, window_bounds = array<i64: 1, 32>}, {pipeline_mode = #tpu.pipeline_mode<synchronous>, transform_indices = @transform_18, window_bounds = array<i64: 1, 32>}, {pipeline_mode = #tpu.pipeline_mode<synchronous>, transform_indices = @transform_19, window_bounds = array<i64: 32, 128>}, {pipeline_mode = #tpu.pipeline_mode<synchronous>, transform_indices = @transform_20, window_bounds = array<i64: 1, 128>}, {pipeline_mode = #tpu.pipeline_mode<synchronous>, transform_indices = @transform_21, window_bounds = array<i64: 128, 32>}, {pipeline_mode = #tpu.pipeline_mode<synchronous>, transform_indices = @transform_22, window_bounds = array<i64: 1, 32>}, {pipeline_mode = #tpu.pipeline_mode<synchronous>, transform_indices = @transform_23, window_bounds = array<i64: 1, 32>}, {pipeline_mode = #tpu.pipeline_mode<synchronous>, transform_indices = @transform_24, window_bounds = array<i64: 1, 32>}, {transform_indices = @transform_25, window_bounds = array<i64: 1, 8, 32>}]} {
    %c0 = arith.constant 0 : index
    %c0_0 = arith.constant 0 : index
    %c0_1 = arith.constant 0 : index
    %0 = vector.load %arg2[%c0, %c0_0, %c0_1] : memref<1x8x32xf32, #tpu.memory_space<vmem>>, vector<1x8x32xf32>
    %1 = vector.shape_cast %0 : vector<1x8x32xf32> to vector<8x32xf32>
    %c0_2 = arith.constant 0 : index
    %c0_3 = arith.constant 0 : index
    %c0_4 = arith.constant 0 : index
    %2 = vector.load %arg2[%c0_2, %c0_3, %c0_4] : memref<1x8x32xf32, #tpu.memory_space<vmem>>, vector<1x8x32xf32>
    %3 = vector.shape_cast %2 : vector<1x8x32xf32> to vector<8x32xf32>
    %4 = arith.truncf %3 : vector<8x32xf32> to vector<8x32xbf16>
    %c0_5 = arith.constant 0 : index
    %c0_6 = arith.constant 0 : index
    %c0_7 = arith.constant 0 : index
    %5 = vector.load %arg3[%c0_5, %c0_6, %c0_7] : memref<1x8x32xf32, #tpu.memory_space<vmem>>, vector<1x8x32xf32>
    %6 = vector.shape_cast %5 : vector<1x8x32xf32> to vector<8x32xf32>
    %7 = arith.truncf %6 : vector<8x32xf32> to vector<8x32xbf16>
    %c0_8 = arith.constant 0 : index
    %c0_9 = arith.constant 0 : index
    %c0_10 = arith.constant 0 : index
    %8 = vector.load %arg6[%c0_8, %c0_9, %c0_10] : memref<1x8x8xbf16, #tpu.memory_space<vmem>>, vector<1x8x8xbf16>
    %9 = vector.shape_cast %8 : vector<1x8x8xbf16> to vector<8x8xbf16>
    %10 = arith.extf %9 : vector<8x8xbf16> to vector<8x8xf32>
    %c0_11 = arith.constant 0 : index
    %c0_12 = arith.constant 0 : index
    %c0_13 = arith.constant 0 : index
    %11 = vector.load %arg7[%c0_11, %c0_12, %c0_13] : memref<1x8x8xbf16, #tpu.memory_space<vmem>>, vector<1x8x8xbf16>
    %12 = vector.shape_cast %11 : vector<1x8x8xbf16> to vector<8x8xbf16>
    %13 = arith.extf %12 : vector<8x8xbf16> to vector<8x8xf32>
    %14 = vector.extract_strided_slice %4 {offsets = [0, 0], sizes = [8, 8], strides = [1, 1]} : vector<8x32xbf16> to vector<8x8xbf16>
    %c0_14 = arith.constant 0 : index
    %c0_15 = arith.constant 0 : index
    %15 = vector.load %arg8[%c0_14, %c0_15] : memref<8x8xbf16, #tpu.memory_space<vmem>>, vector<8x8xbf16>
    %cst = arith.constant dense<0.000000e+00> : vector<8x8xf32>
    %16 = tpu.matmul %14, %15, %cst {dimension_numbers = #tpu.dot_dimension_numbers<[1], [0], [0], [1], [0, 0, 1, 1], [], []>} : vector<8x8xbf16>, vector<8x8xbf16>, vector<8x8xf32> -> vector<8x8xf32>
    %17 = arith.truncf %16 : vector<8x8xf32> to vector<8x8xbf16>
    %18 = vector.extract_strided_slice %7 {offsets = [0, 0], sizes = [8, 8], strides = [1, 1]} : vector<8x32xbf16> to vector<8x8xbf16>
    %c0_16 = arith.constant 0 : index
    %c0_17 = arith.constant 0 : index
    %19 = vector.load %arg9[%c0_16, %c0_17] : memref<8x16xbf16, #tpu.memory_space<vmem>>, vector<8x16xbf16>
    %cst_18 = arith.constant dense<0.000000e+00> : vector<8x16xf32>
    %20 = tpu.matmul %18, %19, %cst_18 {dimension_numbers = #tpu.dot_dimension_numbers<[1], [0], [0], [1], [0, 0, 1, 1], [], []>} : vector<8x8xbf16>, vector<8x16xbf16>, vector<8x16xf32> -> vector<8x16xf32>
    %21 = arith.truncf %20 : vector<8x16xf32> to vector<8x16xbf16>
    %22 = vector.extract_strided_slice %21 {offsets = [0, 0], sizes = [8, 8], strides = [1, 1]} : vector<8x16xbf16> to vector<8x8xbf16>
    %23 = vector.extract_strided_slice %21 {offsets = [0, 8], sizes = [8, 8], strides = [1, 1]} : vector<8x16xbf16> to vector<8x8xbf16>
    %cst_19 = arith.constant dense<0.000000e+00> : vector<8x8xf32>
    %24 = tpu.matmul %17, %22, %cst_19 {dimension_numbers = #tpu.dot_dimension_numbers<[1], [1], [0], [0], [0, 0, 1, 0], [], []>} : vector<8x8xbf16>, vector<8x8xbf16>, vector<8x8xf32> -> vector<8x8xf32>
    %25 = arith.addf %24, %10 : vector<8x8xf32>
    %cst_20 = arith.constant dense<0xFF800000> : vector<8xf32>
    %26 = vector.multi_reduction <maximumf>, %25, %cst_20 [1] : vector<8x8xf32> to vector<8xf32>
    %27 = vector.shape_cast %26 : vector<8xf32> to vector<8x1xf32>
    %28 = vector.broadcast %27 : vector<8x1xf32> to vector<8x8xf32>
    %29 = arith.subf %25, %28 : vector<8x8xf32>
    %30 = math.exp %29 : vector<8x8xf32>
    %cst_21 = arith.constant dense<0.000000e+00> : vector<8xf32>
    %31 = vector.multi_reduction <add>, %30, %cst_21 [1] : vector<8x8xf32> to vector<8xf32>
    %32 = vector.shape_cast %31 : vector<8xf32> to vector<8x1xf32>
    %33 = tpu.reciprocal %32 {approx = true} : vector<8x1xf32> -> vector<8x1xf32>
    %34 = vector.broadcast %33 : vector<8x1xf32> to vector<8x8xf32>
    %35 = arith.mulf %30, %34 : vector<8x8xf32>
    %36 = arith.truncf %35 : vector<8x8xf32> to vector<8x8xbf16>
    %cst_22 = arith.constant dense<0.000000e+00> : vector<8x8xf32>
    %37 = tpu.matmul %36, %23, %cst_22 {dimension_numbers = #tpu.dot_dimension_numbers<[1], [0], [0], [1], [0, 0, 1, 1], [], []>} : vector<8x8xbf16>, vector<8x8xbf16>, vector<8x8xf32> -> vector<8x8xf32>
    %38 = arith.truncf %37 : vector<8x8xf32> to vector<8x8xbf16>
    %c0_23 = arith.constant 0 : index
    %c0_24 = arith.constant 0 : index
    %39 = vector.load %arg10[%c0_23, %c0_24] : memref<32x32xbf16, #tpu.memory_space<vmem>>, vector<8x32xbf16>
    %cst_25 = arith.constant dense<0.000000e+00> : vector<8x32xf32>
    %40 = tpu.matmul %38, %39, %cst_25 {dimension_numbers = #tpu.dot_dimension_numbers<[1], [0], [0], [1], [0, 0, 1, 1], [], []>} : vector<8x8xbf16>, vector<8x32xbf16>, vector<8x32xf32> -> vector<8x32xf32>
    %41 = vector.extract_strided_slice %4 {offsets = [0, 8], sizes = [8, 8], strides = [1, 1]} : vector<8x32xbf16> to vector<8x8xbf16>
    %c0_26 = arith.constant 0 : index
    %c0_27 = arith.constant 0 : index
    %42 = vector.load %arg8[%c0_26, %c0_27] : memref<8x8xbf16, #tpu.memory_space<vmem>>, vector<8x8xbf16>
    %cst_28 = arith.constant dense<0.000000e+00> : vector<8x8xf32>
    %43 = tpu.matmul %41, %42, %cst_28 {dimension_numbers = #tpu.dot_dimension_numbers<[1], [0], [0], [1], [0, 0, 1, 1], [], []>} : vector<8x8xbf16>, vector<8x8xbf16>, vector<8x8xf32> -> vector<8x8xf32>
    %44 = arith.truncf %43 : vector<8x8xf32> to vector<8x8xbf16>
    %45 = vector.extract_strided_slice %7 {offsets = [0, 8], sizes = [8, 8], strides = [1, 1]} : vector<8x32xbf16> to vector<8x8xbf16>
    %c0_29 = arith.constant 0 : index
    %c0_30 = arith.constant 0 : index
    %46 = vector.load %arg9[%c0_29, %c0_30] : memref<8x16xbf16, #tpu.memory_space<vmem>>, vector<8x16xbf16>
    %cst_31 = arith.constant dense<0.000000e+00> : vector<8x16xf32>
    %47 = tpu.matmul %45, %46, %cst_31 {dimension_numbers = #tpu.dot_dimension_numbers<[1], [0], [0], [1], [0, 0, 1, 1], [], []>} : vector<8x8xbf16>, vector<8x16xbf16>, vector<8x16xf32> -> vector<8x16xf32>
    %48 = arith.truncf %47 : vector<8x16xf32> to vector<8x16xbf16>
    %49 = vector.extract_strided_slice %48 {offsets = [0, 0], sizes = [8, 8], strides = [1, 1]} : vector<8x16xbf16> to vector<8x8xbf16>
    %50 = vector.extract_strided_slice %48 {offsets = [0, 8], sizes = [8, 8], strides = [1, 1]} : vector<8x16xbf16> to vector<8x8xbf16>
    %cst_32 = arith.constant dense<0.000000e+00> : vector<8x8xf32>
    %51 = tpu.matmul %44, %49, %cst_32 {dimension_numbers = #tpu.dot_dimension_numbers<[1], [1], [0], [0], [0, 0, 1, 0], [], []>} : vector<8x8xbf16>, vector<8x8xbf16>, vector<8x8xf32> -> vector<8x8xf32>
    %52 = arith.addf %51, %10 : vector<8x8xf32>
    %cst_33 = arith.constant dense<0xFF800000> : vector<8xf32>
    %53 = vector.multi_reduction <maximumf>, %52, %cst_33 [1] : vector<8x8xf32> to vector<8xf32>
    %54 = vector.shape_cast %53 : vector<8xf32> to vector<8x1xf32>
    %55 = vector.broadcast %54 : vector<8x1xf32> to vector<8x8xf32>
    %56 = arith.subf %52, %55 : vector<8x8xf32>
    %57 = math.exp %56 : vector<8x8xf32>
    %cst_34 = arith.constant dense<0.000000e+00> : vector<8xf32>
    %58 = vector.multi_reduction <add>, %57, %cst_34 [1] : vector<8x8xf32> to vector<8xf32>
    %59 = vector.shape_cast %58 : vector<8xf32> to vector<8x1xf32>
    %60 = tpu.reciprocal %59 {approx = true} : vector<8x1xf32> -> vector<8x1xf32>
    %61 = vector.broadcast %60 : vector<8x1xf32> to vector<8x8xf32>
    %62 = arith.mulf %57, %61 : vector<8x8xf32>
    %63 = arith.truncf %62 : vector<8x8xf32> to vector<8x8xbf16>
    %cst_35 = arith.constant dense<0.000000e+00> : vector<8x8xf32>
    %64 = tpu.matmul %63, %50, %cst_35 {dimension_numbers = #tpu.dot_dimension_numbers<[1], [0], [0], [1], [0, 0, 1, 1], [], []>} : vector<8x8xbf16>, vector<8x8xbf16>, vector<8x8xf32> -> vector<8x8xf32>
    %65 = arith.truncf %64 : vector<8x8xf32> to vector<8x8xbf16>
    %c8 = arith.constant 8 : index
    %c0_36 = arith.constant 0 : index
    %66 = vector.load %arg10[%c8, %c0_36] : memref<32x32xbf16, #tpu.memory_space<vmem>>, vector<8x32xbf16>
    %cst_37 = arith.constant dense<0.000000e+00> : vector<8x32xf32>
    %67 = tpu.matmul %65, %66, %cst_37 {dimension_numbers = #tpu.dot_dimension_numbers<[1], [0], [0], [1], [0, 0, 1, 1], [], []>} : vector<8x8xbf16>, vector<8x32xbf16>, vector<8x32xf32> -> vector<8x32xf32>
    %68 = arith.addf %40, %67 : vector<8x32xf32>
    %69 = vector.extract_strided_slice %4 {offsets = [0, 16], sizes = [8, 8], strides = [1, 1]} : vector<8x32xbf16> to vector<8x8xbf16>
    %c0_38 = arith.constant 0 : index
    %c0_39 = arith.constant 0 : index
    %70 = vector.load %arg8[%c0_38, %c0_39] : memref<8x8xbf16, #tpu.memory_space<vmem>>, vector<8x8xbf16>
    %cst_40 = arith.constant dense<0.000000e+00> : vector<8x8xf32>
    %71 = tpu.matmul %69, %70, %cst_40 {dimension_numbers = #tpu.dot_dimension_numbers<[1], [0], [0], [1], [0, 0, 1, 1], [], []>} : vector<8x8xbf16>, vector<8x8xbf16>, vector<8x8xf32> -> vector<8x8xf32>
    %72 = arith.truncf %71 : vector<8x8xf32> to vector<8x8xbf16>
    %73 = vector.extract_strided_slice %7 {offsets = [0, 16], sizes = [8, 8], strides = [1, 1]} : vector<8x32xbf16> to vector<8x8xbf16>
    %c0_41 = arith.constant 0 : index
    %c0_42 = arith.constant 0 : index
    %74 = vector.load %arg9[%c0_41, %c0_42] : memref<8x16xbf16, #tpu.memory_space<vmem>>, vector<8x16xbf16>
    %cst_43 = arith.constant dense<0.000000e+00> : vector<8x16xf32>
    %75 = tpu.matmul %73, %74, %cst_43 {dimension_numbers = #tpu.dot_dimension_numbers<[1], [0], [0], [1], [0, 0, 1, 1], [], []>} : vector<8x8xbf16>, vector<8x16xbf16>, vector<8x16xf32> -> vector<8x16xf32>
    %76 = arith.truncf %75 : vector<8x16xf32> to vector<8x16xbf16>
    %77 = vector.extract_strided_slice %76 {offsets = [0, 0], sizes = [8, 8], strides = [1, 1]} : vector<8x16xbf16> to vector<8x8xbf16>
    %78 = vector.extract_strided_slice %76 {offsets = [0, 8], sizes = [8, 8], strides = [1, 1]} : vector<8x16xbf16> to vector<8x8xbf16>
    %cst_44 = arith.constant dense<0.000000e+00> : vector<8x8xf32>
    %79 = tpu.matmul %72, %77, %cst_44 {dimension_numbers = #tpu.dot_dimension_numbers<[1], [1], [0], [0], [0, 0, 1, 0], [], []>} : vector<8x8xbf16>, vector<8x8xbf16>, vector<8x8xf32> -> vector<8x8xf32>
    %80 = arith.addf %79, %10 : vector<8x8xf32>
    %cst_45 = arith.constant dense<0xFF800000> : vector<8xf32>
    %81 = vector.multi_reduction <maximumf>, %80, %cst_45 [1] : vector<8x8xf32> to vector<8xf32>
    %82 = vector.shape_cast %81 : vector<8xf32> to vector<8x1xf32>
    %83 = vector.broadcast %82 : vector<8x1xf32> to vector<8x8xf32>
    %84 = arith.subf %80, %83 : vector<8x8xf32>
    %85 = math.exp %84 : vector<8x8xf32>
    %cst_46 = arith.constant dense<0.000000e+00> : vector<8xf32>
    %86 = vector.multi_reduction <add>, %85, %cst_46 [1] : vector<8x8xf32> to vector<8xf32>
    %87 = vector.shape_cast %86 : vector<8xf32> to vector<8x1xf32>
    %88 = tpu.reciprocal %87 {approx = true} : vector<8x1xf32> -> vector<8x1xf32>
    %89 = vector.broadcast %88 : vector<8x1xf32> to vector<8x8xf32>
    %90 = arith.mulf %85, %89 : vector<8x8xf32>
    %91 = arith.truncf %90 : vector<8x8xf32> to vector<8x8xbf16>
    %cst_47 = arith.constant dense<0.000000e+00> : vector<8x8xf32>
    %92 = tpu.matmul %91, %78, %cst_47 {dimension_numbers = #tpu.dot_dimension_numbers<[1], [0], [0], [1], [0, 0, 1, 1], [], []>} : vector<8x8xbf16>, vector<8x8xbf16>, vector<8x8xf32> -> vector<8x8xf32>
    %93 = arith.truncf %92 : vector<8x8xf32> to vector<8x8xbf16>
    %c16 = arith.constant 16 : index
    %c0_48 = arith.constant 0 : index
    %94 = vector.load %arg10[%c16, %c0_48] : memref<32x32xbf16, #tpu.memory_space<vmem>>, vector<8x32xbf16>
    %cst_49 = arith.constant dense<0.000000e+00> : vector<8x32xf32>
    %95 = tpu.matmul %93, %94, %cst_49 {dimension_numbers = #tpu.dot_dimension_numbers<[1], [0], [0], [1], [0, 0, 1, 1], [], []>} : vector<8x8xbf16>, vector<8x32xbf16>, vector<8x32xf32> -> vector<8x32xf32>
    %96 = arith.addf %68, %95 : vector<8x32xf32>
    %97 = vector.extract_strided_slice %4 {offsets = [0, 24], sizes = [8, 8], strides = [1, 1]} : vector<8x32xbf16> to vector<8x8xbf16>
    %c0_50 = arith.constant 0 : index
    %c0_51 = arith.constant 0 : index
    %98 = vector.load %arg8[%c0_50, %c0_51] : memref<8x8xbf16, #tpu.memory_space<vmem>>, vector<8x8xbf16>
    %cst_52 = arith.constant dense<0.000000e+00> : vector<8x8xf32>
    %99 = tpu.matmul %97, %98, %cst_52 {dimension_numbers = #tpu.dot_dimension_numbers<[1], [0], [0], [1], [0, 0, 1, 1], [], []>} : vector<8x8xbf16>, vector<8x8xbf16>, vector<8x8xf32> -> vector<8x8xf32>
    %100 = arith.truncf %99 : vector<8x8xf32> to vector<8x8xbf16>
    %101 = vector.extract_strided_slice %7 {offsets = [0, 24], sizes = [8, 8], strides = [1, 1]} : vector<8x32xbf16> to vector<8x8xbf16>
    %c0_53 = arith.constant 0 : index
    %c0_54 = arith.constant 0 : index
    %102 = vector.load %arg9[%c0_53, %c0_54] : memref<8x16xbf16, #tpu.memory_space<vmem>>, vector<8x16xbf16>
    %cst_55 = arith.constant dense<0.000000e+00> : vector<8x16xf32>
    %103 = tpu.matmul %101, %102, %cst_55 {dimension_numbers = #tpu.dot_dimension_numbers<[1], [0], [0], [1], [0, 0, 1, 1], [], []>} : vector<8x8xbf16>, vector<8x16xbf16>, vector<8x16xf32> -> vector<8x16xf32>
    %104 = arith.truncf %103 : vector<8x16xf32> to vector<8x16xbf16>
    %105 = vector.extract_strided_slice %104 {offsets = [0, 0], sizes = [8, 8], strides = [1, 1]} : vector<8x16xbf16> to vector<8x8xbf16>
    %106 = vector.extract_strided_slice %104 {offsets = [0, 8], sizes = [8, 8], strides = [1, 1]} : vector<8x16xbf16> to vector<8x8xbf16>
    %cst_56 = arith.constant dense<0.000000e+00> : vector<8x8xf32>
    %107 = tpu.matmul %100, %105, %cst_56 {dimension_numbers = #tpu.dot_dimension_numbers<[1], [1], [0], [0], [0, 0, 1, 0], [], []>} : vector<8x8xbf16>, vector<8x8xbf16>, vector<8x8xf32> -> vector<8x8xf32>
    %108 = arith.addf %107, %10 : vector<8x8xf32>
    %cst_57 = arith.constant dense<0xFF800000> : vector<8xf32>
    %109 = vector.multi_reduction <maximumf>, %108, %cst_57 [1] : vector<8x8xf32> to vector<8xf32>
    %110 = vector.shape_cast %109 : vector<8xf32> to vector<8x1xf32>
    %111 = vector.broadcast %110 : vector<8x1xf32> to vector<8x8xf32>
    %112 = arith.subf %108, %111 : vector<8x8xf32>
    %113 = math.exp %112 : vector<8x8xf32>
    %cst_58 = arith.constant dense<0.000000e+00> : vector<8xf32>
    %114 = vector.multi_reduction <add>, %113, %cst_58 [1] : vector<8x8xf32> to vector<8xf32>
    %115 = vector.shape_cast %114 : vector<8xf32> to vector<8x1xf32>
    %116 = tpu.reciprocal %115 {approx = true} : vector<8x1xf32> -> vector<8x1xf32>
    %117 = vector.broadcast %116 : vector<8x1xf32> to vector<8x8xf32>
    %118 = arith.mulf %113, %117 : vector<8x8xf32>
    %119 = arith.truncf %118 : vector<8x8xf32> to vector<8x8xbf16>
    %cst_59 = arith.constant dense<0.000000e+00> : vector<8x8xf32>
    %120 = tpu.matmul %119, %106, %cst_59 {dimension_numbers = #tpu.dot_dimension_numbers<[1], [0], [0], [1], [0, 0, 1, 1], [], []>} : vector<8x8xbf16>, vector<8x8xbf16>, vector<8x8xf32> -> vector<8x8xf32>
    %121 = arith.truncf %120 : vector<8x8xf32> to vector<8x8xbf16>
    %c24 = arith.constant 24 : index
    %c0_60 = arith.constant 0 : index
    %122 = vector.load %arg10[%c24, %c0_60] : memref<32x32xbf16, #tpu.memory_space<vmem>>, vector<8x32xbf16>
    %cst_61 = arith.constant dense<0.000000e+00> : vector<8x32xf32>
    %123 = tpu.matmul %121, %122, %cst_61 {dimension_numbers = #tpu.dot_dimension_numbers<[1], [0], [0], [1], [0, 0, 1, 1], [], []>} : vector<8x8xbf16>, vector<8x32xbf16>, vector<8x32xf32> -> vector<8x32xf32>
    %124 = arith.addf %96, %123 : vector<8x32xf32>
    %c0_62 = arith.constant 0 : index
    %c0_63 = arith.constant 0 : index
    %125 = vector.load %arg11[%c0_62, %c0_63] : memref<1x32xf32, #tpu.memory_space<vmem>>, vector<1x32xf32>
    %126 = vector.broadcast %125 : vector<1x32xf32> to vector<8x32xf32>
    %127 = arith.addf %124, %126 : vector<8x32xf32>
    %128 = arith.addf %127, %1 : vector<8x32xf32>
    %c0_64 = arith.constant 0 : index
    %c0_65 = arith.constant 0 : index
    %129 = vector.load %arg12[%c0_64, %c0_65] : memref<1x32xf32, #tpu.memory_space<vmem>>, vector<1x32xf32>
    %c0_66 = arith.constant 0 : index
    %c0_67 = arith.constant 0 : index
    %130 = vector.load %arg13[%c0_66, %c0_67] : memref<1x32xf32, #tpu.memory_space<vmem>>, vector<1x32xf32>
    %cst_68 = arith.constant dense<0.000000e+00> : vector<8xf32>
    %131 = vector.multi_reduction <add>, %128, %cst_68 [1] : vector<8x32xf32> to vector<8xf32>
    %132 = vector.shape_cast %131 : vector<8xf32> to vector<8x1xf32>
    %cst_69 = arith.constant 3.200000e+01 : f32
    %133 = vector.broadcast %cst_69 : f32 to vector<8x1xf32>
    %134 = arith.divf %132, %133 : vector<8x1xf32>
    %135 = vector.broadcast %134 : vector<8x1xf32> to vector<8x32xf32>
    %136 = arith.subf %128, %135 : vector<8x32xf32>
    %137 = arith.mulf %136, %136 : vector<8x32xf32>
    %cst_70 = arith.constant dense<0.000000e+00> : vector<8xf32>
    %138 = vector.multi_reduction <add>, %137, %cst_70 [1] : vector<8x32xf32> to vector<8xf32>
    %139 = vector.shape_cast %138 : vector<8xf32> to vector<8x1xf32>
    %cst_71 = arith.constant 3.200000e+01 : f32
    %140 = vector.broadcast %cst_71 : f32 to vector<8x1xf32>
    %141 = arith.divf %139, %140 : vector<8x1xf32>
    %142 = vector.broadcast %134 : vector<8x1xf32> to vector<8x32xf32>
    %143 = arith.subf %128, %142 : vector<8x32xf32>
    %cst_72 = arith.constant 9.99999974E-6 : f32
    %144 = vector.broadcast %cst_72 : f32 to vector<8x1xf32>
    %145 = arith.addf %141, %144 : vector<8x1xf32>
    %146 = math.rsqrt %145 : vector<8x1xf32>
    %147 = vector.broadcast %146 : vector<8x1xf32> to vector<8x32xf32>
    %148 = arith.mulf %143, %147 : vector<8x32xf32>
    %149 = vector.broadcast %129 : vector<1x32xf32> to vector<8x32xf32>
    %150 = arith.mulf %148, %149 : vector<8x32xf32>
    %151 = vector.broadcast %130 : vector<1x32xf32> to vector<8x32xf32>
    %152 = arith.addf %150, %151 : vector<8x32xf32>
    %153 = arith.truncf %152 : vector<8x32xf32> to vector<8x32xbf16>
    %c0_73 = arith.constant 0 : index
    %c0_74 = arith.constant 0 : index
    %c0_75 = arith.constant 0 : index
    %154 = vector.load %arg5[%c0_73, %c0_74, %c0_75] : memref<1x8x32xf32, #tpu.memory_space<vmem>>, vector<1x8x32xf32>
    %155 = vector.shape_cast %154 : vector<1x8x32xf32> to vector<8x32xf32>
    %156 = arith.truncf %155 : vector<8x32xf32> to vector<8x32xbf16>
    %c0_76 = arith.constant 0 : index
    %c0_77 = arith.constant 0 : index
    %c0_78 = arith.constant 0 : index
    %157 = vector.load %arg4[%c0_76, %c0_77, %c0_78] : memref<1x8x32xf32, #tpu.memory_space<vmem>>, vector<1x8x32xf32>
    %158 = vector.shape_cast %157 : vector<1x8x32xf32> to vector<8x32xf32>
    %159 = arith.truncf %158 : vector<8x32xf32> to vector<8x32xbf16>
    %160 = vector.extract_strided_slice %153 {offsets = [0, 0], sizes = [8, 8], strides = [1, 1]} : vector<8x32xbf16> to vector<8x8xbf16>
    %c0_79 = arith.constant 0 : index
    %c0_80 = arith.constant 0 : index
    %161 = vector.load %arg14[%c0_79, %c0_80] : memref<8x8xbf16, #tpu.memory_space<vmem>>, vector<8x8xbf16>
    %cst_81 = arith.constant dense<0.000000e+00> : vector<8x8xf32>
    %162 = tpu.matmul %160, %161, %cst_81 {dimension_numbers = #tpu.dot_dimension_numbers<[1], [0], [0], [1], [0, 0, 1, 1], [], []>} : vector<8x8xbf16>, vector<8x8xbf16>, vector<8x8xf32> -> vector<8x8xf32>
    %163 = arith.truncf %162 : vector<8x8xf32> to vector<8x8xbf16>
    %164 = vector.extract_strided_slice %156 {offsets = [0, 0], sizes = [8, 8], strides = [1, 1]} : vector<8x32xbf16> to vector<8x8xbf16>
    %c0_82 = arith.constant 0 : index
    %c0_83 = arith.constant 0 : index
    %165 = vector.load %arg15[%c0_82, %c0_83] : memref<8x8xbf16, #tpu.memory_space<vmem>>, vector<8x8xbf16>
    %cst_84 = arith.constant dense<0.000000e+00> : vector<8x8xf32>
    %166 = tpu.matmul %164, %165, %cst_84 {dimension_numbers = #tpu.dot_dimension_numbers<[1], [0], [0], [1], [0, 0, 1, 1], [], []>} : vector<8x8xbf16>, vector<8x8xbf16>, vector<8x8xf32> -> vector<8x8xf32>
    %167 = arith.truncf %166 : vector<8x8xf32> to vector<8x8xbf16>
    %168 = vector.extract_strided_slice %159 {offsets = [0, 0], sizes = [8, 8], strides = [1, 1]} : vector<8x32xbf16> to vector<8x8xbf16>
    %c0_85 = arith.constant 0 : index
    %c0_86 = arith.constant 0 : index
    %169 = vector.load %arg16[%c0_85, %c0_86] : memref<8x8xbf16, #tpu.memory_space<vmem>>, vector<8x8xbf16>
    %cst_87 = arith.constant dense<0.000000e+00> : vector<8x8xf32>
    %170 = tpu.matmul %168, %169, %cst_87 {dimension_numbers = #tpu.dot_dimension_numbers<[1], [0], [0], [1], [0, 0, 1, 1], [], []>} : vector<8x8xbf16>, vector<8x8xbf16>, vector<8x8xf32> -> vector<8x8xf32>
    %171 = arith.truncf %170 : vector<8x8xf32> to vector<8x8xbf16>
    %cst_88 = arith.constant dense<0.000000e+00> : vector<8x8xf32>
    %172 = tpu.matmul %163, %167, %cst_88 {dimension_numbers = #tpu.dot_dimension_numbers<[1], [1], [0], [0], [0, 0, 1, 0], [], []>} : vector<8x8xbf16>, vector<8x8xbf16>, vector<8x8xf32> -> vector<8x8xf32>
    %173 = arith.addf %172, %13 : vector<8x8xf32>
    %cst_89 = arith.constant dense<0xFF800000> : vector<8xf32>
    %174 = vector.multi_reduction <maximumf>, %173, %cst_89 [1] : vector<8x8xf32> to vector<8xf32>
    %175 = vector.shape_cast %174 : vector<8xf32> to vector<8x1xf32>
    %176 = vector.broadcast %175 : vector<8x1xf32> to vector<8x8xf32>
    %177 = arith.subf %173, %176 : vector<8x8xf32>
    %178 = math.exp %177 : vector<8x8xf32>
    %cst_90 = arith.constant dense<0.000000e+00> : vector<8xf32>
    %179 = vector.multi_reduction <add>, %178, %cst_90 [1] : vector<8x8xf32> to vector<8xf32>
    %180 = vector.shape_cast %179 : vector<8xf32> to vector<8x1xf32>
    %181 = tpu.reciprocal %180 {approx = true} : vector<8x1xf32> -> vector<8x1xf32>
    %182 = vector.broadcast %181 : vector<8x1xf32> to vector<8x8xf32>
    %183 = arith.mulf %178, %182 : vector<8x8xf32>
    %184 = arith.truncf %183 : vector<8x8xf32> to vector<8x8xbf16>
    %cst_91 = arith.constant dense<0.000000e+00> : vector<8x8xf32>
    %185 = tpu.matmul %184, %171, %cst_91 {dimension_numbers = #tpu.dot_dimension_numbers<[1], [0], [0], [1], [0, 0, 1, 1], [], []>} : vector<8x8xbf16>, vector<8x8xbf16>, vector<8x8xf32> -> vector<8x8xf32>
    %186 = arith.truncf %185 : vector<8x8xf32> to vector<8x8xbf16>
    %c0_92 = arith.constant 0 : index
    %c0_93 = arith.constant 0 : index
    %187 = vector.load %arg17[%c0_92, %c0_93] : memref<32x32xbf16, #tpu.memory_space<vmem>>, vector<8x32xbf16>
    %cst_94 = arith.constant dense<0.000000e+00> : vector<8x32xf32>
    %188 = tpu.matmul %186, %187, %cst_94 {dimension_numbers = #tpu.dot_dimension_numbers<[1], [0], [0], [1], [0, 0, 1, 1], [], []>} : vector<8x8xbf16>, vector<8x32xbf16>, vector<8x32xf32> -> vector<8x32xf32>
    %189 = vector.extract_strided_slice %153 {offsets = [0, 8], sizes = [8, 8], strides = [1, 1]} : vector<8x32xbf16> to vector<8x8xbf16>
    %c0_95 = arith.constant 0 : index
    %c0_96 = arith.constant 0 : index
    %190 = vector.load %arg14[%c0_95, %c0_96] : memref<8x8xbf16, #tpu.memory_space<vmem>>, vector<8x8xbf16>
    %cst_97 = arith.constant dense<0.000000e+00> : vector<8x8xf32>
    %191 = tpu.matmul %189, %190, %cst_97 {dimension_numbers = #tpu.dot_dimension_numbers<[1], [0], [0], [1], [0, 0, 1, 1], [], []>} : vector<8x8xbf16>, vector<8x8xbf16>, vector<8x8xf32> -> vector<8x8xf32>
    %192 = arith.truncf %191 : vector<8x8xf32> to vector<8x8xbf16>
    %193 = vector.extract_strided_slice %156 {offsets = [0, 8], sizes = [8, 8], strides = [1, 1]} : vector<8x32xbf16> to vector<8x8xbf16>
    %c0_98 = arith.constant 0 : index
    %c0_99 = arith.constant 0 : index
    %194 = vector.load %arg15[%c0_98, %c0_99] : memref<8x8xbf16, #tpu.memory_space<vmem>>, vector<8x8xbf16>
    %cst_100 = arith.constant dense<0.000000e+00> : vector<8x8xf32>
    %195 = tpu.matmul %193, %194, %cst_100 {dimension_numbers = #tpu.dot_dimension_numbers<[1], [0], [0], [1], [0, 0, 1, 1], [], []>} : vector<8x8xbf16>, vector<8x8xbf16>, vector<8x8xf32> -> vector<8x8xf32>
    %196 = arith.truncf %195 : vector<8x8xf32> to vector<8x8xbf16>
    %197 = vector.extract_strided_slice %159 {offsets = [0, 8], sizes = [8, 8], strides = [1, 1]} : vector<8x32xbf16> to vector<8x8xbf16>
    %c0_101 = arith.constant 0 : index
    %c0_102 = arith.constant 0 : index
    %198 = vector.load %arg16[%c0_101, %c0_102] : memref<8x8xbf16, #tpu.memory_space<vmem>>, vector<8x8xbf16>
    %cst_103 = arith.constant dense<0.000000e+00> : vector<8x8xf32>
    %199 = tpu.matmul %197, %198, %cst_103 {dimension_numbers = #tpu.dot_dimension_numbers<[1], [0], [0], [1], [0, 0, 1, 1], [], []>} : vector<8x8xbf16>, vector<8x8xbf16>, vector<8x8xf32> -> vector<8x8xf32>
    %200 = arith.truncf %199 : vector<8x8xf32> to vector<8x8xbf16>
    %cst_104 = arith.constant dense<0.000000e+00> : vector<8x8xf32>
    %201 = tpu.matmul %192, %196, %cst_104 {dimension_numbers = #tpu.dot_dimension_numbers<[1], [1], [0], [0], [0, 0, 1, 0], [], []>} : vector<8x8xbf16>, vector<8x8xbf16>, vector<8x8xf32> -> vector<8x8xf32>
    %202 = arith.addf %201, %13 : vector<8x8xf32>
    %cst_105 = arith.constant dense<0xFF800000> : vector<8xf32>
    %203 = vector.multi_reduction <maximumf>, %202, %cst_105 [1] : vector<8x8xf32> to vector<8xf32>
    %204 = vector.shape_cast %203 : vector<8xf32> to vector<8x1xf32>
    %205 = vector.broadcast %204 : vector<8x1xf32> to vector<8x8xf32>
    %206 = arith.subf %202, %205 : vector<8x8xf32>
    %207 = math.exp %206 : vector<8x8xf32>
    %cst_106 = arith.constant dense<0.000000e+00> : vector<8xf32>
    %208 = vector.multi_reduction <add>, %207, %cst_106 [1] : vector<8x8xf32> to vector<8xf32>
    %209 = vector.shape_cast %208 : vector<8xf32> to vector<8x1xf32>
    %210 = tpu.reciprocal %209 {approx = true} : vector<8x1xf32> -> vector<8x1xf32>
    %211 = vector.broadcast %210 : vector<8x1xf32> to vector<8x8xf32>
    %212 = arith.mulf %207, %211 : vector<8x8xf32>
    %213 = arith.truncf %212 : vector<8x8xf32> to vector<8x8xbf16>
    %cst_107 = arith.constant dense<0.000000e+00> : vector<8x8xf32>
    %214 = tpu.matmul %213, %200, %cst_107 {dimension_numbers = #tpu.dot_dimension_numbers<[1], [0], [0], [1], [0, 0, 1, 1], [], []>} : vector<8x8xbf16>, vector<8x8xbf16>, vector<8x8xf32> -> vector<8x8xf32>
    %215 = arith.truncf %214 : vector<8x8xf32> to vector<8x8xbf16>
    %c8_108 = arith.constant 8 : index
    %c0_109 = arith.constant 0 : index
    %216 = vector.load %arg17[%c8_108, %c0_109] : memref<32x32xbf16, #tpu.memory_space<vmem>>, vector<8x32xbf16>
    %cst_110 = arith.constant dense<0.000000e+00> : vector<8x32xf32>
    %217 = tpu.matmul %215, %216, %cst_110 {dimension_numbers = #tpu.dot_dimension_numbers<[1], [0], [0], [1], [0, 0, 1, 1], [], []>} : vector<8x8xbf16>, vector<8x32xbf16>, vector<8x32xf32> -> vector<8x32xf32>
    %218 = arith.addf %188, %217 : vector<8x32xf32>
    %219 = vector.extract_strided_slice %153 {offsets = [0, 16], sizes = [8, 8], strides = [1, 1]} : vector<8x32xbf16> to vector<8x8xbf16>
    %c0_111 = arith.constant 0 : index
    %c0_112 = arith.constant 0 : index
    %220 = vector.load %arg14[%c0_111, %c0_112] : memref<8x8xbf16, #tpu.memory_space<vmem>>, vector<8x8xbf16>
    %cst_113 = arith.constant dense<0.000000e+00> : vector<8x8xf32>
    %221 = tpu.matmul %219, %220, %cst_113 {dimension_numbers = #tpu.dot_dimension_numbers<[1], [0], [0], [1], [0, 0, 1, 1], [], []>} : vector<8x8xbf16>, vector<8x8xbf16>, vector<8x8xf32> -> vector<8x8xf32>
    %222 = arith.truncf %221 : vector<8x8xf32> to vector<8x8xbf16>
    %223 = vector.extract_strided_slice %156 {offsets = [0, 16], sizes = [8, 8], strides = [1, 1]} : vector<8x32xbf16> to vector<8x8xbf16>
    %c0_114 = arith.constant 0 : index
    %c0_115 = arith.constant 0 : index
    %224 = vector.load %arg15[%c0_114, %c0_115] : memref<8x8xbf16, #tpu.memory_space<vmem>>, vector<8x8xbf16>
    %cst_116 = arith.constant dense<0.000000e+00> : vector<8x8xf32>
    %225 = tpu.matmul %223, %224, %cst_116 {dimension_numbers = #tpu.dot_dimension_numbers<[1], [0], [0], [1], [0, 0, 1, 1], [], []>} : vector<8x8xbf16>, vector<8x8xbf16>, vector<8x8xf32> -> vector<8x8xf32>
    %226 = arith.truncf %225 : vector<8x8xf32> to vector<8x8xbf16>
    %227 = vector.extract_strided_slice %159 {offsets = [0, 16], sizes = [8, 8], strides = [1, 1]} : vector<8x32xbf16> to vector<8x8xbf16>
    %c0_117 = arith.constant 0 : index
    %c0_118 = arith.constant 0 : index
    %228 = vector.load %arg16[%c0_117, %c0_118] : memref<8x8xbf16, #tpu.memory_space<vmem>>, vector<8x8xbf16>
    %cst_119 = arith.constant dense<0.000000e+00> : vector<8x8xf32>
    %229 = tpu.matmul %227, %228, %cst_119 {dimension_numbers = #tpu.dot_dimension_numbers<[1], [0], [0], [1], [0, 0, 1, 1], [], []>} : vector<8x8xbf16>, vector<8x8xbf16>, vector<8x8xf32> -> vector<8x8xf32>
    %230 = arith.truncf %229 : vector<8x8xf32> to vector<8x8xbf16>
    %cst_120 = arith.constant dense<0.000000e+00> : vector<8x8xf32>
    %231 = tpu.matmul %222, %226, %cst_120 {dimension_numbers = #tpu.dot_dimension_numbers<[1], [1], [0], [0], [0, 0, 1, 0], [], []>} : vector<8x8xbf16>, vector<8x8xbf16>, vector<8x8xf32> -> vector<8x8xf32>
    %232 = arith.addf %231, %13 : vector<8x8xf32>
    %cst_121 = arith.constant dense<0xFF800000> : vector<8xf32>
    %233 = vector.multi_reduction <maximumf>, %232, %cst_121 [1] : vector<8x8xf32> to vector<8xf32>
    %234 = vector.shape_cast %233 : vector<8xf32> to vector<8x1xf32>
    %235 = vector.broadcast %234 : vector<8x1xf32> to vector<8x8xf32>
    %236 = arith.subf %232, %235 : vector<8x8xf32>
    %237 = math.exp %236 : vector<8x8xf32>
    %cst_122 = arith.constant dense<0.000000e+00> : vector<8xf32>
    %238 = vector.multi_reduction <add>, %237, %cst_122 [1] : vector<8x8xf32> to vector<8xf32>
    %239 = vector.shape_cast %238 : vector<8xf32> to vector<8x1xf32>
    %240 = tpu.reciprocal %239 {approx = true} : vector<8x1xf32> -> vector<8x1xf32>
    %241 = vector.broadcast %240 : vector<8x1xf32> to vector<8x8xf32>
    %242 = arith.mulf %237, %241 : vector<8x8xf32>
    %243 = arith.truncf %242 : vector<8x8xf32> to vector<8x8xbf16>
    %cst_123 = arith.constant dense<0.000000e+00> : vector<8x8xf32>
    %244 = tpu.matmul %243, %230, %cst_123 {dimension_numbers = #tpu.dot_dimension_numbers<[1], [0], [0], [1], [0, 0, 1, 1], [], []>} : vector<8x8xbf16>, vector<8x8xbf16>, vector<8x8xf32> -> vector<8x8xf32>
    %245 = arith.truncf %244 : vector<8x8xf32> to vector<8x8xbf16>
    %c16_124 = arith.constant 16 : index
    %c0_125 = arith.constant 0 : index
    %246 = vector.load %arg17[%c16_124, %c0_125] : memref<32x32xbf16, #tpu.memory_space<vmem>>, vector<8x32xbf16>
    %cst_126 = arith.constant dense<0.000000e+00> : vector<8x32xf32>
    %247 = tpu.matmul %245, %246, %cst_126 {dimension_numbers = #tpu.dot_dimension_numbers<[1], [0], [0], [1], [0, 0, 1, 1], [], []>} : vector<8x8xbf16>, vector<8x32xbf16>, vector<8x32xf32> -> vector<8x32xf32>
    %248 = arith.addf %218, %247 : vector<8x32xf32>
    %249 = vector.extract_strided_slice %153 {offsets = [0, 24], sizes = [8, 8], strides = [1, 1]} : vector<8x32xbf16> to vector<8x8xbf16>
    %c0_127 = arith.constant 0 : index
    %c0_128 = arith.constant 0 : index
    %250 = vector.load %arg14[%c0_127, %c0_128] : memref<8x8xbf16, #tpu.memory_space<vmem>>, vector<8x8xbf16>
    %cst_129 = arith.constant dense<0.000000e+00> : vector<8x8xf32>
    %251 = tpu.matmul %249, %250, %cst_129 {dimension_numbers = #tpu.dot_dimension_numbers<[1], [0], [0], [1], [0, 0, 1, 1], [], []>} : vector<8x8xbf16>, vector<8x8xbf16>, vector<8x8xf32> -> vector<8x8xf32>
    %252 = arith.truncf %251 : vector<8x8xf32> to vector<8x8xbf16>
    %253 = vector.extract_strided_slice %156 {offsets = [0, 24], sizes = [8, 8], strides = [1, 1]} : vector<8x32xbf16> to vector<8x8xbf16>
    %c0_130 = arith.constant 0 : index
    %c0_131 = arith.constant 0 : index
    %254 = vector.load %arg15[%c0_130, %c0_131] : memref<8x8xbf16, #tpu.memory_space<vmem>>, vector<8x8xbf16>
    %cst_132 = arith.constant dense<0.000000e+00> : vector<8x8xf32>
    %255 = tpu.matmul %253, %254, %cst_132 {dimension_numbers = #tpu.dot_dimension_numbers<[1], [0], [0], [1], [0, 0, 1, 1], [], []>} : vector<8x8xbf16>, vector<8x8xbf16>, vector<8x8xf32> -> vector<8x8xf32>
    %256 = arith.truncf %255 : vector<8x8xf32> to vector<8x8xbf16>
    %257 = vector.extract_strided_slice %159 {offsets = [0, 24], sizes = [8, 8], strides = [1, 1]} : vector<8x32xbf16> to vector<8x8xbf16>
    %c0_133 = arith.constant 0 : index
    %c0_134 = arith.constant 0 : index
    %258 = vector.load %arg16[%c0_133, %c0_134] : memref<8x8xbf16, #tpu.memory_space<vmem>>, vector<8x8xbf16>
    %cst_135 = arith.constant dense<0.000000e+00> : vector<8x8xf32>
    %259 = tpu.matmul %257, %258, %cst_135 {dimension_numbers = #tpu.dot_dimension_numbers<[1], [0], [0], [1], [0, 0, 1, 1], [], []>} : vector<8x8xbf16>, vector<8x8xbf16>, vector<8x8xf32> -> vector<8x8xf32>
    %260 = arith.truncf %259 : vector<8x8xf32> to vector<8x8xbf16>
    %cst_136 = arith.constant dense<0.000000e+00> : vector<8x8xf32>
    %261 = tpu.matmul %252, %256, %cst_136 {dimension_numbers = #tpu.dot_dimension_numbers<[1], [1], [0], [0], [0, 0, 1, 0], [], []>} : vector<8x8xbf16>, vector<8x8xbf16>, vector<8x8xf32> -> vector<8x8xf32>
    %262 = arith.addf %261, %13 : vector<8x8xf32>
    %cst_137 = arith.constant dense<0xFF800000> : vector<8xf32>
    %263 = vector.multi_reduction <maximumf>, %262, %cst_137 [1] : vector<8x8xf32> to vector<8xf32>
    %264 = vector.shape_cast %263 : vector<8xf32> to vector<8x1xf32>
    %265 = vector.broadcast %264 : vector<8x1xf32> to vector<8x8xf32>
    %266 = arith.subf %262, %265 : vector<8x8xf32>
    %267 = math.exp %266 : vector<8x8xf32>
    %cst_138 = arith.constant dense<0.000000e+00> : vector<8xf32>
    %268 = vector.multi_reduction <add>, %267, %cst_138 [1] : vector<8x8xf32> to vector<8xf32>
    %269 = vector.shape_cast %268 : vector<8xf32> to vector<8x1xf32>
    %270 = tpu.reciprocal %269 {approx = true} : vector<8x1xf32> -> vector<8x1xf32>
    %271 = vector.broadcast %270 : vector<8x1xf32> to vector<8x8xf32>
    %272 = arith.mulf %267, %271 : vector<8x8xf32>
    %273 = arith.truncf %272 : vector<8x8xf32> to vector<8x8xbf16>
    %cst_139 = arith.constant dense<0.000000e+00> : vector<8x8xf32>
    %274 = tpu.matmul %273, %260, %cst_139 {dimension_numbers = #tpu.dot_dimension_numbers<[1], [0], [0], [1], [0, 0, 1, 1], [], []>} : vector<8x8xbf16>, vector<8x8xbf16>, vector<8x8xf32> -> vector<8x8xf32>
    %275 = arith.truncf %274 : vector<8x8xf32> to vector<8x8xbf16>
    %c24_140 = arith.constant 24 : index
    %c0_141 = arith.constant 0 : index
    %276 = vector.load %arg17[%c24_140, %c0_141] : memref<32x32xbf16, #tpu.memory_space<vmem>>, vector<8x32xbf16>
    %cst_142 = arith.constant dense<0.000000e+00> : vector<8x32xf32>
    %277 = tpu.matmul %275, %276, %cst_142 {dimension_numbers = #tpu.dot_dimension_numbers<[1], [0], [0], [1], [0, 0, 1, 1], [], []>} : vector<8x8xbf16>, vector<8x32xbf16>, vector<8x32xf32> -> vector<8x32xf32>
    %278 = arith.addf %248, %277 : vector<8x32xf32>
    %c0_143 = arith.constant 0 : index
    %c0_144 = arith.constant 0 : index
    %279 = vector.load %arg18[%c0_143, %c0_144] : memref<1x32xf32, #tpu.memory_space<vmem>>, vector<1x32xf32>
    %280 = vector.broadcast %279 : vector<1x32xf32> to vector<8x32xf32>
    %281 = arith.addf %278, %280 : vector<8x32xf32>
    %282 = arith.addf %281, %152 : vector<8x32xf32>
    %c0_145 = arith.constant 0 : index
    %c0_146 = arith.constant 0 : index
    %283 = vector.load %arg19[%c0_145, %c0_146] : memref<1x32xf32, #tpu.memory_space<vmem>>, vector<1x32xf32>
    %c0_147 = arith.constant 0 : index
    %c0_148 = arith.constant 0 : index
    %284 = vector.load %arg20[%c0_147, %c0_148] : memref<1x32xf32, #tpu.memory_space<vmem>>, vector<1x32xf32>
    %cst_149 = arith.constant dense<0.000000e+00> : vector<8xf32>
    %285 = vector.multi_reduction <add>, %282, %cst_149 [1] : vector<8x32xf32> to vector<8xf32>
    %286 = vector.shape_cast %285 : vector<8xf32> to vector<8x1xf32>
    %cst_150 = arith.constant 3.200000e+01 : f32
    %287 = vector.broadcast %cst_150 : f32 to vector<8x1xf32>
    %288 = arith.divf %286, %287 : vector<8x1xf32>
    %289 = vector.broadcast %288 : vector<8x1xf32> to vector<8x32xf32>
    %290 = arith.subf %282, %289 : vector<8x32xf32>
    %291 = arith.mulf %290, %290 : vector<8x32xf32>
    %cst_151 = arith.constant dense<0.000000e+00> : vector<8xf32>
    %292 = vector.multi_reduction <add>, %291, %cst_151 [1] : vector<8x32xf32> to vector<8xf32>
    %293 = vector.shape_cast %292 : vector<8xf32> to vector<8x1xf32>
    %cst_152 = arith.constant 3.200000e+01 : f32
    %294 = vector.broadcast %cst_152 : f32 to vector<8x1xf32>
    %295 = arith.divf %293, %294 : vector<8x1xf32>
    %296 = vector.broadcast %288 : vector<8x1xf32> to vector<8x32xf32>
    %297 = arith.subf %282, %296 : vector<8x32xf32>
    %cst_153 = arith.constant 9.99999974E-6 : f32
    %298 = vector.broadcast %cst_153 : f32 to vector<8x1xf32>
    %299 = arith.addf %295, %298 : vector<8x1xf32>
    %300 = math.rsqrt %299 : vector<8x1xf32>
    %301 = vector.broadcast %300 : vector<8x1xf32> to vector<8x32xf32>
    %302 = arith.mulf %297, %301 : vector<8x32xf32>
    %303 = vector.broadcast %283 : vector<1x32xf32> to vector<8x32xf32>
    %304 = arith.mulf %302, %303 : vector<8x32xf32>
    %305 = vector.broadcast %284 : vector<1x32xf32> to vector<8x32xf32>
    %306 = arith.addf %304, %305 : vector<8x32xf32>
    %307 = arith.truncf %306 : vector<8x32xf32> to vector<8x32xbf16>
    %c0_154 = arith.constant 0 : index
    %c0_155 = arith.constant 0 : index
    %308 = vector.load %arg21[%c0_154, %c0_155] : memref<32x128xbf16, #tpu.memory_space<vmem>>, vector<32x128xbf16>
    %cst_156 = arith.constant dense<0.000000e+00> : vector<8x128xf32>
    %309 = tpu.matmul %307, %308, %cst_156 {dimension_numbers = #tpu.dot_dimension_numbers<[1], [0], [0], [1], [0, 0, 1, 1], [], []>} : vector<8x32xbf16>, vector<32x128xbf16>, vector<8x128xf32> -> vector<8x128xf32>
    %c0_157 = arith.constant 0 : index
    %c0_158 = arith.constant 0 : index
    %310 = vector.load %arg22[%c0_157, %c0_158] : memref<1x128xf32, #tpu.memory_space<vmem>>, vector<1x128xf32>
    %311 = vector.broadcast %310 : vector<1x128xf32> to vector<8x128xf32>
    %312 = arith.addf %309, %311 : vector<8x128xf32>
    %cst_159 = arith.constant 0.000000e+00 : f32
    %313 = vector.broadcast %cst_159 : f32 to vector<8x128xf32>
    %314 = arith.maximumf %312, %313 : vector<8x128xf32>
    %315 = arith.truncf %314 : vector<8x128xf32> to vector<8x128xbf16>
    %c0_160 = arith.constant 0 : index
    %c0_161 = arith.constant 0 : index
    %316 = vector.load %arg23[%c0_160, %c0_161] : memref<128x32xbf16, #tpu.memory_space<vmem>>, vector<128x32xbf16>
    %cst_162 = arith.constant dense<0.000000e+00> : vector<8x32xf32>
    %317 = tpu.matmul %315, %316, %cst_162 {dimension_numbers = #tpu.dot_dimension_numbers<[1], [0], [0], [1], [0, 0, 1, 1], [], []>} : vector<8x128xbf16>, vector<128x32xbf16>, vector<8x32xf32> -> vector<8x32xf32>
    %c0_163 = arith.constant 0 : index
    %c0_164 = arith.constant 0 : index
    %318 = vector.load %arg24[%c0_163, %c0_164] : memref<1x32xf32, #tpu.memory_space<vmem>>, vector<1x32xf32>
    %319 = vector.broadcast %318 : vector<1x32xf32> to vector<8x32xf32>
    %320 = arith.addf %317, %319 : vector<8x32xf32>
    %321 = arith.addf %320, %306 : vector<8x32xf32>
    %c0_165 = arith.constant 0 : index
    %c0_166 = arith.constant 0 : index
    %322 = vector.load %arg25[%c0_165, %c0_166] : memref<1x32xf32, #tpu.memory_space<vmem>>, vector<1x32xf32>
    %c0_167 = arith.constant 0 : index
    %c0_168 = arith.constant 0 : index
    %323 = vector.load %arg26[%c0_167, %c0_168] : memref<1x32xf32, #tpu.memory_space<vmem>>, vector<1x32xf32>
    %cst_169 = arith.constant dense<0.000000e+00> : vector<8xf32>
    %324 = vector.multi_reduction <add>, %321, %cst_169 [1] : vector<8x32xf32> to vector<8xf32>
    %325 = vector.shape_cast %324 : vector<8xf32> to vector<8x1xf32>
    %cst_170 = arith.constant 3.200000e+01 : f32
    %326 = vector.broadcast %cst_170 : f32 to vector<8x1xf32>
    %327 = arith.divf %325, %326 : vector<8x1xf32>
    %328 = vector.broadcast %327 : vector<8x1xf32> to vector<8x32xf32>
    %329 = arith.subf %321, %328 : vector<8x32xf32>
    %330 = arith.mulf %329, %329 : vector<8x32xf32>
    %cst_171 = arith.constant dense<0.000000e+00> : vector<8xf32>
    %331 = vector.multi_reduction <add>, %330, %cst_171 [1] : vector<8x32xf32> to vector<8xf32>
    %332 = vector.shape_cast %331 : vector<8xf32> to vector<8x1xf32>
    %cst_172 = arith.constant 3.200000e+01 : f32
    %333 = vector.broadcast %cst_172 : f32 to vector<8x1xf32>
    %334 = arith.divf %332, %333 : vector<8x1xf32>
    %335 = vector.broadcast %327 : vector<8x1xf32> to vector<8x32xf32>
    %336 = arith.subf %321, %335 : vector<8x32xf32>
    %cst_173 = arith.constant 9.99999974E-6 : f32
    %337 = vector.broadcast %cst_173 : f32 to vector<8x1xf32>
    %338 = arith.addf %334, %337 : vector<8x1xf32>
    %339 = math.rsqrt %338 : vector<8x1xf32>
    %340 = vector.broadcast %339 : vector<8x1xf32> to vector<8x32xf32>
    %341 = arith.mulf %336, %340 : vector<8x32xf32>
    %342 = vector.broadcast %322 : vector<1x32xf32> to vector<8x32xf32>
    %343 = arith.mulf %341, %342 : vector<8x32xf32>
    %344 = vector.broadcast %323 : vector<1x32xf32> to vector<8x32xf32>
    %345 = arith.addf %343, %344 : vector<8x32xf32>
    %c0_174 = arith.constant 0 : index
    %c0_175 = arith.constant 0 : index
    %c0_176 = arith.constant 0 : index
    %346 = vector.load %arg27[%c0_174, %c0_175, %c0_176] : memref<1x8x32xf32, #tpu.memory_space<vmem>>, vector<1x8x32xf32>
    %347 = vector.shape_cast %346 : vector<1x8x32xf32> to vector<8x32xf32>
    %348 = vector.shape_cast %345 : vector<8x32xf32> to vector<1x8x32xf32>
    tpu.vector_store %arg27[%c0_174, %c0_175, %c0_176], %348 {strides = array<i32>} : memref<1x8x32xf32, #tpu.memory_space<vmem>>, vector<1x8x32xf32>,
    return
  }
  func.func @transform_0(%arg0: i32, %arg1: i32) -> (i32, i32, i32) {
    %c0_i32 = arith.constant 0 : i32
    %c0_i32_0 = arith.constant 0 : i32
    return %arg0, %arg1, %c0_i32 : i32, i32, i32
  }
  func.func @transform_1(%arg0: i32, %arg1: i32) -> (i32, i32, i32) {
    %c0_i32 = arith.constant 0 : i32
    %c0_i32_0 = arith.constant 0 : i32
    %c0_i32_1 = arith.constant 0 : i32
    return %arg0, %c0_i32, %c0_i32_0 : i32, i32, i32
  }
  func.func @transform_2(%arg0: i32, %arg1: i32) -> (i32, i32, i32) {
    %c0_i32 = arith.constant 0 : i32
    %c0_i32_0 = arith.constant 0 : i32
    %c0_i32_1 = arith.constant 0 : i32
    return %arg0, %c0_i32, %c0_i32_0 : i32, i32, i32
  }
  func.func @transform_3(%arg0: i32, %arg1: i32) -> (i32, i32, i32) {
    %c0_i32 = arith.constant 0 : i32
    %c0_i32_0 = arith.constant 0 : i32
    %c0_i32_1 = arith.constant 0 : i32
    return %arg0, %c0_i32, %c0_i32_0 : i32, i32, i32
  }
  func.func @transform_4(%arg0: i32, %arg1: i32) -> (i32, i32, i32) {
    %c0_i32 = arith.constant 0 : i32
    %c0_i32_0 = arith.constant 0 : i32
    return %arg0, %arg1, %c0_i32 : i32, i32, i32
  }
  func.func @transform_5(%arg0: i32, %arg1: i32) -> (i32, i32, i32) {
    %c0_i32 = arith.constant 0 : i32
    %c0_i32_0 = arith.constant 0 : i32
    return %arg0, %arg1, %c0_i32 : i32, i32, i32
  }
  func.func @transform_6(%arg0: i32, %arg1: i32) -> (i32, i32) {
    %c0_i32 = arith.constant 0 : i32
    %c0_i32_0 = arith.constant 0 : i32
    %c0_i32_1 = arith.constant 0 : i32
    return %c0_i32, %c0_i32_0 : i32, i32
  }
  func.func @transform_7(%arg0: i32, %arg1: i32) -> (i32, i32) {
    %c0_i32 = arith.constant 0 : i32
    %c0_i32_0 = arith.constant 0 : i32
    %c0_i32_1 = arith.constant 0 : i32
    return %c0_i32, %c0_i32_0 : i32, i32
  }
  func.func @transform_8(%arg0: i32, %arg1: i32) -> (i32, i32) {
    %c0_i32 = arith.constant 0 : i32
    %c0_i32_0 = arith.constant 0 : i32
    %c0_i32_1 = arith.constant 0 : i32
    return %c0_i32, %c0_i32_0 : i32, i32
  }
  func.func @transform_9(%arg0: i32, %arg1: i32) -> (i32, i32) {
    %c0_i32 = arith.constant 0 : i32
    %c0_i32_0 = arith.constant 0 : i32
    %c0_i32_1 = arith.constant 0 : i32
    return %c0_i32, %c0_i32_0 : i32, i32
  }
  func.func @transform_10(%arg0: i32, %arg1: i32) -> (i32, i32) {
    %c0_i32 = arith.constant 0 : i32
    %c0_i32_0 = arith.constant 0 : i32
    %c0_i32_1 = arith.constant 0 : i32
    return %c0_i32, %c0_i32_0 : i32, i32
  }
  func.func @transform_11(%arg0: i32, %arg1: i32) -> (i32, i32) {
    %c0_i32 = arith.constant 0 : i32
    %c0_i32_0 = arith.constant 0 : i32
    %c0_i32_1 = arith.constant 0 : i32
    return %c0_i32, %c0_i32_0 : i32, i32
  }
  func.func @transform_12(%arg0: i32, %arg1: i32) -> (i32, i32) {
    %c0_i32 = arith.constant 0 : i32
    %c0_i32_0 = arith.constant 0 : i32
    %c0_i32_1 = arith.constant 0 : i32
    return %c0_i32, %c0_i32_0 : i32, i32
  }
  func.func @transform_13(%arg0: i32, %arg1: i32) -> (i32, i32) {
    %c0_i32 = arith.constant 0 : i32
    %c0_i32_0 = arith.constant 0 : i32
    %c0_i32_1 = arith.constant 0 : i32
    return %c0_i32, %c0_i32_0 : i32, i32
  }
  func.func @transform_14(%arg0: i32, %arg1: i32) -> (i32, i32) {
    %c0_i32 = arith.constant 0 : i32
    %c0_i32_0 = arith.constant 0 : i32
    %c0_i32_1 = arith.constant 0 : i32
    return %c0_i32, %c0_i32_0 : i32, i32
  }
  func.func @transform_15(%arg0: i32, %arg1: i32) -> (i32, i32) {
    %c0_i32 = arith.constant 0 : i32
    %c0_i32_0 = arith.constant 0 : i32
    %c0_i32_1 = arith.constant 0 : i32
    return %c0_i32, %c0_i32_0 : i32, i32
  }
  func.func @transform_16(%arg0: i32, %arg1: i32) -> (i32, i32) {
    %c0_i32 = arith.constant 0 : i32
    %c0_i32_0 = arith.constant 0 : i32
    %c0_i32_1 = arith.constant 0 : i32
    return %c0_i32, %c0_i32_0 : i32, i32
  }
  func.func @transform_17(%arg0: i32, %arg1: i32) -> (i32, i32) {
    %c0_i32 = arith.constant 0 : i32
    %c0_i32_0 = arith.constant 0 : i32
    %c0_i32_1 = arith.constant 0 : i32
    return %c0_i32, %c0_i32_0 : i32, i32
  }
  func.func @transform_18(%arg0: i32, %arg1: i32) -> (i32, i32) {
    %c0_i32 = arith.constant 0 : i32
    %c0_i32_0 = arith.constant 0 : i32
    %c0_i32_1 = arith.constant 0 : i32
    return %c0_i32, %c0_i32_0 : i32, i32
  }
  func.func @transform_19(%arg0: i32, %arg1: i32) -> (i32, i32) {
    %c0_i32 = arith.constant 0 : i32
    %c0_i32_0 = arith.constant 0 : i32
    %c0_i32_1 = arith.constant 0 : i32
    return %c0_i32, %c0_i32_0 : i32, i32
  }
  func.func @transform_20(%arg0: i32, %arg1: i32) -> (i32, i32) {
    %c0_i32 = arith.constant 0 : i32
    %c0_i32_0 = arith.constant 0 : i32
    %c0_i32_1 = arith.constant 0 : i32
    return %c0_i32, %c0_i32_0 : i32, i32
  }
  func.func @transform_21(%arg0: i32, %arg1: i32) -> (i32, i32) {
    %c0_i32 = arith.constant 0 : i32
    %c0_i32_0 = arith.constant 0 : i32
    %c0_i32_1 = arith.constant 0 : i32
    return %c0_i32, %c0_i32_0 : i32, i32
  }
  func.func @transform_22(%arg0: i32, %arg1: i32) -> (i32, i32) {
    %c0_i32 = arith.constant 0 : i32
    %c0_i32_0 = arith.constant 0 : i32
    %c0_i32_1 = arith.constant 0 : i32
    return %c0_i32, %c0_i32_0 : i32, i32
  }
  func.func @transform_23(%arg0: i32, %arg1: i32) -> (i32, i32) {
    %c0_i32 = arith.constant 0 : i32
    %c0_i32_0 = arith.constant 0 : i32
    %c0_i32_1 = arith.constant 0 : i32
    return %c0_i32, %c0_i32_0 : i32, i32
  }
  func.func @transform_24(%arg0: i32, %arg1: i32) -> (i32, i32) {
    %c0_i32 = arith.constant 0 : i32
    %c0_i32_0 = arith.constant 0 : i32
    %c0_i32_1 = arith.constant 0 : i32
    return %c0_i32, %c0_i32_0 : i32, i32
  }
  func.func @transform_25(%arg0: i32, %arg1: i32) -> (i32, i32, i32) {
    %c0_i32 = arith.constant 0 : i32
    %c0_i32_0 = arith.constant 0 : i32
    return %arg0, %arg1, %c0_i32 : i32, i32, i32
  }
}

</mosaic_0001>

<llo_original>
// kernel: decoder_block.1
$region0: #{decoder_block.1}
  #allocation0 [shape = 'u32[]', space=smem, size = 0x4, offset = 0x4, fixed_abs, tag = 'smem constant byte address 0x4 - core index']
  #allocation1 [shape = 'u32[144,128]{1,0:T(1,128)}', space=vmem, size = 0x12000, scoped, tag = 'internal scratch']
  %s0 = inlined_call_operand.vmem [shape: f32[2,8,32], index: 0, kind: input, shape index: {}, may-alias: {0,1}]
  %s1 = inlined_call_operand.vmem [shape: f32[2,8,32], index: 1, kind: input, shape index: {}, may-alias: {0,1}]
  %s2 = inlined_call_operand.vmem [shape: f32[2,8,32], index: 2, kind: input, shape index: {}]
  %s3 = inlined_call_operand.vmem [shape: f32[2,8,32], index: 3, kind: input, shape index: {}]
  %s4 = inlined_call_operand.vmem [shape: bf16[2,8,8], index: 4, kind: input, shape index: {}]
  %s5 = inlined_call_operand.vmem [shape: bf16[2,8,8], index: 5, kind: input, shape index: {}]
  %s6 = inlined_call_operand.vmem [shape: bf16[8,8], index: 6, kind: input, shape index: {}]
  %s7 = inlined_call_operand.vmem [shape: bf16[8,16], index: 7, kind: input, shape index: {}]
  %s8 = inlined_call_operand.vmem [shape: bf16[32,32], index: 8, kind: input, shape index: {}]
  %s9 = inlined_call_operand.vmem [shape: f32[1,32], index: 9, kind: input, shape index: {}]
  %s10 = inlined_call_operand.vmem [shape: f32[1,32], index: 10, kind: input, shape index: {}]
  %s11 = inlined_call_operand.vmem [shape: f32[1,32], index: 11, kind: input, shape index: {}]
  %s12 = inlined_call_operand.vmem [shape: bf16[8,8], index: 12, kind: input, shape index: {}]
  %s13 = inlined_call_operand.vmem [shape: bf16[8,8], index: 13, kind: input, shape index: {}]
  %s14 = inlined_call_operand.vmem [shape: bf16[8,8], index: 14, kind: input, shape index: {}]
  %s15 = inlined_call_operand.vmem [shape: bf16[32,32], index: 15, kind: input, shape index: {}]
  %s16 = inlined_call_operand.vmem [shape: f32[1,32], index: 16, kind: input, shape index: {}]
  %s17 = inlined_call_operand.vmem [shape: f32[1,32], index: 17, kind: input, shape index: {}]
  %s18 = inlined_call_operand.vmem [shape: f32[1,32], index: 18, kind: input, shape index: {}]
  %s19 = inlined_call_operand.vmem [shape: bf16[32,128], index: 19, kind: input, shape index: {}]
  %s20 = inlined_call_operand.vmem [shape: f32[1,128], index: 20, kind: input, shape index: {}]
  %s21 = inlined_call_operand.vmem [shape: bf16[128,32], index: 21, kind: input, shape index: {}]
  %s22 = inlined_call_operand.vmem [shape: f32[1,32], index: 22, kind: input, shape index: {}]
  %s23 = inlined_call_operand.vmem [shape: f32[1,32], index: 23, kind: input, shape index: {}]
  %s24 = inlined_call_operand.vmem [shape: f32[1,32], index: 24, kind: input, shape index: {}]
  %s25 = inlined_call_operand.hbm [shape: f32[2,8,32], index: 25, kind: output, shape index: {}]
  %s26 = sld [smem:[#allocation0]]
  $region133: #{decoder_block.1} parent=0
    _
  %s28 = ssub.s32 1, %s26
  %s29 = scalar_select 0, %s28, %s26
  $region1: #{decoder_block.1} parent=0
    #allocation2 [shape = 'u8[8192]{0}', space=vmem, size = 0x2000, scoped, tag = 'output window, operand 0']
    #allocation3 [shape = 's32[2]{0}', space=sflag, size = 0x8, scoped, tag = 'scoped memory for decoder_block.1']
    %30 = vsyncpa [#allocation3], 0
    %s31 = scalar_lea.sflag [#allocation3], 1
    %32 = vsyncpa %s31, 0
    loop: start=0, step=1, limit=4
    $region2: #{decoder_block.1} parent=1 // loop_pre_header
      _
    $region3: #{decoder_block.1} parent=1 // loop_header
      %s34 = sphi 0, %s38
      %p35 = scmp.ge.s32.totalorder %s34, 4
      %s41 = sphi 0, %s53
      %s42 = sphi 0, %s49
      %s43 = sphi 0, %s41
      %s44 = sphi 0, %s42
      %s45 = sphi 0, %s43
      %s46 = sphi 0, %s44
      %s58 = sphi 0, %s60
      %s61 = sphi 0, %s58
      %s62 = sphi 0, %s61
      %s78 = sphi 0, %s62
      %s84 = sphi 0, %s86
      %s87 = sphi 0, %s84
      %s88 = sphi 0, %s87
      %s104 = sphi 0, %s88
      %s110 = sphi 0, %s112
      %s113 = sphi 0, %s110
      %s114 = sphi 0, %s113
      %s130 = sphi 0, %s114
      %s136 = sphi 0, %s138
      %s139 = sphi 0, %s136
      %s140 = sphi 0, %s139
      %s156 = sphi 0, %s140
      %s164 = sphi 0, %s166
      %s167 = sphi 0, %s164
      %s168 = sphi 0, %s167
      %s184 = sphi 0, %s168
      %s192 = sphi 0, %s194
      %s195 = sphi 0, %s192
      %s196 = sphi 0, %s195
      %s212 = sphi 0, %s196
      %s216 = sphi 0, %s216
      %s218 = sphi 0, %s216
      %s219 = sphi 0, %s218
      %s233 = sphi 0, %s219
      %s237 = sphi 0, %s237
      %s239 = sphi 0, %s237
      %s240 = sphi 0, %s239
      %s254 = sphi 0, %s240
      %s258 = sphi 0, %s258
      %s260 = sphi 0, %s258
      %s261 = sphi 0, %s260
      %s275 = sphi 0, %s261
      %s279 = sphi 0, %s279
      %s281 = sphi 0, %s279
      %s282 = sphi 0, %s281
      %s296 = sphi 0, %s282
      %s300 = sphi 0, %s300
      %s302 = sphi 0, %s300
      %s303 = sphi 0, %s302
      %s317 = sphi 0, %s303
      %s321 = sphi 0, %s321
      %s323 = sphi 0, %s321
      %s324 = sphi 0, %s323
      %s338 = sphi 0, %s324
      %s342 = sphi 0, %s342
      %s344 = sphi 0, %s342
      %s345 = sphi 0, %s344
      %s359 = sphi 0, %s345
      %s363 = sphi 0, %s363
      %s365 = sphi 0, %s363
      %s366 = sphi 0, %s365
      %s380 = sphi 0, %s366
      %s384 = sphi 0, %s384
      %s386 = sphi 0, %s384
      %s387 = sphi 0, %s386
      %s401 = sphi 0, %s387
      %s405 = sphi 0, %s405
      %s407 = sphi 0, %s405
      %s408 = sphi 0, %s407
      %s422 = sphi 0, %s408
      %s426 = sphi 0, %s426
      %s428 = sphi 0, %s426
      %s429 = sphi 0, %s428
      %s443 = sphi 0, %s429
      %s447 = sphi 0, %s447
      %s449 = sphi 0, %s447
      %s450 = sphi 0, %s449
      %s464 = sphi 0, %s450
      %s468 = sphi 0, %s468
      %s470 = sphi 0, %s468
      %s471 = sphi 0, %s470
      %s485 = sphi 0, %s471
      %s489 = sphi 0, %s489
      %s491 = sphi 0, %s489
      %s492 = sphi 0, %s491
      %s506 = sphi 0, %s492
      %s510 = sphi 0, %s510
      %s512 = sphi 0, %s510
      %s513 = sphi 0, %s512
      %s527 = sphi 0, %s513
      %s531 = sphi 0, %s531
      %s533 = sphi 0, %s531
      %s534 = sphi 0, %s533
      %s548 = sphi 0, %s534
      %s552 = sphi 0, %s552
      %s554 = sphi 0, %s552
      %s555 = sphi 0, %s554
      %s569 = sphi 0, %s555
      %s573 = sphi 0, %s573
      %s575 = sphi 0, %s573
      %s576 = sphi 0, %s575
      %s590 = sphi 0, %s576
      %s594 = sphi 0, %s594
      %s596 = sphi 0, %s594
      %s597 = sphi 0, %s596
      %s611 = sphi 0, %s597
      %s619 = sphi 0, %s621
      %s622 = sphi 0, %s619
      %s623 = sphi 0, %s622
      %s639 = sphi 0, %s623
    $region4: #{decoder_block.1} parent=1 // loop_header_branch
      %37 = sbr.rel (%p35) target = $region8
    $region5: #{decoder_block.1} parent=1 // loop_body
      %s39 = ssub.s32 %s34, 1
      %s40 = ssub.s32 %s34, 2
      %s47 = sadd.s32 1, %s42
      %p48 = scmp.ge.s32.totalorder %s47, 1
      %s49 = scalar_select %p48, 0, %s47
      %s50 = sadd.s32 1, %s41
      %s51 = scalar_select %p48, %s50, %s41
      %p52 = scmp.ge.s32.totalorder %s51, 2
      %s53 = scalar_select %p52, 0, %s51
      %s54 = ssub.s32 %s41, %s53
      %s55 = ssub.s32 %s42, %s49
      %s56 = sor.u32 %s54, %s55
      %p57 = scmp.eq.s32.totalorder %s56, 0
      %s59 = sadd.s32 %s58, 1
      %s60 = scalar_select %p57, %s58, %s59
      %p63 = pneg %p57
      %p64 = scmp.eq.s32.totalorder %s34, 1
      %p65 = por %p63, %p64
      %p66 = scmp.ne.s32.totalorder %s58, %s61
      %p67 = scmp.eq.s32.totalorder %s34, 0
      %p68 = por %p66, %p67
      %p69 = scmp.ne.s32.totalorder %s58, %s61
      %p70 = scmp.eq.s32.totalorder %s39, 1
      %p71 = por %p69, %p70
      %p72 = scmp.ne.s32.totalorder %s61, %s62
      %p73 = scmp.eq.s32.totalorder %s39, 0
      %p74 = por %p72, %p73
      %p75 = scmp.ne.s32.totalorder %s61, %s62
      %p76 = scmp.eq.s32.totalorder %s40, 1
      %p77 = por %p75, %p76
      %p79 = scmp.ne.s32.totalorder %s62, %s78
      %p80 = scmp.eq.s32.totalorder %s40, 0
      %p81 = por %p79, %p80
      %s82 = ssub.s32 %s41, %s53
      %p83 = scmp.eq.s32.totalorder %s82, 0
      %s85 = sadd.s32 %s84, 1
      %s86 = scalar_select %p83, %s84, %s85
      %p89 = pneg %p83
      %p90 = scmp.eq.s32.totalorder %s34, 1
      %p91 = por %p89, %p90
      %p92 = scmp.ne.s32.totalorder %s84, %s87
      %p93 = scmp.eq.s32.totalorder %s34, 0
      %p94 = por %p92, %p93
      %p95 = scmp.ne.s32.totalorder %s84, %s87
      %p96 = scmp.eq.s32.totalorder %s39, 1
      %p97 = por %p95, %p96
      %p98 = scmp.ne.s32.totalorder %s87, %s88
      %p99 = scmp.eq.s32.totalorder %s39, 0
      %p100 = por %p98, %p99
      %p101 = scmp.ne.s32.totalorder %s87, %s88
      %p102 = scmp.eq.s32.totalorder %s40, 1
      %p103 = por %p101, %p102
      %p105 = scmp.ne.s32.totalorder %s88, %s104
      %p106 = scmp.eq.s32.totalorder %s40, 0
      %p107 = por %p105, %p106
      %s108 = ssub.s32 %s41, %s53
      %p109 = scmp.eq.s32.totalorder %s108, 0
      %s111 = sadd.s32 %s110, 1
      %s112 = scalar_select %p109, %s110, %s111
      %p115 = pneg %p109
      %p116 = scmp.eq.s32.totalorder %s34, 1
      %p117 = por %p115, %p116
      %p118 = scmp.ne.s32.totalorder %s110, %s113
      %p119 = scmp.eq.s32.totalorder %s34, 0
      %p120 = por %p118, %p119
      %p121 = scmp.ne.s32.totalorder %s110, %s113
      %p122 = scmp.eq.s32.totalorder %s39, 1
      %p123 = por %p121, %p122
      %p124 = scmp.ne.s32.totalorder %s113, %s114
      %p125 = scmp.eq.s32.totalorder %s39, 0
      %p126 = por %p124, %p125
      %p127 = scmp.ne.s32.totalorder %s113, %s114
      %p128 = scmp.eq.s32.totalorder %s40, 1
      %p129 = por %p127, %p128
      %p131 = scmp.ne.s32.totalorder %s114, %s130
      %p132 = scmp.eq.s32.totalorder %s40, 0
      %p133 = por %p131, %p132
      %s134 = ssub.s32 %s41, %s53
      %p135 = scmp.eq.s32.totalorder %s134, 0
      %s137 = sadd.s32 %s136, 1
      %s138 = scalar_select %p135, %s136, %s137
      %p141 = pneg %p135
      %p142 = scmp.eq.s32.totalorder %s34, 1
      %p143 = por %p141, %p142
      %p144 = scmp.ne.s32.totalorder %s136, %s139
      %p145 = scmp.eq.s32.totalorder %s34, 0
      %p146 = por %p144, %p145
      %p147 = scmp.ne.s32.totalorder %s136, %s139
      %p148 = scmp.eq.s32.totalorder %s39, 1
      %p149 = por %p147, %p148
      %p150 = scmp.ne.s32.totalorder %s139, %s140
      %p151 = scmp.eq.s32.totalorder %s39, 0
      %p152 = por %p150, %p151
      %p153 = scmp.ne.s32.totalorder %s139, %s140
      %p154 = scmp.eq.s32.totalorder %s40, 1
      %p155 = por %p153, %p154
      %p157 = scmp.ne.s32.totalorder %s140, %s156
      %p158 = scmp.eq.s32.totalorder %s40, 0
      %p159 = por %p157, %p158
      %s160 = ssub.s32 %s41, %s53
      %s161 = ssub.s32 %s42, %s49
      %s162 = sor.u32 %s160, %s161
      %p163 = scmp.eq.s32.totalorder %s162, 0
      %s165 = sadd.s32 %s164, 1
      %s166 = scalar_select %p163, %s164, %s165
      %p169 = pneg %p163
      %p170 = scmp.eq.s32.totalorder %s34, 1
      %p171 = por %p169, %p170
      %p172 = scmp.ne.s32.totalorder %s164, %s167
      %p173 = scmp.eq.s32.totalorder %s34, 0
      %p174 = por %p172, %p173
      %p175 = scmp.ne.s32.totalorder %s164, %s167
      %p176 = scmp.eq.s32.totalorder %s39, 1
      %p177 = por %p175, %p176
      %p178 = scmp.ne.s32.totalorder %s167, %s168
      %p179 = scmp.eq.s32.totalorder %s39, 0
      %p180 = por %p178, %p179
      %p181 = scmp.ne.s32.totalorder %s167, %s168
      %p182 = scmp.eq.s32.totalorder %s40, 1
      %p183 = por %p181, %p182
      %p185 = scmp.ne.s32.totalorder %s168, %s184
      %p186 = scmp.eq.s32.totalorder %s40, 0
      %p187 = por %p185, %p186
      %s188 = ssub.s32 %s41, %s53
      %s189 = ssub.s32 %s42, %s49
      %s190 = sor.u32 %s188, %s189
      %p191 = scmp.eq.s32.totalorder %s190, 0
      %s193 = sadd.s32 %s192, 1
      %s194 = scalar_select %p191, %s192, %s193
      %p197 = pneg %p191
      %p198 = scmp.eq.s32.totalorder %s34, 1
      %p199 = por %p197, %p198
      %p200 = scmp.ne.s32.totalorder %s192, %s195
      %p201 = scmp.eq.s32.totalorder %s34, 0
      %p202 = por %p200, %p201
      %p203 = scmp.ne.s32.totalorder %s192, %s195
      %p204 = scmp.eq.s32.totalorder %s39, 1
      %p205 = por %p203, %p204
      %p206 = scmp.ne.s32.totalorder %s195, %s196
      %p207 = scmp.eq.s32.totalorder %s39, 0
      %p208 = por %p206, %p207
      %p209 = scmp.ne.s32.totalorder %s195, %s196
      %p210 = scmp.eq.s32.totalorder %s40, 1
      %p211 = por %p209, %p210
      %p213 = scmp.ne.s32.totalorder %s196, %s212
      %p214 = scmp.eq.s32.totalorder %s40, 0
      %p215 = por %p213, %p214
      %s217 = sadd.s32 %s216, 1
      %p220 = scmp.eq.s32.totalorder %s34, 1
      %p221 = scmp.ne.s32.totalorder %s216, %s218
      %p222 = scmp.eq.s32.totalorder %s34, 0
      %p223 = por %p221, %p222
      %p224 = scmp.ne.s32.totalorder %s216, %s218
      %p225 = scmp.eq.s32.totalorder %s39, 1
      %p226 = por %p224, %p225
      %p227 = scmp.ne.s32.totalorder %s218, %s219
      %p228 = scmp.eq.s32.totalorder %s39, 0
      %p229 = por %p227, %p228
      %p230 = scmp.ne.s32.totalorder %s218, %s219
      %p231 = scmp.eq.s32.totalorder %s40, 1
      %p232 = por %p230, %p231
      %p234 = scmp.ne.s32.totalorder %s219, %s233
      %p235 = scmp.eq.s32.totalorder %s40, 0
      %p236 = por %p234, %p235
      %s238 = sadd.s32 %s237, 1
      %p241 = scmp.eq.s32.totalorder %s34, 1
      %p242 = scmp.ne.s32.totalorder %s237, %s239
      %p243 = scmp.eq.s32.totalorder %s34, 0
      %p244 = por %p242, %p243
      %p245 = scmp.ne.s32.totalorder %s237, %s239
      %p246 = scmp.eq.s32.totalorder %s39, 1
      %p247 = por %p245, %p246
      %p248 = scmp.ne.s32.totalorder %s239, %s240
      %p249 = scmp.eq.s32.totalorder %s39, 0
      %p250 = por %p248, %p249
      %p251 = scmp.ne.s32.totalorder %s239, %s240
      %p252 = scmp.eq.s32.totalorder %s40, 1
      %p253 = por %p251, %p252
      %p255 = scmp.ne.s32.totalorder %s240, %s254
      %p256 = scmp.eq.s32.totalorder %s40, 0
      %p257 = por %p255, %p256
      %s259 = sadd.s32 %s258, 1
      %p262 = scmp.eq.s32.totalorder %s34, 1
      %p263 = scmp.ne.s32.totalorder %s258, %s260
      %p264 = scmp.eq.s32.totalorder %s34, 0
      %p265 = por %p263, %p264
      %p266 = scmp.ne.s32.totalorder %s258, %s260
      %p267 = scmp.eq.s32.totalorder %s39, 1
      %p268 = por %p266, %p267
      %p269 = scmp.ne.s32.totalorder %s260, %s261
      %p270 = scmp.eq.s32.totalorder %s39, 0
      %p271 = por %p269, %p270
      %p272 = scmp.ne.s32.totalorder %s260, %s261
      %p273 = scmp.eq.s32.totalorder %s40, 1
      %p274 = por %p272, %p273
      %p276 = scmp.ne.s32.totalorder %s261, %s275
      %p277 = scmp.eq.s32.totalorder %s40, 0
      %p278 = por %p276, %p277
      %s280 = sadd.s32 %s279, 1
      %p283 = scmp.eq.s32.totalorder %s34, 1
      %p284 = scmp.ne.s32.totalorder %s279, %s281
      %p285 = scmp.eq.s32.totalorder %s34, 0
      %p286 = por %p284, %p285
      %p287 = scmp.ne.s32.totalorder %s279, %s281
      %p288 = scmp.eq.s32.totalorder %s39, 1
      %p289 = por %p287, %p288
      %p290 = scmp.ne.s32.totalorder %s281, %s282
      %p291 = scmp.eq.s32.totalorder %s39, 0
      %p292 = por %p290, %p291
      %p293 = scmp.ne.s32.totalorder %s281, %s282
      %p294 = scmp.eq.s32.totalorder %s40, 1
      %p295 = por %p293, %p294
      %p297 = scmp.ne.s32.totalorder %s282, %s296
      %p298 = scmp.eq.s32.totalorder %s40, 0
      %p299 = por %p297, %p298
      %s301 = sadd.s32 %s300, 1
      %p304 = scmp.eq.s32.totalorder %s34, 1
      %p305 = scmp.ne.s32.totalorder %s300, %s302
      %p306 = scmp.eq.s32.totalorder %s34, 0
      %p307 = por %p305, %p306
      %p308 = scmp.ne.s32.totalorder %s300, %s302
      %p309 = scmp.eq.s32.totalorder %s39, 1
      %p310 = por %p308, %p309
      %p311 = scmp.ne.s32.totalorder %s302, %s303
      %p312 = scmp.eq.s32.totalorder %s39, 0
      %p313 = por %p311, %p312
      %p314 = scmp.ne.s32.totalorder %s302, %s303
      %p315 = scmp.eq.s32.totalorder %s40, 1
      %p316 = por %p314, %p315
      %p318 = scmp.ne.s32.totalorder %s303, %s317
      %p319 = scmp.eq.s32.totalorder %s40, 0
      %p320 = por %p318, %p319
      %s322 = sadd.s32 %s321, 1
      %p325 = scmp.eq.s32.totalorder %s34, 1
      %p326 = scmp.ne.s32.totalorder %s321, %s323
      %p327 = scmp.eq.s32.totalorder %s34, 0
      %p328 = por %p326, %p327
      %p329 = scmp.ne.s32.totalorder %s321, %s323
      %p330 = scmp.eq.s32.totalorder %s39, 1
      %p331 = por %p329, %p330
      %p332 = scmp.ne.s32.totalorder %s323, %s324
      %p333 = scmp.eq.s32.totalorder %s39, 0
      %p334 = por %p332, %p333
      %p335 = scmp.ne.s32.totalorder %s323, %s324
      %p336 = scmp.eq.s32.totalorder %s40, 1
      %p337 = por %p335, %p336
      %p339 = scmp.ne.s32.totalorder %s324, %s338
      %p340 = scmp.eq.s32.totalorder %s40, 0
      %p341 = por %p339, %p340
      %s343 = sadd.s32 %s342, 1
      %p346 = scmp.eq.s32.totalorder %s34, 1
      %p347 = scmp.ne.s32.totalorder %s342, %s344
      %p348 = scmp.eq.s32.totalorder %s34, 0
      %p349 = por %p347, %p348
      %p350 = scmp.ne.s32.totalorder %s342, %s344
      %p351 = scmp.eq.s32.totalorder %s39, 1
      %p352 = por %p350, %p351
      %p353 = scmp.ne.s32.totalorder %s344, %s345
      %p354 = scmp.eq.s32.totalorder %s39, 0
      %p355 = por %p353, %p354
      %p356 = scmp.ne.s32.totalorder %s344, %s345
      %p357 = scmp.eq.s32.totalorder %s40, 1
      %p358 = por %p356, %p357
      %p360 = scmp.ne.s32.totalorder %s345, %s359
      %p361 = scmp.eq.s32.totalorder %s40, 0
      %p362 = por %p360, %p361
      %s364 = sadd.s32 %s363, 1
      %p367 = scmp.eq.s32.totalorder %s34, 1
      %p368 = scmp.ne.s32.totalorder %s363, %s365
      %p369 = scmp.eq.s32.totalorder %s34, 0
      %p370 = por %p368, %p369
      %p371 = scmp.ne.s32.totalorder %s363, %s365
      %p372 = scmp.eq.s32.totalorder %s39, 1
      %p373 = por %p371, %p372
      %p374 = scmp.ne.s32.totalorder %s365, %s366
      %p375 = scmp.eq.s32.totalorder %s39, 0
      %p376 = por %p374, %p375
      %p377 = scmp.ne.s32.totalorder %s365, %s366
      %p378 = scmp.eq.s32.totalorder %s40, 1
      %p379 = por %p377, %p378
      %p381 = scmp.ne.s32.totalorder %s366, %s380
      %p382 = scmp.eq.s32.totalorder %s40, 0
      %p383 = por %p381, %p382
      %s385 = sadd.s32 %s384, 1
      %p388 = scmp.eq.s32.totalorder %s34, 1
      %p389 = scmp.ne.s32.totalorder %s384, %s386
      %p390 = scmp.eq.s32.totalorder %s34, 0
      %p391 = por %p389, %p390
      %p392 = scmp.ne.s32.totalorder %s384, %s386
      %p393 = scmp.eq.s32.totalorder %s39, 1
      %p394 = por %p392, %p393
      %p395 = scmp.ne.s32.totalorder %s386, %s387
      %p396 = scmp.eq.s32.totalorder %s39, 0
      %p397 = por %p395, %p396
      %p398 = scmp.ne.s32.totalorder %s386, %s387
      %p399 = scmp.eq.s32.totalorder %s40, 1
      %p400 = por %p398, %p399
      %p402 = scmp.ne.s32.totalorder %s387, %s401
      %p403 = scmp.eq.s32.totalorder %s40, 0
      %p404 = por %p402, %p403
      %s406 = sadd.s32 %s405, 1
      %p409 = scmp.eq.s32.totalorder %s34, 1
      %p410 = scmp.ne.s32.totalorder %s405, %s407
      %p411 = scmp.eq.s32.totalorder %s34, 0
      %p412 = por %p410, %p411
      %p413 = scmp.ne.s32.totalorder %s405, %s407
      %p414 = scmp.eq.s32.totalorder %s39, 1
      %p415 = por %p413, %p414
      %p416 = scmp.ne.s32.totalorder %s407, %s408
      %p417 = scmp.eq.s32.totalorder %s39, 0
      %p418 = por %p416, %p417
      %p419 = scmp.ne.s32.totalorder %s407, %s408
      %p420 = scmp.eq.s32.totalorder %s40, 1
      %p421 = por %p419, %p420
      %p423 = scmp.ne.s32.totalorder %s408, %s422
      %p424 = scmp.eq.s32.totalorder %s40, 0
      %p425 = por %p423, %p424
      %s427 = sadd.s32 %s426, 1
      %p430 = scmp.eq.s32.totalorder %s34, 1
      %p431 = scmp.ne.s32.totalorder %s426, %s428
      %p432 = scmp.eq.s32.totalorder %s34, 0
      %p433 = por %p431, %p432
      %p434 = scmp.ne.s32.totalorder %s426, %s428
      %p435 = scmp.eq.s32.totalorder %s39, 1
      %p436 = por %p434, %p435
      %p437 = scmp.ne.s32.totalorder %s428, %s429
      %p438 = scmp.eq.s32.totalorder %s39, 0
      %p439 = por %p437, %p438
      %p440 = scmp.ne.s32.totalorder %s428, %s429
      %p441 = scmp.eq.s32.totalorder %s40, 1
      %p442 = por %p440, %p441
      %p444 = scmp.ne.s32.totalorder %s429, %s443
      %p445 = scmp.eq.s32.totalorder %s40, 0
      %p446 = por %p444, %p445
      %s448 = sadd.s32 %s447, 1
      %p451 = scmp.eq.s32.totalorder %s34, 1
      %p452 = scmp.ne.s32.totalorder %s447, %s449
      %p453 = scmp.eq.s32.totalorder %s34, 0
      %p454 = por %p452, %p453
      %p455 = scmp.ne.s32.totalorder %s447, %s449
      %p456 = scmp.eq.s32.totalorder %s39, 1
      %p457 = por %p455, %p456
      %p458 = scmp.ne.s32.totalorder %s449, %s450
      %p459 = scmp.eq.s32.totalorder %s39, 0
      %p460 = por %p458, %p459
      %p461 = scmp.ne.s32.totalorder %s449, %s450
      %p462 = scmp.eq.s32.totalorder %s40, 1
      %p463 = por %p461, %p462
      %p465 = scmp.ne.s32.totalorder %s450, %s464
      %p466 = scmp.eq.s32.totalorder %s40, 0
      %p467 = por %p465, %p466
      %s469 = sadd.s32 %s468, 1
      %p472 = scmp.eq.s32.totalorder %s34, 1
      %p473 = scmp.ne.s32.totalorder %s468, %s470
      %p474 = scmp.eq.s32.totalorder %s34, 0
      %p475 = por %p473, %p474
      %p476 = scmp.ne.s32.totalorder %s468, %s470
      %p477 = scmp.eq.s32.totalorder %s39, 1
      %p478 = por %p476, %p477
      %p479 = scmp.ne.s32.totalorder %s470, %s471
      %p480 = scmp.eq.s32.totalorder %s39, 0
      %p481 = por %p479, %p480
      %p482 = scmp.ne.s32.totalorder %s470, %s471
      %p483 = scmp.eq.s32.totalorder %s40, 1
      %p484 = por %p482, %p483
      %p486 = scmp.ne.s32.totalorder %s471, %s485
      %p487 = scmp.eq.s32.totalorder %s40, 0
      %p488 = por %p486, %p487
      %s490 = sadd.s32 %s489, 1
      %p493 = scmp.eq.s32.totalorder %s34, 1
      %p494 = scmp.ne.s32.totalorder %s489, %s491
      %p495 = scmp.eq.s32.totalorder %s34, 0
      %p496 = por %p494, %p495
      %p497 = scmp.ne.s32.totalorder %s489, %s491
      %p498 = scmp.eq.s32.totalorder %s39, 1
      %p499 = por %p497, %p498
      %p500 = scmp.ne.s32.totalorder %s491, %s492
      %p501 = scmp.eq.s32.totalorder %s39, 0
      %p502 = por %p500, %p501
      %p503 = scmp.ne.s32.totalorder %s491, %s492
      %p504 = scmp.eq.s32.totalorder %s40, 1
      %p505 = por %p503, %p504
      %p507 = scmp.ne.s32.totalorder %s492, %s506
      %p508 = scmp.eq.s32.totalorder %s40, 0
      %p509 = por %p507, %p508
      %s511 = sadd.s32 %s510, 1
      %p514 = scmp.eq.s32.totalorder %s34, 1
      %p515 = scmp.ne.s32.totalorder %s510, %s512
      %p516 = scmp.eq.s32.totalorder %s34, 0
      %p517 = por %p515, %p516
      %p518 = scmp.ne.s32.totalorder %s510, %s512
      %p519 = scmp.eq.s32.totalorder %s39, 1
      %p520 = por %p518, %p519
      %p521 = scmp.ne.s32.totalorder %s512, %s513
      %p522 = scmp.eq.s32.totalorder %s39, 0
      %p523 = por %p521, %p522
      %p524 = scmp.ne.s32.totalorder %s512, %s513
      %p525 = scmp.eq.s32.totalorder %s40, 1
      %p526 = por %p524, %p525
      %p528 = scmp.ne.s32.totalorder %s513, %s527
      %p529 = scmp.eq.s32.totalorder %s40, 0
      %p530 = por %p528, %p529
      %s532 = sadd.s32 %s531, 1
      %p535 = scmp.eq.s32.totalorder %s34, 1
      %p536 = scmp.ne.s32.totalorder %s531, %s533
      %p537 = scmp.eq.s32.totalorder %s34, 0
      %p538 = por %p536, %p537
      %p539 = scmp.ne.s32.totalorder %s531, %s533
      %p540 = scmp.eq.s32.totalorder %s39, 1
      %p541 = por %p539, %p540
      %p542 = scmp.ne.s32.totalorder %s533, %s534
      %p543 = scmp.eq.s32.totalorder %s39, 0
      %p544 = por %p542, %p543
      %p545 = scmp.ne.s32.totalorder %s533, %s534
      %p546 = scmp.eq.s32.totalorder %s40, 1
      %p547 = por %p545, %p546
      %p549 = scmp.ne.s32.totalorder %s534, %s548
      %p550 = scmp.eq.s32.totalorder %s40, 0
      %p551 = por %p549, %p550
      %s553 = sadd.s32 %s552, 1
      %p556 = scmp.eq.s32.totalorder %s34, 1
      %p557 = scmp.ne.s32.totalorder %s552, %s554
      %p558 = scmp.eq.s32.totalorder %s34, 0
      %p559 = por %p557, %p558
      %p560 = scmp.ne.s32.totalorder %s552, %s554
      %p561 = scmp.eq.s32.totalorder %s39, 1
      %p562 = por %p560, %p561
      %p563 = scmp.ne.s32.totalorder %s554, %s555
      %p564 = scmp.eq.s32.totalorder %s39, 0
      %p565 = por %p563, %p564
      %p566 = scmp.ne.s32.totalorder %s554, %s555
      %p567 = scmp.eq.s32.totalorder %s40, 1
      %p568 = por %p566, %p567
      %p570 = scmp.ne.s32.totalorder %s555, %s569
      %p571 = scmp.eq.s32.totalorder %s40, 0
      %p572 = por %p570, %p571
      %s574 = sadd.s32 %s573, 1
      %p577 = scmp.eq.s32.totalorder %s34, 1
      %p578 = scmp.ne.s32.totalorder %s573, %s575
      %p579 = scmp.eq.s32.totalorder %s34, 0
      %p580 = por %p578, %p579
      %p581 = scmp.ne.s32.totalorder %s573, %s575
      %p582 = scmp.eq.s32.totalorder %s39, 1
      %p583 = por %p581, %p582
      %p584 = scmp.ne.s32.totalorder %s575, %s576
      %p585 = scmp.eq.s32.totalorder %s39, 0
      %p586 = por %p584, %p585
      %p587 = scmp.ne.s32.totalorder %s575, %s576
      %p588 = scmp.eq.s32.totalorder %s40, 1
      %p589 = por %p587, %p588
      %p591 = scmp.ne.s32.totalorder %s576, %s590
      %p592 = scmp.eq.s32.totalorder %s40, 0
      %p593 = por %p591, %p592
      %s595 = sadd.s32 %s594, 1
      %p598 = scmp.eq.s32.totalorder %s34, 1
      %p599 = scmp.ne.s32.totalorder %s594, %s596
      %p600 = scmp.eq.s32.totalorder %s34, 0
      %p601 = por %p599, %p600
      %p602 = scmp.ne.s32.totalorder %s594, %s596
      %p603 = scmp.eq.s32.totalorder %s39, 1
      %p604 = por %p602, %p603
      %p605 = scmp.ne.s32.totalorder %s596, %s597
      %p606 = scmp.eq.s32.totalorder %s39, 0
      %p607 = por %p605, %p606
      %p608 = scmp.ne.s32.totalorder %s596, %s597
      %p609 = scmp.eq.s32.totalorder %s40, 1
      %p610 = por %p608, %p609
      %p612 = scmp.ne.s32.totalorder %s597, %s611
      %p613 = scmp.eq.s32.totalorder %s40, 0
      %p614 = por %p612, %p613
      %s615 = ssub.s32 %s41, %s53
      %s616 = ssub.s32 %s42, %s49
      %s617 = sor.u32 %s615, %s616
      %p618 = scmp.eq.s32.totalorder %s617, 0
      %s620 = sadd.s32 %s619, 1
      %s621 = scalar_select %p618, %s619, %s620
      %p624 = pneg %p618
      %p625 = scmp.eq.s32.totalorder %s34, 1
      %p626 = por %p624, %p625
      %p627 = scmp.ne.s32.totalorder %s619, %s622
      %p628 = scmp.eq.s32.totalorder %s34, 0
      %p629 = por %p627, %p628
      %p630 = scmp.ne.s32.totalorder %s619, %s622
      %p631 = scmp.eq.s32.totalorder %s39, 1
      %p632 = por %p630, %p631
      %p633 = scmp.ne.s32.totalorder %s622, %s623
      %p634 = scmp.eq.s32.totalorder %s39, 0
      %p635 = por %p633, %p634
      %p636 = scmp.ne.s32.totalorder %s622, %s623
      %p637 = scmp.eq.s32.totalorder %s40, 1
      %p638 = por %p636, %p637
      %p640 = scmp.ne.s32.totalorder %s623, %s639
      %p641 = scmp.eq.s32.totalorder %s40, 0
      %p642 = por %p640, %p641
      %p643 = scmp.le.s32.totalorder 1, %s34
      %p644 = scmp.lt.s32.totalorder %s34, 3
      %p645 = pnand %p643, %p644
      %p646 = pneg %p645
      // Predicated region
      $region9: #{decoder_block.1} parent=5 // pred_check
        _
      $region10: #{decoder_block.1} parent=5 // pred_check_branch
        %648 = sbr.rel (%p645) target = $region12
      $region11: #{decoder_block.1} parent=5 // pred_region
        %s649 = ssub.s32 %s34, 1
        // Predicated region
        $region13: #{decoder_block.1} parent=11 // pred_check
          %p650 = pneg %p229
        $region14: #{decoder_block.1} parent=11 // pred_check_branch
          %652 = sbr.rel (%p650) target = $region16
        $region15: #{decoder_block.1} parent=11 // pred_region
          _
        $region16: #{decoder_block.1} parent=11 // pred_fallthru
          _
        // Predicated region
        $region17: #{decoder_block.1} parent=11 // pred_check
          %p653 = pneg %p250
        $region18: #{decoder_block.1} parent=11 // pred_check_branch
          %655 = sbr.rel (%p653) target = $region20
        $region19: #{decoder_block.1} parent=11 // pred_region
          _
        $region20: #{decoder_block.1} parent=11 // pred_fallthru
          _
        // Predicated region
        $region21: #{decoder_block.1} parent=11 // pred_check
          %p656 = pneg %p271
        $region22: #{decoder_block.1} parent=11 // pred_check_branch
          %658 = sbr.rel (%p656) target = $region24
        $region23: #{decoder_block.1} parent=11 // pred_region
          _
        $region24: #{decoder_block.1} parent=11 // pred_fallthru
          _
        // Predicated region
        $region25: #{decoder_block.1} parent=11 // pred_check
          %p659 = pneg %p292
        $region26: #{decoder_block.1} parent=11 // pred_check_branch
          %661 = sbr.rel (%p659) target = $region28
        $region27: #{decoder_block.1} parent=11 // pred_region
          _
        $region28: #{decoder_block.1} parent=11 // pred_fallthru
          _
        // Predicated region
        $region29: #{decoder_block.1} parent=11 // pred_check
          %p662 = pneg %p313
        $region30: #{decoder_block.1} parent=11 // pred_check_branch
          %664 = sbr.rel (%p662) target = $region32
        $region31: #{decoder_block.1} parent=11 // pred_region
          _
        $region32: #{decoder_block.1} parent=11 // pred_fallthru
          _
        // Predicated region
        $region33: #{decoder_block.1} parent=11 // pred_check
          %p665 = pneg %p334
        $region34: #{decoder_block.1} parent=11 // pred_check_branch
          %667 = sbr.rel (%p665) target = $region36
        $region35: #{decoder_block.1} parent=11 // pred_region
          _
        $region36: #{decoder_block.1} parent=11 // pred_fallthru
          _
        // Predicated region
        $region37: #{decoder_block.1} parent=11 // pred_check
          %p668 = pneg %p355
        $region38: #{decoder_block.1} parent=11 // pred_check_branch
          %670 = sbr.rel (%p668) target = $region40
        $region39: #{decoder_block.1} parent=11 // pred_region
          _
        $region40: #{decoder_block.1} parent=11 // pred_fallthru
          _
        // Predicated region
        $region41: #{decoder_block.1} parent=11 // pred_check
          %p671 = pneg %p376
        $region42: #{decoder_block.1} parent=11 // pred_check_branch
          %673 = sbr.rel (%p671) target = $region44
        $region43: #{decoder_block.1} parent=11 // pred_region
          _
        $region44: #{decoder_block.1} parent=11 // pred_fallthru
          _
        // Predicated region
        $region45: #{decoder_block.1} parent=11 // pred_check
          %p674 = pneg %p397
        $region46: #{decoder_block.1} parent=11 // pred_check_branch
          %676 = sbr.rel (%p674) target = $region48
        $region47: #{decoder_block.1} parent=11 // pred_region
          _
        $region48: #{decoder_block.1} parent=11 // pred_fallthru
          _
        // Predicated region
        $region49: #{decoder_block.1} parent=11 // pred_check
          %p677 = pneg %p418
        $region50: #{decoder_block.1} parent=11 // pred_check_branch
          %679 = sbr.rel (%p677) target = $region52
        $region51: #{decoder_block.1} parent=11 // pred_region
          _
        $region52: #{decoder_block.1} parent=11 // pred_fallthru
          _
        // Predicated region
        $region53: #{decoder_block.1} parent=11 // pred_check
          %p680 = pneg %p439
        $region54: #{decoder_block.1} parent=11 // pred_check_branch
          %682 = sbr.rel (%p680) target = $region56
        $region55: #{decoder_block.1} parent=11 // pred_region
          _
        $region56: #{decoder_block.1} parent=11 // pred_fallthru
          _
        // Predicated region
        $region57: #{decoder_block.1} parent=11 // pred_check
          %p683 = pneg %p460
        $region58: #{decoder_block.1} parent=11 // pred_check_branch
          %685 = sbr.rel (%p683) target = $region60
        $region59: #{decoder_block.1} parent=11 // pred_region
          _
        $region60: #{decoder_block.1} parent=11 // pred_fallthru
          _
        // Predicated region
        $region61: #{decoder_block.1} parent=11 // pred_check
          %p686 = pneg %p481
        $region62: #{decoder_block.1} parent=11 // pred_check_branch
          %688 = sbr.rel (%p686) target = $region64
        $region63: #{decoder_block.1} parent=11 // pred_region
          _
        $region64: #{decoder_block.1} parent=11 // pred_fallthru
          _
        // Predicated region
        $region65: #{decoder_block.1} parent=11 // pred_check
          %p689 = pneg %p502
        $region66: #{decoder_block.1} parent=11 // pred_check_branch
          %691 = sbr.rel (%p689) target = $region68
        $region67: #{decoder_block.1} parent=11 // pred_region
          _
        $region68: #{decoder_block.1} parent=11 // pred_fallthru
          _
        // Predicated region
        $region69: #{decoder_block.1} parent=11 // pred_check
          %p692 = pneg %p523
        $region70: #{decoder_block.1} parent=11 // pred_check_branch
          %694 = sbr.rel (%p692) target = $region72
        $region71: #{decoder_block.1} parent=11 // pred_region
          _
        $region72: #{decoder_block.1} parent=11 // pred_fallthru
          _
        // Predicated region
        $region73: #{decoder_block.1} parent=11 // pred_check
          %p695 = pneg %p544
        $region74: #{decoder_block.1} parent=11 // pred_check_branch
          %697 = sbr.rel (%p695) target = $region76
        $region75: #{decoder_block.1} parent=11 // pred_region
          _
        $region76: #{decoder_block.1} parent=11 // pred_fallthru
          _
        // Predicated region
        $region77: #{decoder_block.1} parent=11 // pred_check
          %p698 = pneg %p565
        $region78: #{decoder_block.1} parent=11 // pred_check_branch
          %700 = sbr.rel (%p698) target = $region80
        $region79: #{decoder_block.1} parent=11 // pred_region
          _
        $region80: #{decoder_block.1} parent=11 // pred_fallthru
          _
        // Predicated region
        $region81: #{decoder_block.1} parent=11 // pred_check
          %p701 = pneg %p586
        $region82: #{decoder_block.1} parent=11 // pred_check_branch
          %703 = sbr.rel (%p701) target = $region84
        $region83: #{decoder_block.1} parent=11 // pred_region
          _
        $region84: #{decoder_block.1} parent=11 // pred_fallthru
          _
        // Predicated region
        $region85: #{decoder_block.1} parent=11 // pred_check
          %p704 = pneg %p607
        $region86: #{decoder_block.1} parent=11 // pred_check_branch
          %706 = sbr.rel (%p704) target = $region88
        $region87: #{decoder_block.1} parent=11 // pred_region
          _
        $region88: #{decoder_block.1} parent=11 // pred_fallthru
          _
      $region12: #{decoder_block.1} parent=5 // pred_fallthru
        _
      %p707 = scmp.lt.s32.totalorder %s34, 2
      // Predicated region
      $region89: #{decoder_block.1} parent=5 // pred_check
        %p708 = pneg %p707
      $region90: #{decoder_block.1} parent=5 // pred_check_branch
        %710 = sbr.rel (%p708) target = $region92
      $region91: #{decoder_block.1} parent=5 // pred_region
        // Predicated region
        $region93: #{decoder_block.1} parent=91 // pred_check
          %p711 = pneg %p68
        $region94: #{decoder_block.1} parent=91 // pred_check_branch
          %713 = sbr.rel (%p711) target = $region96
        $region95: #{decoder_block.1} parent=91 // pred_region
          %p714 = scmp.lt.s32.totalorder %s41, 1
          %s715 = scalar_select %p714, %s41, 1
          %p716 = scmp.lt.s32.totalorder %s42, 0
          %s717 = scalar_select %p716, %s42, 0
          %s718 = sadd.s32 %s717, %s715
          %s719 = smul.addr %s718, 8
          %s720 = scalar_lea.vmem %s0, %s719
        $region96: #{decoder_block.1} parent=91 // pred_fallthru
          _
        // Predicated region
        $region97: #{decoder_block.1} parent=91 // pred_check
          %p721 = pneg %p94
        $region98: #{decoder_block.1} parent=91 // pred_check_branch
          %723 = sbr.rel (%p721) target = $region100
        $region99: #{decoder_block.1} parent=91 // pred_region
          %p724 = scmp.lt.s32.totalorder %s41, 1
          %s725 = scalar_select %p724, %s41, 1
          %s726 = smul.addr %s725, 8
          %s727 = scalar_lea.vmem %s1, %s726
        $region100: #{decoder_block.1} parent=91 // pred_fallthru
          _
        // Predicated region
        $region101: #{decoder_block.1} parent=91 // pred_check
          %p728 = pneg %p120
        $region102: #{decoder_block.1} parent=91 // pred_check_branch
          %730 = sbr.rel (%p728) target = $region104
        $region103: #{decoder_block.1} parent=91 // pred_region
          %p731 = scmp.lt.s32.totalorder %s41, 1
          %s732 = scalar_select %p731, %s41, 1
          %s733 = smul.addr %s732, 8
          %s734 = scalar_lea.vmem %s2, %s733
        $region104: #{decoder_block.1} parent=91 // pred_fallthru
          _
        // Predicated region
        $region105: #{decoder_block.1} parent=91 // pred_check
          %p735 = pneg %p146
        $region106: #{decoder_block.1} parent=91 // pred_check_branch
          %737 = sbr.rel (%p735) target = $region108
        $region107: #{decoder_block.1} parent=91 // pred_region
          %p738 = scmp.lt.s32.totalorder %s41, 1
          %s739 = scalar_select %p738, %s41, 1
          %s740 = smul.addr %s739, 8
          %s741 = scalar_lea.vmem %s3, %s740
        $region108: #{decoder_block.1} parent=91 // pred_fallthru
          _
        // Predicated region
        $region109: #{decoder_block.1} parent=91 // pred_check
          %p742 = pneg %p174
        $region110: #{decoder_block.1} parent=91 // pred_check_branch
          %744 = sbr.rel (%p742) target = $region112
        $region111: #{decoder_block.1} parent=91 // pred_region
          %p745 = scmp.lt.s32.totalorder %s41, 1
          %s746 = scalar_select %p745, %s41, 1
          %p747 = scmp.lt.s32.totalorder %s42, 0
          %s748 = scalar_select %p747, %s42, 0
          %s749 = sadd.s32 %s748, %s746
          %s750 = smul.addr %s749, 4
          %s751 = scalar_lea.vmem %s4, %s750
        $region112: #{decoder_block.1} parent=91 // pred_fallthru
          _
        // Predicated region
        $region113: #{decoder_block.1} parent=91 // pred_check
          %p752 = pneg %p202
        $region114: #{decoder_block.1} parent=91 // pred_check_branch
          %754 = sbr.rel (%p752) target = $region116
        $region115: #{decoder_block.1} parent=91 // pred_region
          %p755 = scmp.lt.s32.totalorder %s41, 1
          %s756 = scalar_select %p755, %s41, 1
          %p757 = scmp.lt.s32.totalorder %s42, 0
          %s758 = scalar_select %p757, %s42, 0
          %s759 = sadd.s32 %s758, %s756
          %s760 = smul.addr %s759, 4
          %s761 = scalar_lea.vmem %s5, %s760
        $region116: #{decoder_block.1} parent=91 // pred_fallthru
          _
      $region92: #{decoder_block.1} parent=5 // pred_fallthru
        _
      %p762 = scmp.le.s32.totalorder 1, %s34
      %p763 = scmp.lt.s32.totalorder %s34, 3
      %p764 = pnand %p762, %p763
      %p765 = pneg %p764
      // Predicated region
      $region117: #{decoder_block.1} parent=5 // pred_check
        _
      $region118: #{decoder_block.1} parent=5 // pred_check_branch
        %767 = sbr.rel (%p764) target = $region120
      $region119: #{decoder_block.1} parent=5 // pred_region
        %s768 = ssub.s32 %s34, 1
        %p769 = scmp.lt.s32.totalorder %s43, 1
        %s770 = scalar_select %p769, %s43, 1
        %p771 = scmp.lt.s32.totalorder %s44, 0
        %s772 = scalar_select %p771, %s44, 0
        %s773 = sadd.s32 %s772, %s770
        %s774 = smul.addr %s773, 8
        %s775 = scalar_lea.vmem %s0, %s774
        %p776 = pneg %p74
        %p777 = pneg %p71
        %p778 = scmp.lt.s32.totalorder %s43, 1
        %s779 = scalar_select %p778, %s43, 1
        %s780 = smul.addr %s779, 8
        %s781 = scalar_lea.vmem %s1, %s780
        %p782 = pneg %p100
        %p783 = pneg %p97
        %p784 = scmp.lt.s32.totalorder %s43, 1
        %s785 = scalar_select %p784, %s43, 1
        %s786 = smul.addr %s785, 8
        %s787 = scalar_lea.vmem %s2, %s786
        %p788 = pneg %p126
        %p789 = pneg %p123
        %p790 = scmp.lt.s32.totalorder %s43, 1
        %s791 = scalar_select %p790, %s43, 1
        %s792 = smul.addr %s791, 8
        %s793 = scalar_lea.vmem %s3, %s792
        %p794 = pneg %p152
        %p795 = pneg %p149
        %p796 = scmp.lt.s32.totalorder %s43, 1
        %s797 = scalar_select %p796, %s43, 1
        %p798 = scmp.lt.s32.totalorder %s44, 0
        %s799 = scalar_select %p798, %s44, 0
        %s800 = sadd.s32 %s799, %s797
        %s801 = smul.addr %s800, 4
        %s802 = scalar_lea.vmem %s4, %s801
        %p803 = pneg %p180
        %p804 = pneg %p177
        %p805 = scmp.lt.s32.totalorder %s43, 1
        %s806 = scalar_select %p805, %s43, 1
        %p807 = scmp.lt.s32.totalorder %s44, 0
        %s808 = scalar_select %p807, %s44, 0
        %s809 = sadd.s32 %s808, %s806
        %s810 = smul.addr %s809, 4
        %s811 = scalar_lea.vmem %s5, %s810
        %p812 = pneg %p208
        %p813 = pneg %p205
        %p814 = pneg %p229
        %p815 = pneg %p226
        %p816 = pneg %p250
        %p817 = pneg %p247
        %p818 = pneg %p271
        %p819 = pneg %p268
        %p820 = pneg %p292
        %p821 = pneg %p289
        %p822 = pneg %p313
        %p823 = pneg %p310
        %p824 = pneg %p334
        %p825 = pneg %p331
        %p826 = pneg %p355
        %p827 = pneg %p352
        %p828 = pneg %p376
        %p829 = pneg %p373
        %p830 = pneg %p397
        %p831 = pneg %p394
        %p832 = pneg %p418
        %p833 = pneg %p415
        %p834 = pneg %p439
        %p835 = pneg %p436
        %p836 = pneg %p460
        %p837 = pneg %p457
        %p838 = pneg %p481
        %p839 = pneg %p478
        %p840 = pneg %p502
        %p841 = pneg %p499
        %p842 = pneg %p523
        %p843 = pneg %p520
        %p844 = pneg %p544
        %p845 = pneg %p541
        %p846 = pneg %p565
        %p847 = pneg %p562
        %p848 = pneg %p586
        %p849 = pneg %p583
        %p850 = pneg %p607
        %p851 = pneg %p604
        %p852 = pneg %p635
        %p853 = pneg %p632
        %s854 = sand.u32 %s622, 1
        %s855 = scalar_lea.sflag [#allocation3], %s854
        %s856 = sand.u32 %s622, 1
        %s857 = smul.addr %s856, 8
        %s858 = scalar_lea.vmem [#allocation2], %s857
        %p859 = scmp.lt.s32.totalorder %s43, 1
        %s860 = scalar_select %p859, %s43, 1
        %p861 = scmp.lt.s32.totalorder %s44, 0
        %s862 = scalar_select %p861, %s44, 0
        %s863 = sadd.s32 %s862, %s860
        %s864 = smul.addr %s863, 8
        %s865 = scalar_lea.vmem %s0, %s864
        %p866 = scmp.lt.s32.totalorder %s43, 1
        %s867 = scalar_select %p866, %s43, 1
        %s868 = smul.addr %s867, 8
        %s869 = scalar_lea.vmem %s1, %s868
        %p870 = scmp.lt.s32.totalorder %s43, 1
        %s871 = scalar_select %p870, %s43, 1
        %s872 = smul.addr %s871, 8
        %s873 = scalar_lea.vmem %s2, %s872
        %p874 = scmp.lt.s32.totalorder %s43, 1
        %s875 = scalar_select %p874, %s43, 1
        %s876 = smul.addr %s875, 8
        %s877 = scalar_lea.vmem %s3, %s876
        %p878 = scmp.lt.s32.totalorder %s43, 1
        %s879 = scalar_select %p878, %s43, 1
        %p880 = scmp.lt.s32.totalorder %s44, 0
        %s881 = scalar_select %p880, %s44, 0
        %s882 = sadd.s32 %s881, %s879
        %s883 = smul.addr %s882, 4
        %s884 = scalar_lea.vmem %s4, %s883
        %p885 = scmp.lt.s32.totalorder %s43, 1
        %s886 = scalar_select %p885, %s43, 1
        %p887 = scmp.lt.s32.totalorder %s44, 0
        %s888 = scalar_select %p887, %s44, 0
        %s889 = sadd.s32 %s888, %s886
        %s890 = smul.addr %s889, 4
        %s891 = scalar_lea.vmem %s5, %s890
        %v893 = vld [vmem:[%s865] sm:$0xff]
        %v894 = vpack.c.bf16 %v893, %v893
        %v895 = vld [vmem:[%s869] sm:$0xff]
        %v896 = vpack.c.bf16 %v895, %v895
        %v897 = vld [vmem:[%s884] sm:$0xf]
        %v898 = vunpack.c.l.bf16 %v897
        %v899 = vld [vmem:[%s891] sm:$0xf]
        %v900 = vunpack.c.l.bf16 %v899
        %v901 = vld [vmem:[%s6] sm:$0xf]
        %vm902 = vcmask 64512
        %v904 = vsel %vm902, %v894, 0
        %vm906 = vcmask 1043456
        %v908 = vsel %vm906, %v901, 0
        %910 = vmatprep.subr.bf16.mxu0 0
        %911 = vmatpush1.bf16.msra.mxu0 %v908
        %912 = vmatprep.subr.bf16.mxu0 0
        %913 = vmatpush1.bf16.msra.mxu0 0
        %914 = vmatprep.subr.bf16.mxu0 0
        %915 = vmatpush1.bf16.msra.mxu0 0
        %916 = vmatprep.subr.bf16.mxu0 0
        %917 = vmatpush1.bf16.msra.mxu0 0
        %918 = vmatprep.subr.bf16.mxu0 0
        %919 = vmatpush1.bf16.msra.mxu0 0
        %920 = vmatprep.subr.bf16.mxu0 0
        %921 = vmatpush1.bf16.msra.mxu0 0
        %922 = vmatprep.subr.bf16.mxu0 0
        %923 = vmatpush1.bf16.msra.mxu0 0
        %924 = vmatprep.subr.bf16.mxu0 0
        %925 = vmatpush1.bf16.msra.mxu0 0
        %926 = vmatprep.subr.bf16.mxu0 0
        %927 = vmatpush1.bf16.msra.mxu0 0
        %928 = vmatprep.subr.bf16.mxu0 0
        %929 = vmatpush1.bf16.msra.mxu0 0
        %930 = vmatprep.subr.bf16.mxu0 0
        %931 = vmatpush1.bf16.msra.mxu0 0
        %932 = vmatprep.subr.bf16.mxu0 0
        %933 = vmatpush1.bf16.msra.mxu0 0
        %934 = vmatprep.subr.bf16.mxu0 0
        %935 = vmatpush1.bf16.msra.mxu0 0
        %936 = vmatprep.subr.bf16.mxu0 0
        %937 = vmatpush1.bf16.msra.mxu0 0
        %938 = vmatprep.subr.bf16.mxu0 0
        %939 = vmatpush1.bf16.msra.mxu0 0
        %940 = vmatprep.subr.bf16.mxu0 0
        %941 = vmatpush1.bf16.msra.mxu0 0
        %942 = vmatprep.mubr.bf16.mxu0 0
        %943 = vmatmul.mubr.bf16.gmra.mrb[0].mxu0 %v904
        %v944 = vpop.f32.mrb[0].mxu0
        %v945 = vadd.f32 0.0, %v944
        %v946 = vpop.f32.mrb[0].mxu0
        %v947 = vpop.f32.mrb[0].mxu0
        %v948 = vpop.f32.mrb[0].mxu0
        %949 = vdwg.mxu0
        %v950 = vpack.c.bf16 %v945, %v945
        %v951 = vld [vmem:[%s7] sm:$0xf]
        %v953 = vsel %vm902, %v896, 0
        %v956 = vsel %vm906, %v951, 0
        %958 = vmatprep.subr.bf16.mxu0 0
        %959 = vmatpush1.bf16.msra.mxu0 %v956
        %960 = vmatprep.subr.bf16.mxu0 0
        %961 = vmatpush1.bf16.msra.mxu0 0
        %962 = vmatprep.subr.bf16.mxu0 0
        %963 = vmatpush1.bf16.msra.mxu0 0
        %964 = vmatprep.subr.bf16.mxu0 0
        %965 = vmatpush1.bf16.msra.mxu0 0
        %966 = vmatprep.subr.bf16.mxu0 0
        %967 = vmatpush1.bf16.msra.mxu0 0
        %968 = vmatprep.subr.bf16.mxu0 0
        %969 = vmatpush1.bf16.msra.mxu0 0
        %970 = vmatprep.subr.bf16.mxu0 0
        %971 = vmatpush1.bf16.msra.mxu0 0
        %972 = vmatprep.subr.bf16.mxu0 0
        %973 = vmatpush1.bf16.msra.mxu0 0
        %974 = vmatprep.subr.bf16.mxu0 0
        %975 = vmatpush1.bf16.msra.mxu0 0
        %976 = vmatprep.subr.bf16.mxu0 0
        %977 = vmatpush1.bf16.msra.mxu0 0
        %978 = vmatprep.subr.bf16.mxu0 0
        %979 = vmatpush1.bf16.msra.mxu0 0
        %980 = vmatprep.subr.bf16.mxu0 0
        %981 = vmatpush1.bf16.msra.mxu0 0
        %982 = vmatprep.subr.bf16.mxu0 0
        %983 = vmatpush1.bf16.msra.mxu0 0
        %984 = vmatprep.subr.bf16.mxu0 0
        %985 = vmatpush1.bf16.msra.mxu0 0
        %986 = vmatprep.subr.bf16.mxu0 0
        %987 = vmatpush1.bf16.msra.mxu0 0
        %988 = vmatprep.subr.bf16.mxu0 0
        %989 = vmatpush1.bf16.msra.mxu0 0
        %990 = vmatprep.mubr.bf16.mxu0 0
        %991 = vmatmul.mubr.bf16.gmra.mrb[0].mxu0 %v953
        %v992 = vpop.f32.mrb[0].mxu0
        %v993 = vadd.f32 0.0, %v992
        %v994 = vpop.f32.mrb[0].mxu0
        %v995 = vpop.f32.mrb[0].mxu0
        %v996 = vpop.f32.mrb[0].mxu0
        %997 = vdwg.mxu0
        %v998 = vpack.c.bf16 %v993, %v993
        %v1000 = vsel %vm902, %v950, 0
        %v1003 = vsel %vm902, %v998, 0
        %1005 = vmatprep.subr.bf16.mxu0 0
        %1006 = vmatpush1.bf16.xpose.msra.mxu0 %v1003
        %1007 = vmatprep.subr.bf16.mxu0 0
        %1008 = vmatpush1.bf16.xpose.msra.mxu0 0
        %1009 = vmatprep.subr.bf16.mxu0 0
        %1010 = vmatpush1.bf16.xpose.msra.mxu0 0
        %1011 = vmatprep.subr.bf16.mxu0 0
        %1012 = vmatpush1.bf16.xpose.msra.mxu0 0
        %1013 = vmatprep.subr.bf16.mxu0 0
        %1014 = vmatpush1.bf16.xpose.msra.mxu0 0
        %1015 = vmatprep.subr.bf16.mxu0 0
        %1016 = vmatpush1.bf16.xpose.msra.mxu0 0
        %1017 = vmatprep.subr.bf16.mxu0 0
        %1018 = vmatpush1.bf16.xpose.msra.mxu0 0
        %1019 = vmatprep.subr.bf16.mxu0 0
        %1020 = vmatpush1.bf16.xpose.msra.mxu0 0
        %1021 = vmatprep.subr.bf16.mxu0 0
        %1022 = vmatpush1.bf16.xpose.msra.mxu0 0
        %1023 = vmatprep.subr.bf16.mxu0 0
        %1024 = vmatpush1.bf16.xpose.msra.mxu0 0
        %1025 = vmatprep.subr.bf16.mxu0 0
        %1026 = vmatpush1.bf16.xpose.msra.mxu0 0
        %1027 = vmatprep.subr.bf16.mxu0 0
        %1028 = vmatpush1.bf16.xpose.msra.mxu0 0
        %1029 = vmatprep.subr.bf16.mxu0 0
        %1030 = vmatpush1.bf16.xpose.msra.mxu0 0
        %1031 = vmatprep.subr.bf16.mxu0 0
        %1032 = vmatpush1.bf16.xpose.msra.mxu0 0
        %1033 = vmatprep.subr.bf16.mxu0 0
        %1034 = vmatpush1.bf16.xpose.msra.mxu0 0
        %1035 = vmatprep.subr.bf16.mxu0 0
        %1036 = vmatpush1.bf16.xpose.msra.mxu0 0
        %1037 = vmatprep.mubr.bf16.mxu0 0
        %1038 = vmatmul.mubr.bf16.gmra.mrb[0].mxu0 %v1000
        %v1039 = vpop.f32.mrb[0].mxu0
        %v1040 = vadd.f32 %v898, %v1039
        %v1041 = vpop.f32.mrb[0].mxu0
        %v1042 = vpop.f32.mrb[0].mxu0
        %v1043 = vpop.f32.mrb[0].mxu0
        %1044 = vdwg.mxu0
        %v1045 = vsel %vm902, %v1040, -inf
        %1046 = vmax.xlane.f32.xlu0 %v1045
        %v1047 = vpop.xlane.xlu0 %1046
        %v1048 = vsub.f32 %v1040, %v1047
        %v1049 = vmul.f32 %v1048, 1.442695
        %v1050 = vpow.pop %v1049
        %v1051 = vsel %vm902, %v1050, 0.0
        %1052 = vadd.xlane.f32.xlu0 %v1051
        %v1053 = vpop.xlane.xlu0 %1052
        %v1054 = vrcp.pop %v1053
        %v1055 = vmul.f32 %v1050, %v1054
        %v1056 = vpack.c.bf16 %v1055, %v1055
        %1058 = vrot.lane.b32.xlu0 %v998, 120
        %v1059 = vpop.permute.xlu0 %1058
        %v1061 = vsel %vm902, %v1056, 0
        %v1064 = vsel %vm906, %v1059, 0
        %1066 = vmatprep.subr.bf16.mxu0 0
        %1067 = vmatpush1.bf16.msra.mxu0 %v1064
        %1068 = vmatprep.subr.bf16.mxu0 0
        %1069 = vmatpush1.bf16.msra.mxu0 0
        %1070 = vmatprep.subr.bf16.mxu0 0
        %1071 = vmatpush1.bf16.msra.mxu0 0
        %1072 = vmatprep.subr.bf16.mxu0 0
        %1073 = vmatpush1.bf16.msra.mxu0 0
        %1074 = vmatprep.subr.bf16.mxu0 0
        %1075 = vmatpush1.bf16.msra.mxu0 0
        %1076 = vmatprep.subr.bf16.mxu0 0
        %1077 = vmatpush1.bf16.msra.mxu0 0
        %1078 = vmatprep.subr.bf16.mxu0 0
        %1079 = vmatpush1.bf16.msra.mxu0 0
        %1080 = vmatprep.subr.bf16.mxu0 0
        %1081 = vmatpush1.bf16.msra.mxu0 0
        %1082 = vmatprep.subr.bf16.mxu0 0
        %1083 = vmatpush1.bf16.msra.mxu0 0
        %1084 = vmatprep.subr.bf16.mxu0 0
        %1085 = vmatpush1.bf16.msra.mxu0 0
        %1086 = vmatprep.subr.bf16.mxu0 0
        %1087 = vmatpush1.bf16.msra.mxu0 0
        %1088 = vmatprep.subr.bf16.mxu0 0
        %1089 = vmatpush1.bf16.msra.mxu0 0
        %1090 = vmatprep.subr.bf16.mxu0 0
        %1091 = vmatpush1.bf16.msra.mxu0 0
        %1092 = vmatprep.subr.bf16.mxu0 0
        %1093 = vmatpush1.bf16.msra.mxu0 0
        %1094 = vmatprep.subr.bf16.mxu0 0
        %1095 = vmatpush1.bf16.msra.mxu0 0
        %1096 = vmatprep.subr.bf16.mxu0 0
        %1097 = vmatpush1.bf16.msra.mxu0 0
        %1098 = vmatprep.mubr.bf16.mxu0 0
        %1099 = vmatmul.mubr.bf16.gmra.mrb[0].mxu0 %v1061
        %v1100 = vpop.f32.mrb[0].mxu0
        %v1101 = vadd.f32 0.0, %v1100
        %v1102 = vpop.f32.mrb[0].mxu0
        %v1103 = vpop.f32.mrb[0].mxu0
        %v1104 = vpop.f32.mrb[0].mxu0
        %1105 = vdwg.mxu0
        %v1106 = vpack.c.bf16 %v1101, %v1101
        %v1107 = vld [vmem:[%s8] sm:$0xf]
        %1109 = vrot.lane.b32.xlu0 %v894, 120
        %v1110 = vpop.permute.xlu0 %1109
        %v1112 = vsel %vm902, %v1110, 0
        %1114 = vmatprep.subr.bf16.mxu0 0
        %1115 = vmatpush1.bf16.msra.mxu0 %v908
        %1116 = vmatprep.subr.bf16.mxu0 0
        %1117 = vmatpush1.bf16.msra.mxu0 0
        %1118 = vmatprep.subr.bf16.mxu0 0
        %1119 = vmatpush1.bf16.msra.mxu0 0
        %1120 = vmatprep.subr.bf16.mxu0 0
        %1121 = vmatpush1.bf16.msra.mxu0 0
        %1122 = vmatprep.subr.bf16.mxu0 0
        %1123 = vmatpush1.bf16.msra.mxu0 0
        %1124 = vmatprep.subr.bf16.mxu0 0
        %1125 = vmatpush1.bf16.msra.mxu0 0
        %1126 = vmatprep.subr.bf16.mxu0 0
        %1127 = vmatpush1.bf16.msra.mxu0 0
        %1128 = vmatprep.subr.bf16.mxu0 0
        %1129 = vmatpush1.bf16.msra.mxu0 0
        %1130 = vmatprep.subr.bf16.mxu0 0
        %1131 = vmatpush1.bf16.msra.mxu0 0
        %1132 = vmatprep.subr.bf16.mxu0 0
        %1133 = vmatpush1.bf16.msra.mxu0 0
        %1134 = vmatprep.subr.bf16.mxu0 0
        %1135 = vmatpush1.bf16.msra.mxu0 0
        %1136 = vmatprep.subr.bf16.mxu0 0
        %1137 = vmatpush1.bf16.msra.mxu0 0
        %1138 = vmatprep.subr.bf16.mxu0 0
        %1139 = vmatpush1.bf16.msra.mxu0 0
        %1140 = vmatprep.subr.bf16.mxu0 0
        %1141 = vmatpush1.bf16.msra.mxu0 0
        %1142 = vmatprep.subr.bf16.mxu0 0
        %1143 = vmatpush1.bf16.msra.mxu0 0
        %1144 = vmatprep.subr.bf16.mxu0 0
        %1145 = vmatpush1.bf16.msra.mxu0 0
        %1146 = vmatprep.mubr.bf16.mxu0 0
        %1147 = vmatmul.mubr.bf16.gmra.mrb[0].mxu0 %v1112
        %v1148 = vpop.f32.mrb[0].mxu0
        %v1149 = vadd.f32 0.0, %v1148
        %v1150 = vpop.f32.mrb[0].mxu0
        %v1151 = vpop.f32.mrb[0].mxu0
        %v1152 = vpop.f32.mrb[0].mxu0
        %1153 = vdwg.mxu0
        %v1154 = vpack.c.bf16 %v1149, %v1149
        %1156 = vrot.lane.b32.xlu0 %v896, 120
        %v1157 = vpop.permute.xlu0 %1156
        %v1159 = vsel %vm902, %v1157, 0
        %1161 = vmatprep.subr.bf16.mxu0 0
        %1162 = vmatpush1.bf16.msra.mxu0 %v956
        %1163 = vmatprep.subr.bf16.mxu0 0
        %1164 = vmatpush1.bf16.msra.mxu0 0
        %1165 = vmatprep.subr.bf16.mxu0 0
        %1166 = vmatpush1.bf16.msra.mxu0 0
        %1167 = vmatprep.subr.bf16.mxu0 0
        %1168 = vmatpush1.bf16.msra.mxu0 0
        %1169 = vmatprep.subr.bf16.mxu0 0
        %1170 = vmatpush1.bf16.msra.mxu0 0
        %1171 = vmatprep.subr.bf16.mxu0 0
        %1172 = vmatpush1.bf16.msra.mxu0 0
        %1173 = vmatprep.subr.bf16.mxu0 0
        %1174 = vmatpush1.bf16.msra.mxu0 0
        %1175 = vmatprep.subr.bf16.mxu0 0
        %1176 = vmatpush1.bf16.msra.mxu0 0
        %1177 = vmatprep.subr.bf16.mxu0 0
        %1178 = vmatpush1.bf16.msra.mxu0 0
        %1179 = vmatprep.subr.bf16.mxu0 0
        %1180 = vmatpush1.bf16.msra.mxu0 0
        %1181 = vmatprep.subr.bf16.mxu0 0
        %1182 = vmatpush1.bf16.msra.mxu0 0
        %1183 = vmatprep.subr.bf16.mxu0 0
        %1184 = vmatpush1.bf16.msra.mxu0 0
        %1185 = vmatprep.subr.bf16.mxu0 0
        %1186 = vmatpush1.bf16.msra.mxu0 0
        %1187 = vmatprep.subr.bf16.mxu0 0
        %1188 = vmatpush1.bf16.msra.mxu0 0
        %1189 = vmatprep.subr.bf16.mxu0 0
        %1190 = vmatpush1.bf16.msra.mxu0 0
        %1191 = vmatprep.subr.bf16.mxu0 0
        %1192 = vmatpush1.bf16.msra.mxu0 0
        %1193 = vmatprep.mubr.bf16.mxu0 0
        %1194 = vmatmul.mubr.bf16.gmra.mrb[0].mxu0 %v1159
        %v1195 = vpop.f32.mrb[0].mxu0
        %v1196 = vadd.f32 0.0, %v1195
        %v1197 = vpop.f32.mrb[0].mxu0
        %v1198 = vpop.f32.mrb[0].mxu0
        %v1199 = vpop.f32.mrb[0].mxu0
        %1200 = vdwg.mxu0
        %v1201 = vpack.c.bf16 %v1196, %v1196
        %v1203 = vsel %vm902, %v1154, 0
        %v1206 = vsel %vm902, %v1201, 0
        %1208 = vmatprep.subr.bf16.mxu0 0
        %1209 = vmatpush1.bf16.xpose.msra.mxu0 %v1206
        %1210 = vmatprep.subr.bf16.mxu0 0
        %1211 = vmatpush1.bf16.xpose.msra.mxu0 0
        %1212 = vmatprep.subr.bf16.mxu0 0
        %1213 = vmatpush1.bf16.xpose.msra.mxu0 0
        %1214 = vmatprep.subr.bf16.mxu0 0
        %1215 = vmatpush1.bf16.xpose.msra.mxu0 0
        %1216 = vmatprep.subr.bf16.mxu0 0
        %1217 = vmatpush1.bf16.xpose.msra.mxu0 0
        %1218 = vmatprep.subr.bf16.mxu0 0
        %1219 = vmatpush1.bf16.xpose.msra.mxu0 0
        %1220 = vmatprep.subr.bf16.mxu0 0
        %1221 = vmatpush1.bf16.xpose.msra.mxu0 0
        %1222 = vmatprep.subr.bf16.mxu0 0
        %1223 = vmatpush1.bf16.xpose.msra.mxu0 0
        %1224 = vmatprep.subr.bf16.mxu0 0
        %1225 = vmatpush1.bf16.xpose.msra.mxu0 0
        %1226 = vmatprep.subr.bf16.mxu0 0
        %1227 = vmatpush1.bf16.xpose.msra.mxu0 0
        %1228 = vmatprep.subr.bf16.mxu0 0
        %1229 = vmatpush1.bf16.xpose.msra.mxu0 0
        %1230 = vmatprep.subr.bf16.mxu0 0
        %1231 = vmatpush1.bf16.xpose.msra.mxu0 0
        %1232 = vmatprep.subr.bf16.mxu0 0
        %1233 = vmatpush1.bf16.xpose.msra.mxu0 0
        %1234 = vmatprep.subr.bf16.mxu0 0
        %1235 = vmatpush1.bf16.xpose.msra.mxu0 0
        %1236 = vmatprep.subr.bf16.mxu0 0
        %1237 = vmatpush1.bf16.xpose.msra.mxu0 0
        %1238 = vmatprep.subr.bf16.mxu0 0
        %1239 = vmatpush1.bf16.xpose.msra.mxu0 0
        %1240 = vmatprep.mubr.bf16.mxu0 0
        %1241 = vmatmul.mubr.bf16.gmra.mrb[0].mxu0 %v1203
        %v1242 = vpop.f32.mrb[0].mxu0
        %v1243 = vadd.f32 %v898, %v1242
        %v1244 = vpop.f32.mrb[0].mxu0
        %v1245 = vpop.f32.mrb[0].mxu0
        %v1246 = vpop.f32.mrb[0].mxu0
        %1247 = vdwg.mxu0
        %v1248 = vsel %vm902, %v1243, -inf
        %1249 = vmax.xlane.f32.xlu0 %v1248
        %v1250 = vpop.xlane.xlu0 %1249
        %v1251 = vsub.f32 %v1243, %v1250
        %v1252 = vmul.f32 %v1251, 1.442695
        %v1253 = vpow.pop %v1252
        %v1254 = vsel %vm902, %v1253, 0.0
        %1255 = vadd.xlane.f32.xlu0 %v1254
        %v1256 = vpop.xlane.xlu0 %1255
        %v1257 = vrcp.pop %v1256
        %v1258 = vmul.f32 %v1253, %v1257
        %v1259 = vpack.c.bf16 %v1258, %v1258
        %1261 = vrot.lane.b32.xlu0 %v1201, 120
        %v1262 = vpop.permute.xlu0 %1261
        %v1264 = vsel %vm902, %v1259, 0
        %v1267 = vsel %vm906, %v1262, 0
        %1269 = vmatprep.subr.bf16.mxu0 0
        %1270 = vmatpush1.bf16.msra.mxu0 %v1267
        %1271 = vmatprep.subr.bf16.mxu0 0
        %1272 = vmatpush1.bf16.msra.mxu0 0
        %1273 = vmatprep.subr.bf16.mxu0 0
        %1274 = vmatpush1.bf16.msra.mxu0 0
        %1275 = vmatprep.subr.bf16.mxu0 0
        %1276 = vmatpush1.bf16.msra.mxu0 0
        %1277 = vmatprep.subr.bf16.mxu0 0
        %1278 = vmatpush1.bf16.msra.mxu0 0
        %1279 = vmatprep.subr.bf16.mxu0 0
        %1280 = vmatpush1.bf16.msra.mxu0 0
        %1281 = vmatprep.subr.bf16.mxu0 0
        %1282 = vmatpush1.bf16.msra.mxu0 0
        %1283 = vmatprep.subr.bf16.mxu0 0
        %1284 = vmatpush1.bf16.msra.mxu0 0
        %1285 = vmatprep.subr.bf16.mxu0 0
        %1286 = vmatpush1.bf16.msra.mxu0 0
        %1287 = vmatprep.subr.bf16.mxu0 0
        %1288 = vmatpush1.bf16.msra.mxu0 0
        %1289 = vmatprep.subr.bf16.mxu0 0
        %1290 = vmatpush1.bf16.msra.mxu0 0
        %1291 = vmatprep.subr.bf16.mxu0 0
        %1292 = vmatpush1.bf16.msra.mxu0 0
        %1293 = vmatprep.subr.bf16.mxu0 0
        %1294 = vmatpush1.bf16.msra.mxu0 0
        %1295 = vmatprep.subr.bf16.mxu0 0
        %1296 = vmatpush1.bf16.msra.mxu0 0
        %1297 = vmatprep.subr.bf16.mxu0 0
        %1298 = vmatpush1.bf16.msra.mxu0 0
        %1299 = vmatprep.subr.bf16.mxu0 0
        %1300 = vmatpush1.bf16.msra.mxu0 0
        %1301 = vmatprep.mubr.bf16.mxu0 0
        %1302 = vmatmul.mubr.bf16.gmra.mrb[0].mxu0 %v1264
        %v1303 = vpop.f32.mrb[0].mxu0
        %v1304 = vadd.f32 0.0, %v1303
        %v1305 = vpop.f32.mrb[0].mxu0
        %v1306 = vpop.f32.mrb[0].mxu0
        %v1307 = vpop.f32.mrb[0].mxu0
        %1308 = vdwg.mxu0
        %v1309 = vpack.c.bf16 %v1304, %v1304
        %v1310 = vld [vmem:[%s8 + $0x4] sm:$0xf]
        %v1312 = vsel %vm902, %v1309, 0
        %v1315 = vsel %vm906, %v1310, 0
        %1317 = vmatprep.subr.bf16.mxu0 0
        %1318 = vmatpush1.bf16.msra.mxu0 %v1315
        %1319 = vmatprep.subr.bf16.mxu0 0
        %1320 = vmatpush1.bf16.msra.mxu0 0
        %1321 = vmatprep.subr.bf16.mxu0 0
        %1322 = vmatpush1.bf16.msra.mxu0 0
        %1323 = vmatprep.subr.bf16.mxu0 0
        %1324 = vmatpush1.bf16.msra.mxu0 0
        %1325 = vmatprep.subr.bf16.mxu0 0
        %1326 = vmatpush1.bf16.msra.mxu0 0
        %1327 = vmatprep.subr.bf16.mxu0 0
        %1328 = vmatpush1.bf16.msra.mxu0 0
        %1329 = vmatprep.subr.bf16.mxu0 0
        %1330 = vmatpush1.bf16.msra.mxu0 0
        %1331 = vmatprep.subr.bf16.mxu0 0
        %1332 = vmatpush1.bf16.msra.mxu0 0
        %1333 = vmatprep.subr.bf16.mxu0 0
        %1334 = vmatpush1.bf16.msra.mxu0 0
        %1335 = vmatprep.subr.bf16.mxu0 0
        %1336 = vmatpush1.bf16.msra.mxu0 0
        %1337 = vmatprep.subr.bf16.mxu0 0
        %1338 = vmatpush1.bf16.msra.mxu0 0
        %1339 = vmatprep.subr.bf16.mxu0 0
        %1340 = vmatpush1.bf16.msra.mxu0 0
        %1341 = vmatprep.subr.bf16.mxu0 0
        %1342 = vmatpush1.bf16.msra.mxu0 0
        %1343 = vmatprep.subr.bf16.mxu0 0
        %1344 = vmatpush1.bf16.msra.mxu0 0
        %1345 = vmatprep.subr.bf16.mxu0 0
        %1346 = vmatpush1.bf16.msra.mxu0 0
        %1347 = vmatprep.subr.bf16.mxu0 0
        %1348 = vmatpush1.bf16.msra.mxu0 0
        %1349 = vmatprep.mubr.bf16.mxu0 0
        %1350 = vmatmul.mubr.bf16.gmra.mrb[0].mxu0 %v1312
        %v1351 = vpop.f32.mrb[0].mxu0
        %v1352 = vadd.f32 0.0, %v1351
        %v1353 = vpop.f32.mrb[0].mxu0
        %v1354 = vpop.f32.mrb[0].mxu0
        %v1355 = vpop.f32.mrb[0].mxu0
        %1356 = vdwg.mxu0
        %v1358 = vsel %vm902, %v1106, 0
        %v1361 = vsel %vm906, %v1107, 0
        %1363 = vmatprep.subr.bf16.mxu0 0
        %1364 = vmatpush1.bf16.msra.mxu0 %v1361
        %1365 = vmatprep.subr.bf16.mxu0 0
        %1366 = vmatpush1.bf16.msra.mxu0 0
        %1367 = vmatprep.subr.bf16.mxu0 0
        %1368 = vmatpush1.bf16.msra.mxu0 0
        %1369 = vmatprep.subr.bf16.mxu0 0
        %1370 = vmatpush1.bf16.msra.mxu0 0
        %1371 = vmatprep.subr.bf16.mxu0 0
        %1372 = vmatpush1.bf16.msra.mxu0 0
        %1373 = vmatprep.subr.bf16.mxu0 0
        %1374 = vmatpush1.bf16.msra.mxu0 0
        %1375 = vmatprep.subr.bf16.mxu0 0
        %1376 = vmatpush1.bf16.msra.mxu0 0
        %1377 = vmatprep.subr.bf16.mxu0 0
        %1378 = vmatpush1.bf16.msra.mxu0 0
        %1379 = vmatprep.subr.bf16.mxu0 0
        %1380 = vmatpush1.bf16.msra.mxu0 0
        %1381 = vmatprep.subr.bf16.mxu0 0
        %1382 = vmatpush1.bf16.msra.mxu0 0
        %1383 = vmatprep.subr.bf16.mxu0 0
        %1384 = vmatpush1.bf16.msra.mxu0 0
        %1385 = vmatprep.subr.bf16.mxu0 0
        %1386 = vmatpush1.bf16.msra.mxu0 0
        %1387 = vmatprep.subr.bf16.mxu0 0
        %1388 = vmatpush1.bf16.msra.mxu0 0
        %1389 = vmatprep.subr.bf16.mxu0 0
        %1390 = vmatpush1.bf16.msra.mxu0 0
        %1391 = vmatprep.subr.bf16.mxu0 0
        %1392 = vmatpush1.bf16.msra.mxu0 0
        %1393 = vmatprep.subr.bf16.mxu0 0
        %1394 = vmatpush1.bf16.msra.mxu0 0
        %1395 = vmatprep.mubr.bf16.mxu0 0
        %1396 = vmatmul.mubr.bf16.gmra.mrb[0].mxu0 %v1358
        %v1397 = vpop.f32.mrb[0].mxu0
        %v1398 = vadd.f32 %v1352, %v1397
        %v1399 = vpop.f32.mrb[0].mxu0
        %v1400 = vpop.f32.mrb[0].mxu0
        %v1401 = vpop.f32.mrb[0].mxu0
        %1402 = vdwg.mxu0
        %1403 = vrot.lane.b32.xlu0 %v894, 112
        %v1404 = vpop.permute.xlu0 %1403
        %v1406 = vsel %vm902, %v1404, 0
        %1408 = vmatprep.subr.bf16.mxu0 0
        %1409 = vmatpush1.bf16.msra.mxu0 %v908
        %1410 = vmatprep.subr.bf16.mxu0 0
        %1411 = vmatpush1.bf16.msra.mxu0 0
        %1412 = vmatprep.subr.bf16.mxu0 0
        %1413 = vmatpush1.bf16.msra.mxu0 0
        %1414 = vmatprep.subr.bf16.mxu0 0
        %1415 = vmatpush1.bf16.msra.mxu0 0
        %1416 = vmatprep.subr.bf16.mxu0 0
        %1417 = vmatpush1.bf16.msra.mxu0 0
        %1418 = vmatprep.subr.bf16.mxu0 0
        %1419 = vmatpush1.bf16.msra.mxu0 0
        %1420 = vmatprep.subr.bf16.mxu0 0
        %1421 = vmatpush1.bf16.msra.mxu0 0
        %1422 = vmatprep.subr.bf16.mxu0 0
        %1423 = vmatpush1.bf16.msra.mxu0 0
        %1424 = vmatprep.subr.bf16.mxu0 0
        %1425 = vmatpush1.bf16.msra.mxu0 0
        %1426 = vmatprep.subr.bf16.mxu0 0
        %1427 = vmatpush1.bf16.msra.mxu0 0
        %1428 = vmatprep.subr.bf16.mxu0 0
        %1429 = vmatpush1.bf16.msra.mxu0 0
        %1430 = vmatprep.subr.bf16.mxu0 0
        %1431 = vmatpush1.bf16.msra.mxu0 0
        %1432 = vmatprep.subr.bf16.mxu0 0
        %1433 = vmatpush1.bf16.msra.mxu0 0
        %1434 = vmatprep.subr.bf16.mxu0 0
        %1435 = vmatpush1.bf16.msra.mxu0 0
        %1436 = vmatprep.subr.bf16.mxu0 0
        %1437 = vmatpush1.bf16.msra.mxu0 0
        %1438 = vmatprep.subr.bf16.mxu0 0
        %1439 = vmatpush1.bf16.msra.mxu0 0
        %1440 = vmatprep.mubr.bf16.mxu0 0
        %1441 = vmatmul.mubr.bf16.gmra.mrb[0].mxu0 %v1406
        %v1442 = vpop.f32.mrb[0].mxu0
        %v1443 = vadd.f32 0.0, %v1442
        %v1444 = vpop.f32.mrb[0].mxu0
        %v1445 = vpop.f32.mrb[0].mxu0
        %v1446 = vpop.f32.mrb[0].mxu0
        %1447 = vdwg.mxu0
        %v1448 = vpack.c.bf16 %v1443, %v1443
        %1449 = vrot.lane.b32.xlu0 %v896, 112
        %v1450 = vpop.permute.xlu0 %1449
        %v1452 = vsel %vm902, %v1450, 0
        %1454 = vmatprep.subr.bf16.mxu0 0
        %1455 = vmatpush1.bf16.msra.mxu0 %v956
        %1456 = vmatprep.subr.bf16.mxu0 0
        %1457 = vmatpush1.bf16.msra.mxu0 0
        %1458 = vmatprep.subr.bf16.mxu0 0
        %1459 = vmatpush1.bf16.msra.mxu0 0
        %1460 = vmatprep.subr.bf16.mxu0 0
        %1461 = vmatpush1.bf16.msra.mxu0 0
        %1462 = vmatprep.subr.bf16.mxu0 0
        %1463 = vmatpush1.bf16.msra.mxu0 0
        %1464 = vmatprep.subr.bf16.mxu0 0
        %1465 = vmatpush1.bf16.msra.mxu0 0
        %1466 = vmatprep.subr.bf16.mxu0 0
        %1467 = vmatpush1.bf16.msra.mxu0 0
        %1468 = vmatprep.subr.bf16.mxu0 0
        %1469 = vmatpush1.bf16.msra.mxu0 0
        %1470 = vmatprep.subr.bf16.mxu0 0
        %1471 = vmatpush1.bf16.msra.mxu0 0
        %1472 = vmatprep.subr.bf16.mxu0 0
        %1473 = vmatpush1.bf16.msra.mxu0 0
        %1474 = vmatprep.subr.bf16.mxu0 0
        %1475 = vmatpush1.bf16.msra.mxu0 0
        %1476 = vmatprep.subr.bf16.mxu0 0
        %1477 = vmatpush1.bf16.msra.mxu0 0
        %1478 = vmatprep.subr.bf16.mxu0 0
        %1479 = vmatpush1.bf16.msra.mxu0 0
        %1480 = vmatprep.subr.bf16.mxu0 0
        %1481 = vmatpush1.bf16.msra.mxu0 0
        %1482 = vmatprep.subr.bf16.mxu0 0
        %1483 = vmatpush1.bf16.msra.mxu0 0
        %1484 = vmatprep.subr.bf16.mxu0 0
        %1485 = vmatpush1.bf16.msra.mxu0 0
        %1486 = vmatprep.mubr.bf16.mxu0 0
        %1487 = vmatmul.mubr.bf16.gmra.mrb[0].mxu0 %v1452
        %v1488 = vpop.f32.mrb[0].mxu0
        %v1489 = vadd.f32 0.0, %v1488
        %v1490 = vpop.f32.mrb[0].mxu0
        %v1491 = vpop.f32.mrb[0].mxu0
        %v1492 = vpop.f32.mrb[0].mxu0
        %1493 = vdwg.mxu0
        %v1494 = vpack.c.bf16 %v1489, %v1489
        %v1496 = vsel %vm902, %v1448, 0
        %v1499 = vsel %vm902, %v1494, 0
        %1501 = vmatprep.subr.bf16.mxu0 0
        %1502 = vmatpush1.bf16.xpose.msra.mxu0 %v1499
        %1503 = vmatprep.subr.bf16.mxu0 0
        %1504 = vmatpush1.bf16.xpose.msra.mxu0 0
        %1505 = vmatprep.subr.bf16.mxu0 0
        %1506 = vmatpush1.bf16.xpose.msra.mxu0 0
        %1507 = vmatprep.subr.bf16.mxu0 0
        %1508 = vmatpush1.bf16.xpose.msra.mxu0 0
        %1509 = vmatprep.subr.bf16.mxu0 0
        %1510 = vmatpush1.bf16.xpose.msra.mxu0 0
        %1511 = vmatprep.subr.bf16.mxu0 0
        %1512 = vmatpush1.bf16.xpose.msra.mxu0 0
        %1513 = vmatprep.subr.bf16.mxu0 0
        %1514 = vmatpush1.bf16.xpose.msra.mxu0 0
        %1515 = vmatprep.subr.bf16.mxu0 0
        %1516 = vmatpush1.bf16.xpose.msra.mxu0 0
        %1517 = vmatprep.subr.bf16.mxu0 0
        %1518 = vmatpush1.bf16.xpose.msra.mxu0 0
        %1519 = vmatprep.subr.bf16.mxu0 0
        %1520 = vmatpush1.bf16.xpose.msra.mxu0 0
        %1521 = vmatprep.subr.bf16.mxu0 0
        %1522 = vmatpush1.bf16.xpose.msra.mxu0 0
        %1523 = vmatprep.subr.bf16.mxu0 0
        %1524 = vmatpush1.bf16.xpose.msra.mxu0 0
        %1525 = vmatprep.subr.bf16.mxu0 0
        %1526 = vmatpush1.bf16.xpose.msra.mxu0 0
        %1527 = vmatprep.subr.bf16.mxu0 0
        %1528 = vmatpush1.bf16.xpose.msra.mxu0 0
        %1529 = vmatprep.subr.bf16.mxu0 0
        %1530 = vmatpush1.bf16.xpose.msra.mxu0 0
        %1531 = vmatprep.subr.bf16.mxu0 0
        %1532 = vmatpush1.bf16.xpose.msra.mxu0 0
        %1533 = vmatprep.mubr.bf16.mxu0 0
        %1534 = vmatmul.mubr.bf16.gmra.mrb[0].mxu0 %v1496
        %v1535 = vpop.f32.mrb[0].mxu0
        %v1536 = vadd.f32 %v898, %v1535
        %v1537 = vpop.f32.mrb[0].mxu0
        %v1538 = vpop.f32.mrb[0].mxu0
        %v1539 = vpop.f32.mrb[0].mxu0
        %1540 = vdwg.mxu0
        %v1541 = vsel %vm902, %v1536, -inf
        %1542 = vmax.xlane.f32.xlu0 %v1541
        %v1543 = vpop.xlane.xlu0 %1542
        %v1544 = vsub.f32 %v1536, %v1543
        %v1545 = vmul.f32 %v1544, 1.442695
        %v1546 = vpow.pop %v1545
        %v1547 = vsel %vm902, %v1546, 0.0
        %1548 = vadd.xlane.f32.xlu0 %v1547
        %v1549 = vpop.xlane.xlu0 %1548
        %v1550 = vrcp.pop %v1549
        %v1551 = vmul.f32 %v1546, %v1550
        %v1552 = vpack.c.bf16 %v1551, %v1551
        %1554 = vrot.lane.b32.xlu0 %v1494, 120
        %v1555 = vpop.permute.xlu0 %1554
        %v1557 = vsel %vm902, %v1552, 0
        %v1560 = vsel %vm906, %v1555, 0
        %1562 = vmatprep.subr.bf16.mxu0 0
        %1563 = vmatpush1.bf16.msra.mxu0 %v1560
        %1564 = vmatprep.subr.bf16.mxu0 0
        %1565 = vmatpush1.bf16.msra.mxu0 0
        %1566 = vmatprep.subr.bf16.mxu0 0
        %1567 = vmatpush1.bf16.msra.mxu0 0
        %1568 = vmatprep.subr.bf16.mxu0 0
        %1569 = vmatpush1.bf16.msra.mxu0 0
        %1570 = vmatprep.subr.bf16.mxu0 0
        %1571 = vmatpush1.bf16.msra.mxu0 0
        %1572 = vmatprep.subr.bf16.mxu0 0
        %1573 = vmatpush1.bf16.msra.mxu0 0
        %1574 = vmatprep.subr.bf16.mxu0 0
        %1575 = vmatpush1.bf16.msra.mxu0 0
        %1576 = vmatprep.subr.bf16.mxu0 0
        %1577 = vmatpush1.bf16.msra.mxu0 0
        %1578 = vmatprep.subr.bf16.mxu0 0
        %1579 = vmatpush1.bf16.msra.mxu0 0
        %1580 = vmatprep.subr.bf16.mxu0 0
        %1581 = vmatpush1.bf16.msra.mxu0 0
        %1582 = vmatprep.subr.bf16.mxu0 0
        %1583 = vmatpush1.bf16.msra.mxu0 0
        %1584 = vmatprep.subr.bf16.mxu0 0
        %1585 = vmatpush1.bf16.msra.mxu0 0
        %1586 = vmatprep.subr.bf16.mxu0 0
        %1587 = vmatpush1.bf16.msra.mxu0 0
        %1588 = vmatprep.subr.bf16.mxu0 0
        %1589 = vmatpush1.bf16.msra.mxu0 0
        %1590 = vmatprep.subr.bf16.mxu0 0
        %1591 = vmatpush1.bf16.msra.mxu0 0
        %1592 = vmatprep.subr.bf16.mxu0 0
        %1593 = vmatpush1.bf16.msra.mxu0 0
        %1594 = vmatprep.mubr.bf16.mxu0 0
        %1595 = vmatmul.mubr.bf16.gmra.mrb[0].mxu0 %v1557
        %v1596 = vpop.f32.mrb[0].mxu0
        %v1597 = vadd.f32 0.0, %v1596
        %v1598 = vpop.f32.mrb[0].mxu0
        %v1599 = vpop.f32.mrb[0].mxu0
        %v1600 = vpop.f32.mrb[0].mxu0
        %1601 = vdwg.mxu0
        %v1602 = vpack.c.bf16 %v1597, %v1597
        %v1603 = vld [vmem:[%s8 + $0x8] sm:$0xf]
        %v1605 = vsel %vm902, %v1602, 0
        %v1608 = vsel %vm906, %v1603, 0
        %1610 = vmatprep.subr.bf16.mxu0 0
        %1611 = vmatpush1.bf16.msra.mxu0 %v1608
        %1612 = vmatprep.subr.bf16.mxu0 0
        %1613 = vmatpush1.bf16.msra.mxu0 0
        %1614 = vmatprep.subr.bf16.mxu0 0
        %1615 = vmatpush1.bf16.msra.mxu0 0
        %1616 = vmatprep.subr.bf16.mxu0 0
        %1617 = vmatpush1.bf16.msra.mxu0 0
        %1618 = vmatprep.subr.bf16.mxu0 0
        %1619 = vmatpush1.bf16.msra.mxu0 0
        %1620 = vmatprep.subr.bf16.mxu0 0
        %1621 = vmatpush1.bf16.msra.mxu0 0
        %1622 = vmatprep.subr.bf16.mxu0 0
        %1623 = vmatpush1.bf16.msra.mxu0 0
        %1624 = vmatprep.subr.bf16.mxu0 0
        %1625 = vmatpush1.bf16.msra.mxu0 0
        %1626 = vmatprep.subr.bf16.mxu0 0
        %1627 = vmatpush1.bf16.msra.mxu0 0
        %1628 = vmatprep.subr.bf16.mxu0 0
        %1629 = vmatpush1.bf16.msra.mxu0 0
        %1630 = vmatprep.subr.bf16.mxu0 0
        %1631 = vmatpush1.bf16.msra.mxu0 0
        %1632 = vmatprep.subr.bf16.mxu0 0
        %1633 = vmatpush1.bf16.msra.mxu0 0
        %1634 = vmatprep.subr.bf16.mxu0 0
        %1635 = vmatpush1.bf16.msra.mxu0 0
        %1636 = vmatprep.subr.bf16.mxu0 0
        %1637 = vmatpush1.bf16.msra.mxu0 0
        %1638 = vmatprep.subr.bf16.mxu0 0
        %1639 = vmatpush1.bf16.msra.mxu0 0
        %1640 = vmatprep.subr.bf16.mxu0 0
        %1641 = vmatpush1.bf16.msra.mxu0 0
        %1642 = vmatprep.mubr.bf16.mxu0 0
        %1643 = vmatmul.mubr.bf16.gmra.mrb[0].mxu0 %v1605
        %v1644 = vpop.f32.mrb[0].mxu0
        %v1645 = vadd.f32 0.0, %v1644
        %v1646 = vpop.f32.mrb[0].mxu0
        %v1647 = vpop.f32.mrb[0].mxu0
        %v1648 = vpop.f32.mrb[0].mxu0
        %1649 = vdwg.mxu0
        %v1650 = vadd.f32 %v1398, %v1645
        %1651 = vrot.lane.b32.xlu0 %v894, 104
        %v1652 = vpop.permute.xlu0 %1651
        %v1654 = vsel %vm902, %v1652, 0
        %1656 = vmatprep.subr.bf16.mxu0 0
        %1657 = vmatpush1.bf16.msra.mxu0 %v908
        %1658 = vmatprep.subr.bf16.mxu0 0
        %1659 = vmatpush1.bf16.msra.mxu0 0
        %1660 = vmatprep.subr.bf16.mxu0 0
        %1661 = vmatpush1.bf16.msra.mxu0 0
        %1662 = vmatprep.subr.bf16.mxu0 0
        %1663 = vmatpush1.bf16.msra.mxu0 0
        %1664 = vmatprep.subr.bf16.mxu0 0
        %1665 = vmatpush1.bf16.msra.mxu0 0
        %1666 = vmatprep.subr.bf16.mxu0 0
        %1667 = vmatpush1.bf16.msra.mxu0 0
        %1668 = vmatprep.subr.bf16.mxu0 0
        %1669 = vmatpush1.bf16.msra.mxu0 0
        %1670 = vmatprep.subr.bf16.mxu0 0
        %1671 = vmatpush1.bf16.msra.mxu0 0
        %1672 = vmatprep.subr.bf16.mxu0 0
        %1673 = vmatpush1.bf16.msra.mxu0 0
        %1674 = vmatprep.subr.bf16.mxu0 0
        %1675 = vmatpush1.bf16.msra.mxu0 0
        %1676 = vmatprep.subr.bf16.mxu0 0
        %1677 = vmatpush1.bf16.msra.mxu0 0
        %1678 = vmatprep.subr.bf16.mxu0 0
        %1679 = vmatpush1.bf16.msra.mxu0 0
        %1680 = vmatprep.subr.bf16.mxu0 0
        %1681 = vmatpush1.bf16.msra.mxu0 0
        %1682 = vmatprep.subr.bf16.mxu0 0
        %1683 = vmatpush1.bf16.msra.mxu0 0
        %1684 = vmatprep.subr.bf16.mxu0 0
        %1685 = vmatpush1.bf16.msra.mxu0 0
        %1686 = vmatprep.subr.bf16.mxu0 0
        %1687 = vmatpush1.bf16.msra.mxu0 0
        %1688 = vmatprep.mubr.bf16.mxu0 0
        %1689 = vmatmul.mubr.bf16.gmra.mrb[0].mxu0 %v1654
        %v1690 = vpop.f32.mrb[0].mxu0
        %v1691 = vadd.f32 0.0, %v1690
        %v1692 = vpop.f32.mrb[0].mxu0
        %v1693 = vpop.f32.mrb[0].mxu0
        %v1694 = vpop.f32.mrb[0].mxu0
        %1695 = vdwg.mxu0
        %v1696 = vpack.c.bf16 %v1691, %v1691
        %1697 = vrot.lane.b32.xlu0 %v896, 104
        %v1698 = vpop.permute.xlu0 %1697
        %v1700 = vsel %vm902, %v1698, 0
        %1702 = vmatprep.subr.bf16.mxu0 0
        %1703 = vmatpush1.bf16.msra.mxu0 %v956
        %1704 = vmatprep.subr.bf16.mxu0 0
        %1705 = vmatpush1.bf16.msra.mxu0 0
        %1706 = vmatprep.subr.bf16.mxu0 0
        %1707 = vmatpush1.bf16.msra.mxu0 0
        %1708 = vmatprep.subr.bf16.mxu0 0
        %1709 = vmatpush1.bf16.msra.mxu0 0
        %1710 = vmatprep.subr.bf16.mxu0 0
        %1711 = vmatpush1.bf16.msra.mxu0 0
        %1712 = vmatprep.subr.bf16.mxu0 0
        %1713 = vmatpush1.bf16.msra.mxu0 0
        %1714 = vmatprep.subr.bf16.mxu0 0
        %1715 = vmatpush1.bf16.msra.mxu0 0
        %1716 = vmatprep.subr.bf16.mxu0 0
        %1717 = vmatpush1.bf16.msra.mxu0 0
        %1718 = vmatprep.subr.bf16.mxu0 0
        %1719 = vmatpush1.bf16.msra.mxu0 0
        %1720 = vmatprep.subr.bf16.mxu0 0
        %1721 = vmatpush1.bf16.msra.mxu0 0
        %1722 = vmatprep.subr.bf16.mxu0 0
        %1723 = vmatpush1.bf16.msra.mxu0 0
        %1724 = vmatprep.subr.bf16.mxu0 0
        %1725 = vmatpush1.bf16.msra.mxu0 0
        %1726 = vmatprep.subr.bf16.mxu0 0
        %1727 = vmatpush1.bf16.msra.mxu0 0
        %1728 = vmatprep.subr.bf16.mxu0 0
        %1729 = vmatpush1.bf16.msra.mxu0 0
        %1730 = vmatprep.subr.bf16.mxu0 0
        %1731 = vmatpush1.bf16.msra.mxu0 0
        %1732 = vmatprep.subr.bf16.mxu0 0
        %1733 = vmatpush1.bf16.msra.mxu0 0
        %1734 = vmatprep.mubr.bf16.mxu0 0
        %1735 = vmatmul.mubr.bf16.gmra.mrb[0].mxu0 %v1700
        %v1736 = vpop.f32.mrb[0].mxu0
        %v1737 = vadd.f32 0.0, %v1736
        %v1738 = vpop.f32.mrb[0].mxu0
        %v1739 = vpop.f32.mrb[0].mxu0
        %v1740 = vpop.f32.mrb[0].mxu0
        %1741 = vdwg.mxu0
        %v1742 = vpack.c.bf16 %v1737, %v1737
        %v1744 = vsel %vm902, %v1696, 0
        %v1747 = vsel %vm902, %v1742, 0
        %1749 = vmatprep.subr.bf16.mxu0 0
        %1750 = vmatpush1.bf16.xpose.msra.mxu0 %v1747
        %1751 = vmatprep.subr.bf16.mxu0 0
        %1752 = vmatpush1.bf16.xpose.msra.mxu0 0
        %1753 = vmatprep.subr.bf16.mxu0 0
        %1754 = vmatpush1.bf16.xpose.msra.mxu0 0
        %1755 = vmatprep.subr.bf16.mxu0 0
        %1756 = vmatpush1.bf16.xpose.msra.mxu0 0
        %1757 = vmatprep.subr.bf16.mxu0 0
        %1758 = vmatpush1.bf16.xpose.msra.mxu0 0
        %1759 = vmatprep.subr.bf16.mxu0 0
        %1760 = vmatpush1.bf16.xpose.msra.mxu0 0
        %1761 = vmatprep.subr.bf16.mxu0 0
        %1762 = vmatpush1.bf16.xpose.msra.mxu0 0
        %1763 = vmatprep.subr.bf16.mxu0 0
        %1764 = vmatpush1.bf16.xpose.msra.mxu0 0
        %1765 = vmatprep.subr.bf16.mxu0 0
        %1766 = vmatpush1.bf16.xpose.msra.mxu0 0
        %1767 = vmatprep.subr.bf16.mxu0 0
        %1768 = vmatpush1.bf16.xpose.msra.mxu0 0
        %1769 = vmatprep.subr.bf16.mxu0 0
        %1770 = vmatpush1.bf16.xpose.msra.mxu0 0
        %1771 = vmatprep.subr.bf16.mxu0 0
        %1772 = vmatpush1.bf16.xpose.msra.mxu0 0
        %1773 = vmatprep.subr.bf16.mxu0 0
        %1774 = vmatpush1.bf16.xpose.msra.mxu0 0
        %1775 = vmatprep.subr.bf16.mxu0 0
        %1776 = vmatpush1.bf16.xpose.msra.mxu0 0
        %1777 = vmatprep.subr.bf16.mxu0 0
        %1778 = vmatpush1.bf16.xpose.msra.mxu0 0
        %1779 = vmatprep.subr.bf16.mxu0 0
        %1780 = vmatpush1.bf16.xpose.msra.mxu0 0
        %1781 = vmatprep.mubr.bf16.mxu0 0
        %1782 = vmatmul.mubr.bf16.gmra.mrb[0].mxu0 %v1744
        %v1783 = vpop.f32.mrb[0].mxu0
        %v1784 = vadd.f32 %v898, %v1783
        %v1785 = vpop.f32.mrb[0].mxu0
        %v1786 = vpop.f32.mrb[0].mxu0
        %v1787 = vpop.f32.mrb[0].mxu0
        %1788 = vdwg.mxu0
        %v1789 = vsel %vm902, %v1784, -inf
        %1790 = vmax.xlane.f32.xlu0 %v1789
        %v1791 = vpop.xlane.xlu0 %1790
        %v1792 = vsub.f32 %v1784, %v1791
        %v1793 = vmul.f32 %v1792, 1.442695
        %v1794 = vpow.pop %v1793
        %v1795 = vsel %vm902, %v1794, 0.0
        %1796 = vadd.xlane.f32.xlu0 %v1795
        %v1797 = vpop.xlane.xlu0 %1796
        %v1798 = vrcp.pop %v1797
        %v1799 = vmul.f32 %v1794, %v1798
        %v1800 = vpack.c.bf16 %v1799, %v1799
        %1802 = vrot.lane.b32.xlu0 %v1742, 120
        %v1803 = vpop.permute.xlu0 %1802
        %v1805 = vsel %vm902, %v1800, 0
        %v1808 = vsel %vm906, %v1803, 0
        %1810 = vmatprep.subr.bf16.mxu0 0
        %1811 = vmatpush1.bf16.msra.mxu0 %v1808
        %1812 = vmatprep.subr.bf16.mxu0 0
        %1813 = vmatpush1.bf16.msra.mxu0 0
        %1814 = vmatprep.subr.bf16.mxu0 0
        %1815 = vmatpush1.bf16.msra.mxu0 0
        %1816 = vmatprep.subr.bf16.mxu0 0
        %1817 = vmatpush1.bf16.msra.mxu0 0
        %1818 = vmatprep.subr.bf16.mxu0 0
        %1819 = vmatpush1.bf16.msra.mxu0 0
        %1820 = vmatprep.subr.bf16.mxu0 0
        %1821 = vmatpush1.bf16.msra.mxu0 0
        %1822 = vmatprep.subr.bf16.mxu0 0
        %1823 = vmatpush1.bf16.msra.mxu0 0
        %1824 = vmatprep.subr.bf16.mxu0 0
        %1825 = vmatpush1.bf16.msra.mxu0 0
        %1826 = vmatprep.subr.bf16.mxu0 0
        %1827 = vmatpush1.bf16.msra.mxu0 0
        %1828 = vmatprep.subr.bf16.mxu0 0
        %1829 = vmatpush1.bf16.msra.mxu0 0
        %1830 = vmatprep.subr.bf16.mxu0 0
        %1831 = vmatpush1.bf16.msra.mxu0 0
        %1832 = vmatprep.subr.bf16.mxu0 0
        %1833 = vmatpush1.bf16.msra.mxu0 0
        %1834 = vmatprep.subr.bf16.mxu0 0
        %1835 = vmatpush1.bf16.msra.mxu0 0
        %1836 = vmatprep.subr.bf16.mxu0 0
        %1837 = vmatpush1.bf16.msra.mxu0 0
        %1838 = vmatprep.subr.bf16.mxu0 0
        %1839 = vmatpush1.bf16.msra.mxu0 0
        %1840 = vmatprep.subr.bf16.mxu0 0
        %1841 = vmatpush1.bf16.msra.mxu0 0
        %1842 = vmatprep.mubr.bf16.mxu0 0
        %1843 = vmatmul.mubr.bf16.gmra.mrb[0].mxu0 %v1805
        %v1844 = vpop.f32.mrb[0].mxu0
        %v1845 = vadd.f32 0.0, %v1844
        %v1846 = vpop.f32.mrb[0].mxu0
        %v1847 = vpop.f32.mrb[0].mxu0
        %v1848 = vpop.f32.mrb[0].mxu0
        %1849 = vdwg.mxu0
        %v1850 = vpack.c.bf16 %v1845, %v1845
        %v1851 = vld [vmem:[%s8 + $0xc] sm:$0xf]
        %v1853 = vsel %vm902, %v1850, 0
        %v1856 = vsel %vm906, %v1851, 0
        %1858 = vmatprep.subr.bf16.mxu0 0
        %1859 = vmatpush1.bf16.msra.mxu0 %v1856
        %1860 = vmatprep.subr.bf16.mxu0 0
        %1861 = vmatpush1.bf16.msra.mxu0 0
        %1862 = vmatprep.subr.bf16.mxu0 0
        %1863 = vmatpush1.bf16.msra.mxu0 0
        %1864 = vmatprep.subr.bf16.mxu0 0
        %1865 = vmatpush1.bf16.msra.mxu0 0
        %1866 = vmatprep.subr.bf16.mxu0 0
        %1867 = vmatpush1.bf16.msra.mxu0 0
        %1868 = vmatprep.subr.bf16.mxu0 0
        %1869 = vmatpush1.bf16.msra.mxu0 0
        %1870 = vmatprep.subr.bf16.mxu0 0
        %1871 = vmatpush1.bf16.msra.mxu0 0
        %1872 = vmatprep.subr.bf16.mxu0 0
        %1873 = vmatpush1.bf16.msra.mxu0 0
        %1874 = vmatprep.subr.bf16.mxu0 0
        %1875 = vmatpush1.bf16.msra.mxu0 0
        %1876 = vmatprep.subr.bf16.mxu0 0
        %1877 = vmatpush1.bf16.msra.mxu0 0
        %1878 = vmatprep.subr.bf16.mxu0 0
        %1879 = vmatpush1.bf16.msra.mxu0 0
        %1880 = vmatprep.subr.bf16.mxu0 0
        %1881 = vmatpush1.bf16.msra.mxu0 0
        %1882 = vmatprep.subr.bf16.mxu0 0
        %1883 = vmatpush1.bf16.msra.mxu0 0
        %1884 = vmatprep.subr.bf16.mxu0 0
        %1885 = vmatpush1.bf16.msra.mxu0 0
        %1886 = vmatprep.subr.bf16.mxu0 0
        %1887 = vmatpush1.bf16.msra.mxu0 0
        %1888 = vmatprep.subr.bf16.mxu0 0
        %1889 = vmatpush1.bf16.msra.mxu0 0
        %1890 = vmatprep.mubr.bf16.mxu0 0
        %1891 = vmatmul.mubr.bf16.gmra.mrb[0].mxu0 %v1853
        %v1892 = vpop.f32.mrb[0].mxu0
        %v1893 = vadd.f32 0.0, %v1892
        %v1894 = vpop.f32.mrb[0].mxu0
        %v1895 = vpop.f32.mrb[0].mxu0
        %v1896 = vpop.f32.mrb[0].mxu0
        %1897 = vdwg.mxu0
        %v1898 = vadd.f32 %v1650, %v1893
        %v1899 = vld [vmem:[%s9] sm:$0x1]
        %v1901 = vlaneseq
        %v1902 = vshrl.u32 %v1901, 7
        %v1903 = vsub.s32 0, %v1902
        %v1904 = vrot.slane %v1899, %v1903
        %v1906 = vadd.f32 %v1898, %v1904
        %v1907 = vadd.f32 %v1906, %v893
        %v1908 = vld [vmem:[%s10] sm:$0x1]
        %v1909 = vld [vmem:[%s11] sm:$0x1]
        %vm1910 = vcmask 261120
        %v1911 = vsel %vm1910, %v1907, 0.0
        %1912 = vadd.xlane.f32.xlu0 %v1911
        %v1913 = vpop.xlane.xlu0 %1912
        %v1914 = vrcp.pop 32.0
        %v1915 = vmul.f32 %v1913, %v1914
        %v1916 = vsub.f32 %v1907, %v1915
        %v1917 = vmul.f32 %v1916, %v1916
        %v1918 = vsel %vm1910, %v1917, 0.0
        %1919 = vadd.xlane.f32.xlu0 %v1918
        %v1920 = vpop.xlane.xlu0 %1919
        %v1921 = vmul.f32 %v1920, %v1914
        %v1922 = vadd.f32 %v1921, 1e-05
        %v1923 = vrsqrt.pop %v1922
        %v1924 = vmul.f32 %v1916, %v1923
        %v1926 = vlaneseq
        %v1927 = vshrl.u32 %v1926, 7
        %v1928 = vsub.s32 0, %v1927
        %v1929 = vrot.slane %v1908, %v1928
        %v1931 = vmul.f32 %v1924, %v1929
        %v1933 = vlaneseq
        %v1934 = vshrl.u32 %v1933, 7
        %v1935 = vsub.s32 0, %v1934
        %v1936 = vrot.slane %v1909, %v1935
        %v1938 = vadd.f32 %v1931, %v1936
        %v1939 = vpack.c.bf16 %v1938, %v1938
        %v1940 = vld [vmem:[%s877] sm:$0xff]
        %v1941 = vpack.c.bf16 %v1940, %v1940
        %v1942 = vld [vmem:[%s873] sm:$0xff]
        %v1943 = vpack.c.bf16 %v1942, %v1942
        %v1944 = vld [vmem:[%s12] sm:$0xf]
        %v1946 = vsel %vm902, %v1939, 0
        %v1949 = vsel %vm906, %v1944, 0
        %1951 = vmatprep.subr.bf16.mxu0 0
        %1952 = vmatpush1.bf16.msra.mxu0 %v1949
        %1953 = vmatprep.subr.bf16.mxu0 0
        %1954 = vmatpush1.bf16.msra.mxu0 0
        %1955 = vmatprep.subr.bf16.mxu0 0
        %1956 = vmatpush1.bf16.msra.mxu0 0
        %1957 = vmatprep.subr.bf16.mxu0 0
        %1958 = vmatpush1.bf16.msra.mxu0 0
        %1959 = vmatprep.subr.bf16.mxu0 0
        %1960 = vmatpush1.bf16.msra.mxu0 0
        %1961 = vmatprep.subr.bf16.mxu0 0
        %1962 = vmatpush1.bf16.msra.mxu0 0
        %1963 = vmatprep.subr.bf16.mxu0 0
        %1964 = vmatpush1.bf16.msra.mxu0 0
        %1965 = vmatprep.subr.bf16.mxu0 0
        %1966 = vmatpush1.bf16.msra.mxu0 0
        %1967 = vmatprep.subr.bf16.mxu0 0
        %1968 = vmatpush1.bf16.msra.mxu0 0
        %1969 = vmatprep.subr.bf16.mxu0 0
        %1970 = vmatpush1.bf16.msra.mxu0 0
        %1971 = vmatprep.subr.bf16.mxu0 0
        %1972 = vmatpush1.bf16.msra.mxu0 0
        %1973 = vmatprep.subr.bf16.mxu0 0
        %1974 = vmatpush1.bf16.msra.mxu0 0
        %1975 = vmatprep.subr.bf16.mxu0 0
        %1976 = vmatpush1.bf16.msra.mxu0 0
        %1977 = vmatprep.subr.bf16.mxu0 0
        %1978 = vmatpush1.bf16.msra.mxu0 0
        %1979 = vmatprep.subr.bf16.mxu0 0
        %1980 = vmatpush1.bf16.msra.mxu0 0
        %1981 = vmatprep.subr.bf16.mxu0 0
        %1982 = vmatpush1.bf16.msra.mxu0 0
        %1983 = vmatprep.mubr.bf16.mxu0 0
        %1984 = vmatmul.mubr.bf16.gmra.mrb[0].mxu0 %v1946
        %v1985 = vpop.f32.mrb[0].mxu0
        %v1986 = vadd.f32 0.0, %v1985
        %v1987 = vpop.f32.mrb[0].mxu0
        %v1988 = vpop.f32.mrb[0].mxu0
        %v1989 = vpop.f32.mrb[0].mxu0
        %1990 = vdwg.mxu0
        %v1991 = vpack.c.bf16 %v1986, %v1986
        %v1992 = vld [vmem:[%s13] sm:$0xf]
        %v1994 = vsel %vm902, %v1941, 0
        %v1997 = vsel %vm906, %v1992, 0
        %1999 = vmatprep.subr.bf16.mxu0 0
        %2000 = vmatpush1.bf16.msra.mxu0 %v1997
        %2001 = vmatprep.subr.bf16.mxu0 0
        %2002 = vmatpush1.bf16.msra.mxu0 0
        %2003 = vmatprep.subr.bf16.mxu0 0
        %2004 = vmatpush1.bf16.msra.mxu0 0
        %2005 = vmatprep.subr.bf16.mxu0 0
        %2006 = vmatpush1.bf16.msra.mxu0 0
        %2007 = vmatprep.subr.bf16.mxu0 0
        %2008 = vmatpush1.bf16.msra.mxu0 0
        %2009 = vmatprep.subr.bf16.mxu0 0
        %2010 = vmatpush1.bf16.msra.mxu0 0
        %2011 = vmatprep.subr.bf16.mxu0 0
        %2012 = vmatpush1.bf16.msra.mxu0 0
        %2013 = vmatprep.subr.bf16.mxu0 0
        %2014 = vmatpush1.bf16.msra.mxu0 0
        %2015 = vmatprep.subr.bf16.mxu0 0
        %2016 = vmatpush1.bf16.msra.mxu0 0
        %2017 = vmatprep.subr.bf16.mxu0 0
        %2018 = vmatpush1.bf16.msra.mxu0 0
        %2019 = vmatprep.subr.bf16.mxu0 0
        %2020 = vmatpush1.bf16.msra.mxu0 0
        %2021 = vmatprep.subr.bf16.mxu0 0
        %2022 = vmatpush1.bf16.msra.mxu0 0
        %2023 = vmatprep.subr.bf16.mxu0 0
        %2024 = vmatpush1.bf16.msra.mxu0 0
        %2025 = vmatprep.subr.bf16.mxu0 0
        %2026 = vmatpush1.bf16.msra.mxu0 0
        %2027 = vmatprep.subr.bf16.mxu0 0
        %2028 = vmatpush1.bf16.msra.mxu0 0
        %2029 = vmatprep.subr.bf16.mxu0 0
        %2030 = vmatpush1.bf16.msra.mxu0 0
        %2031 = vmatprep.mubr.bf16.mxu0 0
        %2032 = vmatmul.mubr.bf16.gmra.mrb[0].mxu0 %v1994
        %v2033 = vpop.f32.mrb[0].mxu0
        %v2034 = vadd.f32 0.0, %v2033
        %v2035 = vpop.f32.mrb[0].mxu0
        %v2036 = vpop.f32.mrb[0].mxu0
        %v2037 = vpop.f32.mrb[0].mxu0
        %2038 = vdwg.mxu0
        %v2039 = vpack.c.bf16 %v2034, %v2034
        %v2040 = vld [vmem:[%s14] sm:$0xf]
        %v2042 = vsel %vm902, %v1943, 0
        %v2045 = vsel %vm906, %v2040, 0
        %2047 = vmatprep.subr.bf16.mxu0 0
        %2048 = vmatpush1.bf16.msra.mxu0 %v2045
        %2049 = vmatprep.subr.bf16.mxu0 0
        %2050 = vmatpush1.bf16.msra.mxu0 0
        %2051 = vmatprep.subr.bf16.mxu0 0
        %2052 = vmatpush1.bf16.msra.mxu0 0
        %2053 = vmatprep.subr.bf16.mxu0 0
        %2054 = vmatpush1.bf16.msra.mxu0 0
        %2055 = vmatprep.subr.bf16.mxu0 0
        %2056 = vmatpush1.bf16.msra.mxu0 0
        %2057 = vmatprep.subr.bf16.mxu0 0
        %2058 = vmatpush1.bf16.msra.mxu0 0
        %2059 = vmatprep.subr.bf16.mxu0 0
        %2060 = vmatpush1.bf16.msra.mxu0 0
        %2061 = vmatprep.subr.bf16.mxu0 0
        %2062 = vmatpush1.bf16.msra.mxu0 0
        %2063 = vmatprep.subr.bf16.mxu0 0
        %2064 = vmatpush1.bf16.msra.mxu0 0
        %2065 = vmatprep.subr.bf16.mxu0 0
        %2066 = vmatpush1.bf16.msra.mxu0 0
        %2067 = vmatprep.subr.bf16.mxu0 0
        %2068 = vmatpush1.bf16.msra.mxu0 0
        %2069 = vmatprep.subr.bf16.mxu0 0
        %2070 = vmatpush1.bf16.msra.mxu0 0
        %2071 = vmatprep.subr.bf16.mxu0 0
        %2072 = vmatpush1.bf16.msra.mxu0 0
        %2073 = vmatprep.subr.bf16.mxu0 0
        %2074 = vmatpush1.bf16.msra.mxu0 0
        %2075 = vmatprep.subr.bf16.mxu0 0
        %2076 = vmatpush1.bf16.msra.mxu0 0
        %2077 = vmatprep.subr.bf16.mxu0 0
        %2078 = vmatpush1.bf16.msra.mxu0 0
        %2079 = vmatprep.mubr.bf16.mxu0 0
        %2080 = vmatmul.mubr.bf16.gmra.mrb[0].mxu0 %v2042
        %v2081 = vpop.f32.mrb[0].mxu0
        %v2082 = vadd.f32 0.0, %v2081
        %v2083 = vpop.f32.mrb[0].mxu0
        %v2084 = vpop.f32.mrb[0].mxu0
        %v2085 = vpop.f32.mrb[0].mxu0
        %2086 = vdwg.mxu0
        %v2087 = vpack.c.bf16 %v2082, %v2082
        %v2089 = vsel %vm902, %v1991, 0
        %v2092 = vsel %vm902, %v2039, 0
        %2094 = vmatprep.subr.bf16.mxu0 0
        %2095 = vmatpush1.bf16.xpose.msra.mxu0 %v2092
        %2096 = vmatprep.subr.bf16.mxu0 0
        %2097 = vmatpush1.bf16.xpose.msra.mxu0 0
        %2098 = vmatprep.subr.bf16.mxu0 0
        %2099 = vmatpush1.bf16.xpose.msra.mxu0 0
        %2100 = vmatprep.subr.bf16.mxu0 0
        %2101 = vmatpush1.bf16.xpose.msra.mxu0 0
        %2102 = vmatprep.subr.bf16.mxu0 0
        %2103 = vmatpush1.bf16.xpose.msra.mxu0 0
        %2104 = vmatprep.subr.bf16.mxu0 0
        %2105 = vmatpush1.bf16.xpose.msra.mxu0 0
        %2106 = vmatprep.subr.bf16.mxu0 0
        %2107 = vmatpush1.bf16.xpose.msra.mxu0 0
        %2108 = vmatprep.subr.bf16.mxu0 0
        %2109 = vmatpush1.bf16.xpose.msra.mxu0 0
        %2110 = vmatprep.subr.bf16.mxu0 0
        %2111 = vmatpush1.bf16.xpose.msra.mxu0 0
        %2112 = vmatprep.subr.bf16.mxu0 0
        %2113 = vmatpush1.bf16.xpose.msra.mxu0 0
        %2114 = vmatprep.subr.bf16.mxu0 0
        %2115 = vmatpush1.bf16.xpose.msra.mxu0 0
        %2116 = vmatprep.subr.bf16.mxu0 0
        %2117 = vmatpush1.bf16.xpose.msra.mxu0 0
        %2118 = vmatprep.subr.bf16.mxu0 0
        %2119 = vmatpush1.bf16.xpose.msra.mxu0 0
        %2120 = vmatprep.subr.bf16.mxu0 0
        %2121 = vmatpush1.bf16.xpose.msra.mxu0 0
        %2122 = vmatprep.subr.bf16.mxu0 0
        %2123 = vmatpush1.bf16.xpose.msra.mxu0 0
        %2124 = vmatprep.subr.bf16.mxu0 0
        %2125 = vmatpush1.bf16.xpose.msra.mxu0 0
        %2126 = vmatprep.mubr.bf16.mxu0 0
        %2127 = vmatmul.mubr.bf16.gmra.mrb[0].mxu0 %v2089
        %v2128 = vpop.f32.mrb[0].mxu0
        %v2129 = vadd.f32 %v900, %v2128
        %v2130 = vpop.f32.mrb[0].mxu0
        %v2131 = vpop.f32.mrb[0].mxu0
        %v2132 = vpop.f32.mrb[0].mxu0
        %2133 = vdwg.mxu0
        %v2134 = vsel %vm902, %v2129, -inf
        %2135 = vmax.xlane.f32.xlu0 %v2134
        %v2136 = vpop.xlane.xlu0 %2135
        %v2137 = vsub.f32 %v2129, %v2136
        %v2138 = vmul.f32 %v2137, 1.442695
        %v2139 = vpow.pop %v2138
        %v2140 = vsel %vm902, %v2139, 0.0
        %2141 = vadd.xlane.f32.xlu0 %v2140
        %v2142 = vpop.xlane.xlu0 %2141
        %v2143 = vrcp.pop %v2142
        %v2144 = vmul.f32 %v2139, %v2143
        %v2145 = vpack.c.bf16 %v2144, %v2144
        %v2147 = vsel %vm902, %v2145, 0
        %v2150 = vsel %vm906, %v2087, 0
        %2152 = vmatprep.subr.bf16.mxu0 0
        %2153 = vmatpush1.bf16.msra.mxu0 %v2150
        %2154 = vmatprep.subr.bf16.mxu0 0
        %2155 = vmatpush1.bf16.msra.mxu0 0
        %2156 = vmatprep.subr.bf16.mxu0 0
        %2157 = vmatpush1.bf16.msra.mxu0 0
        %2158 = vmatprep.subr.bf16.mxu0 0
        %2159 = vmatpush1.bf16.msra.mxu0 0
        %2160 = vmatprep.subr.bf16.mxu0 0
        %2161 = vmatpush1.bf16.msra.mxu0 0
        %2162 = vmatprep.subr.bf16.mxu0 0
        %2163 = vmatpush1.bf16.msra.mxu0 0
        %2164 = vmatprep.subr.bf16.mxu0 0
        %2165 = vmatpush1.bf16.msra.mxu0 0
        %2166 = vmatprep.subr.bf16.mxu0 0
        %2167 = vmatpush1.bf16.msra.mxu0 0
        %2168 = vmatprep.subr.bf16.mxu0 0
        %2169 = vmatpush1.bf16.msra.mxu0 0
        %2170 = vmatprep.subr.bf16.mxu0 0
        %2171 = vmatpush1.bf16.msra.mxu0 0
        %2172 = vmatprep.subr.bf16.mxu0 0
        %2173 = vmatpush1.bf16.msra.mxu0 0
        %2174 = vmatprep.subr.bf16.mxu0 0
        %2175 = vmatpush1.bf16.msra.mxu0 0
        %2176 = vmatprep.subr.bf16.mxu0 0
        %2177 = vmatpush1.bf16.msra.mxu0 0
        %2178 = vmatprep.subr.bf16.mxu0 0
        %2179 = vmatpush1.bf16.msra.mxu0 0
        %2180 = vmatprep.subr.bf16.mxu0 0
        %2181 = vmatpush1.bf16.msra.mxu0 0
        %2182 = vmatprep.subr.bf16.mxu0 0
        %2183 = vmatpush1.bf16.msra.mxu0 0
        %2184 = vmatprep.mubr.bf16.mxu0 0
        %2185 = vmatmul.mubr.bf16.gmra.mrb[0].mxu0 %v2147
        %v2186 = vpop.f32.mrb[0].mxu0
        %v2187 = vadd.f32 0.0, %v2186
        %v2188 = vpop.f32.mrb[0].mxu0
        %v2189 = vpop.f32.mrb[0].mxu0
        %v2190 = vpop.f32.mrb[0].mxu0
        %2191 = vdwg.mxu0
        %v2192 = vpack.c.bf16 %v2187, %v2187
        %v2193 = vld [vmem:[%s15] sm:$0xf]
        %2195 = vrot.lane.b32.xlu0 %v1939, 120
        %v2196 = vpop.permute.xlu0 %2195
        %v2198 = vsel %vm902, %v2196, 0
        %2200 = vmatprep.subr.bf16.mxu0 0
        %2201 = vmatpush1.bf16.msra.mxu0 %v1949
        %2202 = vmatprep.subr.bf16.mxu0 0
        %2203 = vmatpush1.bf16.msra.mxu0 0
        %2204 = vmatprep.subr.bf16.mxu0 0
        %2205 = vmatpush1.bf16.msra.mxu0 0
        %2206 = vmatprep.subr.bf16.mxu0 0
        %2207 = vmatpush1.bf16.msra.mxu0 0
        %2208 = vmatprep.subr.bf16.mxu0 0
        %2209 = vmatpush1.bf16.msra.mxu0 0
        %2210 = vmatprep.subr.bf16.mxu0 0
        %2211 = vmatpush1.bf16.msra.mxu0 0
        %2212 = vmatprep.subr.bf16.mxu0 0
        %2213 = vmatpush1.bf16.msra.mxu0 0
        %2214 = vmatprep.subr.bf16.mxu0 0
        %2215 = vmatpush1.bf16.msra.mxu0 0
        %2216 = vmatprep.subr.bf16.mxu0 0
        %2217 = vmatpush1.bf16.msra.mxu0 0
        %2218 = vmatprep.subr.bf16.mxu0 0
        %2219 = vmatpush1.bf16.msra.mxu0 0
        %2220 = vmatprep.subr.bf16.mxu0 0
        %2221 = vmatpush1.bf16.msra.mxu0 0
        %2222 = vmatprep.subr.bf16.mxu0 0
        %2223 = vmatpush1.bf16.msra.mxu0 0
        %2224 = vmatprep.subr.bf16.mxu0 0
        %2225 = vmatpush1.bf16.msra.mxu0 0
        %2226 = vmatprep.subr.bf16.mxu0 0
        %2227 = vmatpush1.bf16.msra.mxu0 0
        %2228 = vmatprep.subr.bf16.mxu0 0
        %2229 = vmatpush1.bf16.msra.mxu0 0
        %2230 = vmatprep.subr.bf16.mxu0 0
        %2231 = vmatpush1.bf16.msra.mxu0 0
        %2232 = vmatprep.mubr.bf16.mxu0 0
        %2233 = vmatmul.mubr.bf16.gmra.mrb[0].mxu0 %v2198
        %v2234 = vpop.f32.mrb[0].mxu0
        %v2235 = vadd.f32 0.0, %v2234
        %v2236 = vpop.f32.mrb[0].mxu0
        %v2237 = vpop.f32.mrb[0].mxu0
        %v2238 = vpop.f32.mrb[0].mxu0
        %2239 = vdwg.mxu0
        %v2240 = vpack.c.bf16 %v2235, %v2235
        %2242 = vrot.lane.b32.xlu0 %v1941, 120
        %v2243 = vpop.permute.xlu0 %2242
        %v2245 = vsel %vm902, %v2243, 0
        %2247 = vmatprep.subr.bf16.mxu0 0
        %2248 = vmatpush1.bf16.msra.mxu0 %v1997
        %2249 = vmatprep.subr.bf16.mxu0 0
        %2250 = vmatpush1.bf16.msra.mxu0 0
        %2251 = vmatprep.subr.bf16.mxu0 0
        %2252 = vmatpush1.bf16.msra.mxu0 0
        %2253 = vmatprep.subr.bf16.mxu0 0
        %2254 = vmatpush1.bf16.msra.mxu0 0
        %2255 = vmatprep.subr.bf16.mxu0 0
        %2256 = vmatpush1.bf16.msra.mxu0 0
        %2257 = vmatprep.subr.bf16.mxu0 0
        %2258 = vmatpush1.bf16.msra.mxu0 0
        %2259 = vmatprep.subr.bf16.mxu0 0
        %2260 = vmatpush1.bf16.msra.mxu0 0
        %2261 = vmatprep.subr.bf16.mxu0 0
        %2262 = vmatpush1.bf16.msra.mxu0 0
        %2263 = vmatprep.subr.bf16.mxu0 0
        %2264 = vmatpush1.bf16.msra.mxu0 0
        %2265 = vmatprep.subr.bf16.mxu0 0
        %2266 = vmatpush1.bf16.msra.mxu0 0
        %2267 = vmatprep.subr.bf16.mxu0 0
        %2268 = vmatpush1.bf16.msra.mxu0 0
        %2269 = vmatprep.subr.bf16.mxu0 0
        %2270 = vmatpush1.bf16.msra.mxu0 0
        %2271 = vmatprep.subr.bf16.mxu0 0
        %2272 = vmatpush1.bf16.msra.mxu0 0
        %2273 = vmatprep.subr.bf16.mxu0 0
        %2274 = vmatpush1.bf16.msra.mxu0 0
        %2275 = vmatprep.subr.bf16.mxu0 0
        %2276 = vmatpush1.bf16.msra.mxu0 0
        %2277 = vmatprep.subr.bf16.mxu0 0
        %2278 = vmatpush1.bf16.msra.mxu0 0
        %2279 = vmatprep.mubr.bf16.mxu0 0
        %2280 = vmatmul.mubr.bf16.gmra.mrb[0].mxu0 %v2245
        %v2281 = vpop.f32.mrb[0].mxu0
        %v2282 = vadd.f32 0.0, %v2281
        %v2283 = vpop.f32.mrb[0].mxu0
        %v2284 = vpop.f32.mrb[0].mxu0
        %v2285 = vpop.f32.mrb[0].mxu0
        %2286 = vdwg.mxu0
        %v2287 = vpack.c.bf16 %v2282, %v2282
        %2289 = vrot.lane.b32.xlu0 %v1943, 120
        %v2290 = vpop.permute.xlu0 %2289
        %v2292 = vsel %vm902, %v2290, 0
        %2294 = vmatprep.subr.bf16.mxu0 0
        %2295 = vmatpush1.bf16.msra.mxu0 %v2045
        %2296 = vmatprep.subr.bf16.mxu0 0
        %2297 = vmatpush1.bf16.msra.mxu0 0
        %2298 = vmatprep.subr.bf16.mxu0 0
        %2299 = vmatpush1.bf16.msra.mxu0 0
        %2300 = vmatprep.subr.bf16.mxu0 0
        %2301 = vmatpush1.bf16.msra.mxu0 0
        %2302 = vmatprep.subr.bf16.mxu0 0
        %2303 = vmatpush1.bf16.msra.mxu0 0
        %2304 = vmatprep.subr.bf16.mxu0 0
        %2305 = vmatpush1.bf16.msra.mxu0 0
        %2306 = vmatprep.subr.bf16.mxu0 0
        %2307 = vmatpush1.bf16.msra.mxu0 0
        %2308 = vmatprep.subr.bf16.mxu0 0
        %2309 = vmatpush1.bf16.msra.mxu0 0
        %2310 = vmatprep.subr.bf16.mxu0 0
        %2311 = vmatpush1.bf16.msra.mxu0 0
        %2312 = vmatprep.subr.bf16.mxu0 0
        %2313 = vmatpush1.bf16.msra.mxu0 0
        %2314 = vmatprep.subr.bf16.mxu0 0
        %2315 = vmatpush1.bf16.msra.mxu0 0
        %2316 = vmatprep.subr.bf16.mxu0 0
        %2317 = vmatpush1.bf16.msra.mxu0 0
        %2318 = vmatprep.subr.bf16.mxu0 0
        %2319 = vmatpush1.bf16.msra.mxu0 0
        %2320 = vmatprep.subr.bf16.mxu0 0
        %2321 = vmatpush1.bf16.msra.mxu0 0
        %2322 = vmatprep.subr.bf16.mxu0 0
        %2323 = vmatpush1.bf16.msra.mxu0 0
        %2324 = vmatprep.subr.bf16.mxu0 0
        %2325 = vmatpush1.bf16.msra.mxu0 0
        %2326 = vmatprep.mubr.bf16.mxu0 0
        %2327 = vmatmul.mubr.bf16.gmra.mrb[0].mxu0 %v2292
        %v2328 = vpop.f32.mrb[0].mxu0
        %v2329 = vadd.f32 0.0, %v2328
        %v2330 = vpop.f32.mrb[0].mxu0
        %v2331 = vpop.f32.mrb[0].mxu0
        %v2332 = vpop.f32.mrb[0].mxu0
        %2333 = vdwg.mxu0
        %v2334 = vpack.c.bf16 %v2329, %v2329
        %v2336 = vsel %vm902, %v2240, 0
        %v2339 = vsel %vm902, %v2287, 0
        %2341 = vmatprep.subr.bf16.mxu0 0
        %2342 = vmatpush1.bf16.xpose.msra.mxu0 %v2339
        %2343 = vmatprep.subr.bf16.mxu0 0
        %2344 = vmatpush1.bf16.xpose.msra.mxu0 0
        %2345 = vmatprep.subr.bf16.mxu0 0
        %2346 = vmatpush1.bf16.xpose.msra.mxu0 0
        %2347 = vmatprep.subr.bf16.mxu0 0
        %2348 = vmatpush1.bf16.xpose.msra.mxu0 0
        %2349 = vmatprep.subr.bf16.mxu0 0
        %2350 = vmatpush1.bf16.xpose.msra.mxu0 0
        %2351 = vmatprep.subr.bf16.mxu0 0
        %2352 = vmatpush1.bf16.xpose.msra.mxu0 0
        %2353 = vmatprep.subr.bf16.mxu0 0
        %2354 = vmatpush1.bf16.xpose.msra.mxu0 0
        %2355 = vmatprep.subr.bf16.mxu0 0
        %2356 = vmatpush1.bf16.xpose.msra.mxu0 0
        %2357 = vmatprep.subr.bf16.mxu0 0
        %2358 = vmatpush1.bf16.xpose.msra.mxu0 0
        %2359 = vmatprep.subr.bf16.mxu0 0
        %2360 = vmatpush1.bf16.xpose.msra.mxu0 0
        %2361 = vmatprep.subr.bf16.mxu0 0
        %2362 = vmatpush1.bf16.xpose.msra.mxu0 0
        %2363 = vmatprep.subr.bf16.mxu0 0
        %2364 = vmatpush1.bf16.xpose.msra.mxu0 0
        %2365 = vmatprep.subr.bf16.mxu0 0
        %2366 = vmatpush1.bf16.xpose.msra.mxu0 0
        %2367 = vmatprep.subr.bf16.mxu0 0
        %2368 = vmatpush1.bf16.xpose.msra.mxu0 0
        %2369 = vmatprep.subr.bf16.mxu0 0
        %2370 = vmatpush1.bf16.xpose.msra.mxu0 0
        %2371 = vmatprep.subr.bf16.mxu0 0
        %2372 = vmatpush1.bf16.xpose.msra.mxu0 0
        %2373 = vmatprep.mubr.bf16.mxu0 0
        %2374 = vmatmul.mubr.bf16.gmra.mrb[0].mxu0 %v2336
        %v2375 = vpop.f32.mrb[0].mxu0
        %v2376 = vadd.f32 %v900, %v2375
        %v2377 = vpop.f32.mrb[0].mxu0
        %v2378 = vpop.f32.mrb[0].mxu0
        %v2379 = vpop.f32.mrb[0].mxu0
        %2380 = vdwg.mxu0
        %v2381 = vsel %vm902, %v2376, -inf
        %2382 = vmax.xlane.f32.xlu0 %v2381
        %v2383 = vpop.xlane.xlu0 %2382
        %v2384 = vsub.f32 %v2376, %v2383
        %v2385 = vmul.f32 %v2384, 1.442695
        %v2386 = vpow.pop %v2385
        %v2387 = vsel %vm902, %v2386, 0.0
        %2388 = vadd.xlane.f32.xlu0 %v2387
        %v2389 = vpop.xlane.xlu0 %2388
        %v2390 = vrcp.pop %v2389
        %v2391 = vmul.f32 %v2386, %v2390
        %v2392 = vpack.c.bf16 %v2391, %v2391
        %v2394 = vsel %vm902, %v2392, 0
        %v2397 = vsel %vm906, %v2334, 0
        %2399 = vmatprep.subr.bf16.mxu0 0
        %2400 = vmatpush1.bf16.msra.mxu0 %v2397
        %2401 = vmatprep.subr.bf16.mxu0 0
        %2402 = vmatpush1.bf16.msra.mxu0 0
        %2403 = vmatprep.subr.bf16.mxu0 0
        %2404 = vmatpush1.bf16.msra.mxu0 0
        %2405 = vmatprep.subr.bf16.mxu0 0
        %2406 = vmatpush1.bf16.msra.mxu0 0
        %2407 = vmatprep.subr.bf16.mxu0 0
        %2408 = vmatpush1.bf16.msra.mxu0 0
        %2409 = vmatprep.subr.bf16.mxu0 0
        %2410 = vmatpush1.bf16.msra.mxu0 0
        %2411 = vmatprep.subr.bf16.mxu0 0
        %2412 = vmatpush1.bf16.msra.mxu0 0
        %2413 = vmatprep.subr.bf16.mxu0 0
        %2414 = vmatpush1.bf16.msra.mxu0 0
        %2415 = vmatprep.subr.bf16.mxu0 0
        %2416 = vmatpush1.bf16.msra.mxu0 0
        %2417 = vmatprep.subr.bf16.mxu0 0
        %2418 = vmatpush1.bf16.msra.mxu0 0
        %2419 = vmatprep.subr.bf16.mxu0 0
        %2420 = vmatpush1.bf16.msra.mxu0 0
        %2421 = vmatprep.subr.bf16.mxu0 0
        %2422 = vmatpush1.bf16.msra.mxu0 0
        %2423 = vmatprep.subr.bf16.mxu0 0
        %2424 = vmatpush1.bf16.msra.mxu0 0
        %2425 = vmatprep.subr.bf16.mxu0 0
        %2426 = vmatpush1.bf16.msra.mxu0 0
        %2427 = vmatprep.subr.bf16.mxu0 0
        %2428 = vmatpush1.bf16.msra.mxu0 0
        %2429 = vmatprep.subr.bf16.mxu0 0
        %2430 = vmatpush1.bf16.msra.mxu0 0
        %2431 = vmatprep.mubr.bf16.mxu0 0
        %2432 = vmatmul.mubr.bf16.gmra.mrb[0].mxu0 %v2394
        %v2433 = vpop.f32.mrb[0].mxu0
        %v2434 = vadd.f32 0.0, %v2433
        %v2435 = vpop.f32.mrb[0].mxu0
        %v2436 = vpop.f32.mrb[0].mxu0
        %v2437 = vpop.f32.mrb[0].mxu0
        %2438 = vdwg.mxu0
        %v2439 = vpack.c.bf16 %v2434, %v2434
        %v2440 = vld [vmem:[%s15 + $0x4] sm:$0xf]
        %v2442 = vsel %vm902, %v2439, 0
        %v2445 = vsel %vm906, %v2440, 0
        %2447 = vmatprep.subr.bf16.mxu0 0
        %2448 = vmatpush1.bf16.msra.mxu0 %v2445
        %2449 = vmatprep.subr.bf16.mxu0 0
        %2450 = vmatpush1.bf16.msra.mxu0 0
        %2451 = vmatprep.subr.bf16.mxu0 0
        %2452 = vmatpush1.bf16.msra.mxu0 0
        %2453 = vmatprep.subr.bf16.mxu0 0
        %2454 = vmatpush1.bf16.msra.mxu0 0
        %2455 = vmatprep.subr.bf16.mxu0 0
        %2456 = vmatpush1.bf16.msra.mxu0 0
        %2457 = vmatprep.subr.bf16.mxu0 0
        %2458 = vmatpush1.bf16.msra.mxu0 0
        %2459 = vmatprep.subr.bf16.mxu0 0
        %2460 = vmatpush1.bf16.msra.mxu0 0
        %2461 = vmatprep.subr.bf16.mxu0 0
        %2462 = vmatpush1.bf16.msra.mxu0 0
        %2463 = vmatprep.subr.bf16.mxu0 0
        %2464 = vmatpush1.bf16.msra.mxu0 0
        %2465 = vmatprep.subr.bf16.mxu0 0
        %2466 = vmatpush1.bf16.msra.mxu0 0
        %2467 = vmatprep.subr.bf16.mxu0 0
        %2468 = vmatpush1.bf16.msra.mxu0 0
        %2469 = vmatprep.subr.bf16.mxu0 0
        %2470 = vmatpush1.bf16.msra.mxu0 0
        %2471 = vmatprep.subr.bf16.mxu0 0
        %2472 = vmatpush1.bf16.msra.mxu0 0
        %2473 = vmatprep.subr.bf16.mxu0 0
        %2474 = vmatpush1.bf16.msra.mxu0 0
        %2475 = vmatprep.subr.bf16.mxu0 0
        %2476 = vmatpush1.bf16.msra.mxu0 0
        %2477 = vmatprep.subr.bf16.mxu0 0
        %2478 = vmatpush1.bf16.msra.mxu0 0
        %2479 = vmatprep.mubr.bf16.mxu0 0
        %2480 = vmatmul.mubr.bf16.gmra.mrb[0].mxu0 %v2442
        %v2481 = vpop.f32.mrb[0].mxu0
        %v2482 = vadd.f32 0.0, %v2481
        %v2483 = vpop.f32.mrb[0].mxu0
        %v2484 = vpop.f32.mrb[0].mxu0
        %v2485 = vpop.f32.mrb[0].mxu0
        %2486 = vdwg.mxu0
        %v2488 = vsel %vm902, %v2192, 0
        %v2491 = vsel %vm906, %v2193, 0
        %2493 = vmatprep.subr.bf16.mxu0 0
        %2494 = vmatpush1.bf16.msra.mxu0 %v2491
        %2495 = vmatprep.subr.bf16.mxu0 0
        %2496 = vmatpush1.bf16.msra.mxu0 0
        %2497 = vmatprep.subr.bf16.mxu0 0
        %2498 = vmatpush1.bf16.msra.mxu0 0
        %2499 = vmatprep.subr.bf16.mxu0 0
        %2500 = vmatpush1.bf16.msra.mxu0 0
        %2501 = vmatprep.subr.bf16.mxu0 0
        %2502 = vmatpush1.bf16.msra.mxu0 0
        %2503 = vmatprep.subr.bf16.mxu0 0
        %2504 = vmatpush1.bf16.msra.mxu0 0
        %2505 = vmatprep.subr.bf16.mxu0 0
        %2506 = vmatpush1.bf16.msra.mxu0 0
        %2507 = vmatprep.subr.bf16.mxu0 0
        %2508 = vmatpush1.bf16.msra.mxu0 0
        %2509 = vmatprep.subr.bf16.mxu0 0
        %2510 = vmatpush1.bf16.msra.mxu0 0
        %2511 = vmatprep.subr.bf16.mxu0 0
        %2512 = vmatpush1.bf16.msra.mxu0 0
        %2513 = vmatprep.subr.bf16.mxu0 0
        %2514 = vmatpush1.bf16.msra.mxu0 0
        %2515 = vmatprep.subr.bf16.mxu0 0
        %2516 = vmatpush1.bf16.msra.mxu0 0
        %2517 = vmatprep.subr.bf16.mxu0 0
        %2518 = vmatpush1.bf16.msra.mxu0 0
        %2519 = vmatprep.subr.bf16.mxu0 0
        %2520 = vmatpush1.bf16.msra.mxu0 0
        %2521 = vmatprep.subr.bf16.mxu0 0
        %2522 = vmatpush1.bf16.msra.mxu0 0
        %2523 = vmatprep.subr.bf16.mxu0 0
        %2524 = vmatpush1.bf16.msra.mxu0 0
        %2525 = vmatprep.mubr.bf16.mxu0 0
        %2526 = vmatmul.mubr.bf16.gmra.mrb[0].mxu0 %v2488
        %v2527 = vpop.f32.mrb[0].mxu0
        %v2528 = vadd.f32 %v2482, %v2527
        %v2529 = vpop.f32.mrb[0].mxu0
        %v2530 = vpop.f32.mrb[0].mxu0
        %v2531 = vpop.f32.mrb[0].mxu0
        %2532 = vdwg.mxu0
        %2533 = vrot.lane.b32.xlu0 %v1939, 112
        %v2534 = vpop.permute.xlu0 %2533
        %v2536 = vsel %vm902, %v2534, 0
        %2538 = vmatprep.subr.bf16.mxu0 0
        %2539 = vmatpush1.bf16.msra.mxu0 %v1949
        %2540 = vmatprep.subr.bf16.mxu0 0
        %2541 = vmatpush1.bf16.msra.mxu0 0
        %2542 = vmatprep.subr.bf16.mxu0 0
        %2543 = vmatpush1.bf16.msra.mxu0 0
        %2544 = vmatprep.subr.bf16.mxu0 0
        %2545 = vmatpush1.bf16.msra.mxu0 0
        %2546 = vmatprep.subr.bf16.mxu0 0
        %2547 = vmatpush1.bf16.msra.mxu0 0
        %2548 = vmatprep.subr.bf16.mxu0 0
        %2549 = vmatpush1.bf16.msra.mxu0 0
        %2550 = vmatprep.subr.bf16.mxu0 0
        %2551 = vmatpush1.bf16.msra.mxu0 0
        %2552 = vmatprep.subr.bf16.mxu0 0
        %2553 = vmatpush1.bf16.msra.mxu0 0
        %2554 = vmatprep.subr.bf16.mxu0 0
        %2555 = vmatpush1.bf16.msra.mxu0 0
        %2556 = vmatprep.subr.bf16.mxu0 0
        %2557 = vmatpush1.bf16.msra.mxu0 0
        %2558 = vmatprep.subr.bf16.mxu0 0
        %2559 = vmatpush1.bf16.msra.mxu0 0
        %2560 = vmatprep.subr.bf16.mxu0 0
        %2561 = vmatpush1.bf16.msra.mxu0 0
        %2562 = vmatprep.subr.bf16.mxu0 0
        %2563 = vmatpush1.bf16.msra.mxu0 0
        %2564 = vmatprep.subr.bf16.mxu0 0
        %2565 = vmatpush1.bf16.msra.mxu0 0
        %2566 = vmatprep.subr.bf16.mxu0 0
        %2567 = vmatpush1.bf16.msra.mxu0 0
        %2568 = vmatprep.subr.bf16.mxu0 0
        %2569 = vmatpush1.bf16.msra.mxu0 0
        %2570 = vmatprep.mubr.bf16.mxu0 0
        %2571 = vmatmul.mubr.bf16.gmra.mrb[0].mxu0 %v2536
        %v2572 = vpop.f32.mrb[0].mxu0
        %v2573 = vadd.f32 0.0, %v2572
        %v2574 = vpop.f32.mrb[0].mxu0
        %v2575 = vpop.f32.mrb[0].mxu0
        %v2576 = vpop.f32.mrb[0].mxu0
        %2577 = vdwg.mxu0
        %v2578 = vpack.c.bf16 %v2573, %v2573
        %2579 = vrot.lane.b32.xlu0 %v1941, 112
        %v2580 = vpop.permute.xlu0 %2579
        %v2582 = vsel %vm902, %v2580, 0
        %2584 = vmatprep.subr.bf16.mxu0 0
        %2585 = vmatpush1.bf16.msra.mxu0 %v1997
        %2586 = vmatprep.subr.bf16.mxu0 0
        %2587 = vmatpush1.bf16.msra.mxu0 0
        %2588 = vmatprep.subr.bf16.mxu0 0
        %2589 = vmatpush1.bf16.msra.mxu0 0
        %2590 = vmatprep.subr.bf16.mxu0 0
        %2591 = vmatpush1.bf16.msra.mxu0 0
        %2592 = vmatprep.subr.bf16.mxu0 0
        %2593 = vmatpush1.bf16.msra.mxu0 0
        %2594 = vmatprep.subr.bf16.mxu0 0
        %2595 = vmatpush1.bf16.msra.mxu0 0
        %2596 = vmatprep.subr.bf16.mxu0 0
        %2597 = vmatpush1.bf16.msra.mxu0 0
        %2598 = vmatprep.subr.bf16.mxu0 0
        %2599 = vmatpush1.bf16.msra.mxu0 0
        %2600 = vmatprep.subr.bf16.mxu0 0
        %2601 = vmatpush1.bf16.msra.mxu0 0
        %2602 = vmatprep.subr.bf16.mxu0 0
        %2603 = vmatpush1.bf16.msra.mxu0 0
        %2604 = vmatprep.subr.bf16.mxu0 0
        %2605 = vmatpush1.bf16.msra.mxu0 0
        %2606 = vmatprep.subr.bf16.mxu0 0
        %2607 = vmatpush1.bf16.msra.mxu0 0
        %2608 = vmatprep.subr.bf16.mxu0 0
        %2609 = vmatpush1.bf16.msra.mxu0 0
        %2610 = vmatprep.subr.bf16.mxu0 0
        %2611 = vmatpush1.bf16.msra.mxu0 0
        %2612 = vmatprep.subr.bf16.mxu0 0
        %2613 = vmatpush1.bf16.msra.mxu0 0
        %2614 = vmatprep.subr.bf16.mxu0 0
        %2615 = vmatpush1.bf16.msra.mxu0 0
        %2616 = vmatprep.mubr.bf16.mxu0 0
        %2617 = vmatmul.mubr.bf16.gmra.mrb[0].mxu0 %v2582
        %v2618 = vpop.f32.mrb[0].mxu0
        %v2619 = vadd.f32 0.0, %v2618
        %v2620 = vpop.f32.mrb[0].mxu0
        %v2621 = vpop.f32.mrb[0].mxu0
        %v2622 = vpop.f32.mrb[0].mxu0
        %2623 = vdwg.mxu0
        %v2624 = vpack.c.bf16 %v2619, %v2619
        %2625 = vrot.lane.b32.xlu0 %v1943, 112
        %v2626 = vpop.permute.xlu0 %2625
        %v2628 = vsel %vm902, %v2626, 0
        %2630 = vmatprep.subr.bf16.mxu0 0
        %2631 = vmatpush1.bf16.msra.mxu0 %v2045
        %2632 = vmatprep.subr.bf16.mxu0 0
        %2633 = vmatpush1.bf16.msra.mxu0 0
        %2634 = vmatprep.subr.bf16.mxu0 0
        %2635 = vmatpush1.bf16.msra.mxu0 0
        %2636 = vmatprep.subr.bf16.mxu0 0
        %2637 = vmatpush1.bf16.msra.mxu0 0
        %2638 = vmatprep.subr.bf16.mxu0 0
        %2639 = vmatpush1.bf16.msra.mxu0 0
        %2640 = vmatprep.subr.bf16.mxu0 0
        %2641 = vmatpush1.bf16.msra.mxu0 0
        %2642 = vmatprep.subr.bf16.mxu0 0
        %2643 = vmatpush1.bf16.msra.mxu0 0
        %2644 = vmatprep.subr.bf16.mxu0 0
        %2645 = vmatpush1.bf16.msra.mxu0 0
        %2646 = vmatprep.subr.bf16.mxu0 0
        %2647 = vmatpush1.bf16.msra.mxu0 0
        %2648 = vmatprep.subr.bf16.mxu0 0
        %2649 = vmatpush1.bf16.msra.mxu0 0
        %2650 = vmatprep.subr.bf16.mxu0 0
        %2651 = vmatpush1.bf16.msra.mxu0 0
        %2652 = vmatprep.subr.bf16.mxu0 0
        %2653 = vmatpush1.bf16.msra.mxu0 0
        %2654 = vmatprep.subr.bf16.mxu0 0
        %2655 = vmatpush1.bf16.msra.mxu0 0
        %2656 = vmatprep.subr.bf16.mxu0 0
        %2657 = vmatpush1.bf16.msra.mxu0 0
        %2658 = vmatprep.subr.bf16.mxu0 0
        %2659 = vmatpush1.bf16.msra.mxu0 0
        %2660 = vmatprep.subr.bf16.mxu0 0
        %2661 = vmatpush1.bf16.msra.mxu0 0
        %2662 = vmatprep.mubr.bf16.mxu0 0
        %2663 = vmatmul.mubr.bf16.gmra.mrb[0].mxu0 %v2628
        %v2664 = vpop.f32.mrb[0].mxu0
        %v2665 = vadd.f32 0.0, %v2664
        %v2666 = vpop.f32.mrb[0].mxu0
        %v2667 = vpop.f32.mrb[0].mxu0
        %v2668 = vpop.f32.mrb[0].mxu0
        %2669 = vdwg.mxu0
        %v2670 = vpack.c.bf16 %v2665, %v2665
        %v2672 = vsel %vm902, %v2578, 0
        %v2675 = vsel %vm902, %v2624, 0
        %2677 = vmatprep.subr.bf16.mxu0 0
        %2678 = vmatpush1.bf16.xpose.msra.mxu0 %v2675
        %2679 = vmatprep.subr.bf16.mxu0 0
        %2680 = vmatpush1.bf16.xpose.msra.mxu0 0
        %2681 = vmatprep.subr.bf16.mxu0 0
        %2682 = vmatpush1.bf16.xpose.msra.mxu0 0
        %2683 = vmatprep.subr.bf16.mxu0 0
        %2684 = vmatpush1.bf16.xpose.msra.mxu0 0
        %2685 = vmatprep.subr.bf16.mxu0 0
        %2686 = vmatpush1.bf16.xpose.msra.mxu0 0
        %2687 = vmatprep.subr.bf16.mxu0 0
        %2688 = vmatpush1.bf16.xpose.msra.mxu0 0
        %2689 = vmatprep.subr.bf16.mxu0 0
        %2690 = vmatpush1.bf16.xpose.msra.mxu0 0
        %2691 = vmatprep.subr.bf16.mxu0 0
        %2692 = vmatpush1.bf16.xpose.msra.mxu0 0
        %2693 = vmatprep.subr.bf16.mxu0 0
        %2694 = vmatpush1.bf16.xpose.msra.mxu0 0
        %2695 = vmatprep.subr.bf16.mxu0 0
        %2696 = vmatpush1.bf16.xpose.msra.mxu0 0
        %2697 = vmatprep.subr.bf16.mxu0 0
        %2698 = vmatpush1.bf16.xpose.msra.mxu0 0
        %2699 = vmatprep.subr.bf16.mxu0 0
        %2700 = vmatpush1.bf16.xpose.msra.mxu0 0
        %2701 = vmatprep.subr.bf16.mxu0 0
        %2702 = vmatpush1.bf16.xpose.msra.mxu0 0
        %2703 = vmatprep.subr.bf16.mxu0 0
        %2704 = vmatpush1.bf16.xpose.msra.mxu0 0
        %2705 = vmatprep.subr.bf16.mxu0 0
        %2706 = vmatpush1.bf16.xpose.msra.mxu0 0
        %2707 = vmatprep.subr.bf16.mxu0 0
        %2708 = vmatpush1.bf16.xpose.msra.mxu0 0
        %2709 = vmatprep.mubr.bf16.mxu0 0
        %2710 = vmatmul.mubr.bf16.gmra.mrb[0].mxu0 %v2672
        %v2711 = vpop.f32.mrb[0].mxu0
        %v2712 = vadd.f32 %v900, %v2711
        %v2713 = vpop.f32.mrb[0].mxu0
        %v2714 = vpop.f32.mrb[0].mxu0
        %v2715 = vpop.f32.mrb[0].mxu0
        %2716 = vdwg.mxu0
        %v2717 = vsel %vm902, %v2712, -inf
        %2718 = vmax.xlane.f32.xlu0 %v2717
        %v2719 = vpop.xlane.xlu0 %2718
        %v2720 = vsub.f32 %v2712, %v2719
        %v2721 = vmul.f32 %v2720, 1.442695
        %v2722 = vpow.pop %v2721
        %v2723 = vsel %vm902, %v2722, 0.0
        %2724 = vadd.xlane.f32.xlu0 %v2723
        %v2725 = vpop.xlane.xlu0 %2724
        %v2726 = vrcp.pop %v2725
        %v2727 = vmul.f32 %v2722, %v2726
        %v2728 = vpack.c.bf16 %v2727, %v2727
        %v2730 = vsel %vm902, %v2728, 0
        %v2733 = vsel %vm906, %v2670, 0
        %2735 = vmatprep.subr.bf16.mxu0 0
        %2736 = vmatpush1.bf16.msra.mxu0 %v2733
        %2737 = vmatprep.subr.bf16.mxu0 0
        %2738 = vmatpush1.bf16.msra.mxu0 0
        %2739 = vmatprep.subr.bf16.mxu0 0
        %2740 = vmatpush1.bf16.msra.mxu0 0
        %2741 = vmatprep.subr.bf16.mxu0 0
        %2742 = vmatpush1.bf16.msra.mxu0 0
        %2743 = vmatprep.subr.bf16.mxu0 0
        %2744 = vmatpush1.bf16.msra.mxu0 0
        %2745 = vmatprep.subr.bf16.mxu0 0
        %2746 = vmatpush1.bf16.msra.mxu0 0
        %2747 = vmatprep.subr.bf16.mxu0 0
        %2748 = vmatpush1.bf16.msra.mxu0 0
        %2749 = vmatprep.subr.bf16.mxu0 0
        %2750 = vmatpush1.bf16.msra.mxu0 0
        %2751 = vmatprep.subr.bf16.mxu0 0
        %2752 = vmatpush1.bf16.msra.mxu0 0
        %2753 = vmatprep.subr.bf16.mxu0 0
        %2754 = vmatpush1.bf16.msra.mxu0 0
        %2755 = vmatprep.subr.bf16.mxu0 0
        %2756 = vmatpush1.bf16.msra.mxu0 0
        %2757 = vmatprep.subr.bf16.mxu0 0
        %2758 = vmatpush1.bf16.msra.mxu0 0
        %2759 = vmatprep.subr.bf16.mxu0 0
        %2760 = vmatpush1.bf16.msra.mxu0 0
        %2761 = vmatprep.subr.bf16.mxu0 0
        %2762 = vmatpush1.bf16.msra.mxu0 0
        %2763 = vmatprep.subr.bf16.mxu0 0
        %2764 = vmatpush1.bf16.msra.mxu0 0
        %2765 = vmatprep.subr.bf16.mxu0 0
        %2766 = vmatpush1.bf16.msra.mxu0 0
        %2767 = vmatprep.mubr.bf16.mxu0 0
        %2768 = vmatmul.mubr.bf16.gmra.mrb[0].mxu0 %v2730
        %v2769 = vpop.f32.mrb[0].mxu0
        %v2770 = vadd.f32 0.0, %v2769
        %v2771 = vpop.f32.mrb[0].mxu0
        %v2772 = vpop.f32.mrb[0].mxu0
        %v2773 = vpop.f32.mrb[0].mxu0
        %2774 = vdwg.mxu0
        %v2775 = vpack.c.bf16 %v2770, %v2770
        %v2776 = vld [vmem:[%s15 + $0x8] sm:$0xf]
        %v2778 = vsel %vm902, %v2775, 0
        %v2781 = vsel %vm906, %v2776, 0
        %2783 = vmatprep.subr.bf16.mxu0 0
        %2784 = vmatpush1.bf16.msra.mxu0 %v2781
        %2785 = vmatprep.subr.bf16.mxu0 0
        %2786 = vmatpush1.bf16.msra.mxu0 0
        %2787 = vmatprep.subr.bf16.mxu0 0
        %2788 = vmatpush1.bf16.msra.mxu0 0
        %2789 = vmatprep.subr.bf16.mxu0 0
        %2790 = vmatpush1.bf16.msra.mxu0 0
        %2791 = vmatprep.subr.bf16.mxu0 0
        %2792 = vmatpush1.bf16.msra.mxu0 0
        %2793 = vmatprep.subr.bf16.mxu0 0
        %2794 = vmatpush1.bf16.msra.mxu0 0
        %2795 = vmatprep.subr.bf16.mxu0 0
        %2796 = vmatpush1.bf16.msra.mxu0 0
        %2797 = vmatprep.subr.bf16.mxu0 0
        %2798 = vmatpush1.bf16.msra.mxu0 0
        %2799 = vmatprep.subr.bf16.mxu0 0
        %2800 = vmatpush1.bf16.msra.mxu0 0
        %2801 = vmatprep.subr.bf16.mxu0 0
        %2802 = vmatpush1.bf16.msra.mxu0 0
        %2803 = vmatprep.subr.bf16.mxu0 0
        %2804 = vmatpush1.bf16.msra.mxu0 0
        %2805 = vmatprep.subr.bf16.mxu0 0
        %2806 = vmatpush1.bf16.msra.mxu0 0
        %2807 = vmatprep.subr.bf16.mxu0 0
        %2808 = vmatpush1.bf16.msra.mxu0 0
        %2809 = vmatprep.subr.bf16.mxu0 0
        %2810 = vmatpush1.bf16.msra.mxu0 0
        %2811 = vmatprep.subr.bf16.mxu0 0
        %2812 = vmatpush1.bf16.msra.mxu0 0
        %2813 = vmatprep.subr.bf16.mxu0 0
        %2814 = vmatpush1.bf16.msra.mxu0 0
        %2815 = vmatprep.mubr.bf16.mxu0 0
        %2816 = vmatmul.mubr.bf16.gmra.mrb[0].mxu0 %v2778
        %v2817 = vpop.f32.mrb[0].mxu0
        %v2818 = vadd.f32 0.0, %v2817
        %v2819 = vpop.f32.mrb[0].mxu0
        %v2820 = vpop.f32.mrb[0].mxu0
        %v2821 = vpop.f32.mrb[0].mxu0
        %2822 = vdwg.mxu0
        %v2823 = vadd.f32 %v2528, %v2818
        %2824 = vrot.lane.b32.xlu0 %v1939, 104
        %v2825 = vpop.permute.xlu0 %2824
        %v2827 = vsel %vm902, %v2825, 0
        %2829 = vmatprep.subr.bf16.mxu0 0
        %2830 = vmatpush1.bf16.msra.mxu0 %v1949
        %2831 = vmatprep.subr.bf16.mxu0 0
        %2832 = vmatpush1.bf16.msra.mxu0 0
        %2833 = vmatprep.subr.bf16.mxu0 0
        %2834 = vmatpush1.bf16.msra.mxu0 0
        %2835 = vmatprep.subr.bf16.mxu0 0
        %2836 = vmatpush1.bf16.msra.mxu0 0
        %2837 = vmatprep.subr.bf16.mxu0 0
        %2838 = vmatpush1.bf16.msra.mxu0 0
        %2839 = vmatprep.subr.bf16.mxu0 0
        %2840 = vmatpush1.bf16.msra.mxu0 0
        %2841 = vmatprep.subr.bf16.mxu0 0
        %2842 = vmatpush1.bf16.msra.mxu0 0
        %2843 = vmatprep.subr.bf16.mxu0 0
        %2844 = vmatpush1.bf16.msra.mxu0 0
        %2845 = vmatprep.subr.bf16.mxu0 0
        %2846 = vmatpush1.bf16.msra.mxu0 0
        %2847 = vmatprep.subr.bf16.mxu0 0
        %2848 = vmatpush1.bf16.msra.mxu0 0
        %2849 = vmatprep.subr.bf16.mxu0 0
        %2850 = vmatpush1.bf16.msra.mxu0 0
        %2851 = vmatprep.subr.bf16.mxu0 0
        %2852 = vmatpush1.bf16.msra.mxu0 0
        %2853 = vmatprep.subr.bf16.mxu0 0
        %2854 = vmatpush1.bf16.msra.mxu0 0
        %2855 = vmatprep.subr.bf16.mxu0 0
        %2856 = vmatpush1.bf16.msra.mxu0 0
        %2857 = vmatprep.subr.bf16.mxu0 0
        %2858 = vmatpush1.bf16.msra.mxu0 0
        %2859 = vmatprep.subr.bf16.mxu0 0
        %2860 = vmatpush1.bf16.msra.mxu0 0
        %2861 = vmatprep.mubr.bf16.mxu0 0
        %2862 = vmatmul.mubr.bf16.gmra.mrb[0].mxu0 %v2827
        %v2863 = vpop.f32.mrb[0].mxu0
        %v2864 = vadd.f32 0.0, %v2863
        %v2865 = vpop.f32.mrb[0].mxu0
        %v2866 = vpop.f32.mrb[0].mxu0
        %v2867 = vpop.f32.mrb[0].mxu0
        %2868 = vdwg.mxu0
        %v2869 = vpack.c.bf16 %v2864, %v2864
        %2870 = vrot.lane.b32.xlu0 %v1941, 104
        %v2871 = vpop.permute.xlu0 %2870
        %v2873 = vsel %vm902, %v2871, 0
        %2875 = vmatprep.subr.bf16.mxu0 0
        %2876 = vmatpush1.bf16.msra.mxu0 %v1997
        %2877 = vmatprep.subr.bf16.mxu0 0
        %2878 = vmatpush1.bf16.msra.mxu0 0
        %2879 = vmatprep.subr.bf16.mxu0 0
        %2880 = vmatpush1.bf16.msra.mxu0 0
        %2881 = vmatprep.subr.bf16.mxu0 0
        %2882 = vmatpush1.bf16.msra.mxu0 0
        %2883 = vmatprep.subr.bf16.mxu0 0
        %2884 = vmatpush1.bf16.msra.mxu0 0
        %2885 = vmatprep.subr.bf16.mxu0 0
        %2886 = vmatpush1.bf16.msra.mxu0 0
        %2887 = vmatprep.subr.bf16.mxu0 0
        %2888 = vmatpush1.bf16.msra.mxu0 0
        %2889 = vmatprep.subr.bf16.mxu0 0
        %2890 = vmatpush1.bf16.msra.mxu0 0
        %2891 = vmatprep.subr.bf16.mxu0 0
        %2892 = vmatpush1.bf16.msra.mxu0 0
        %2893 = vmatprep.subr.bf16.mxu0 0
        %2894 = vmatpush1.bf16.msra.mxu0 0
        %2895 = vmatprep.subr.bf16.mxu0 0
        %2896 = vmatpush1.bf16.msra.mxu0 0
        %2897 = vmatprep.subr.bf16.mxu0 0
        %2898 = vmatpush1.bf16.msra.mxu0 0
        %2899 = vmatprep.subr.bf16.mxu0 0
        %2900 = vmatpush1.bf16.msra.mxu0 0
        %2901 = vmatprep.subr.bf16.mxu0 0
        %2902 = vmatpush1.bf16.msra.mxu0 0
        %2903 = vmatprep.subr.bf16.mxu0 0
        %2904 = vmatpush1.bf16.msra.mxu0 0
        %2905 = vmatprep.subr.bf16.mxu0 0
        %2906 = vmatpush1.bf16.msra.mxu0 0
        %2907 = vmatprep.mubr.bf16.mxu0 0
        %2908 = vmatmul.mubr.bf16.gmra.mrb[0].mxu0 %v2873
        %v2909 = vpop.f32.mrb[0].mxu0
        %v2910 = vadd.f32 0.0, %v2909
        %v2911 = vpop.f32.mrb[0].mxu0
        %v2912 = vpop.f32.mrb[0].mxu0
        %v2913 = vpop.f32.mrb[0].mxu0
        %2914 = vdwg.mxu0
        %v2915 = vpack.c.bf16 %v2910, %v2910
        %2916 = vrot.lane.b32.xlu0 %v1943, 104
        %v2917 = vpop.permute.xlu0 %2916
        %v2919 = vsel %vm902, %v2917, 0
        %2921 = vmatprep.subr.bf16.mxu0 0
        %2922 = vmatpush1.bf16.msra.mxu0 %v2045
        %2923 = vmatprep.subr.bf16.mxu0 0
        %2924 = vmatpush1.bf16.msra.mxu0 0
        %2925 = vmatprep.subr.bf16.mxu0 0
        %2926 = vmatpush1.bf16.msra.mxu0 0
        %2927 = vmatprep.subr.bf16.mxu0 0
        %2928 = vmatpush1.bf16.msra.mxu0 0
        %2929 = vmatprep.subr.bf16.mxu0 0
        %2930 = vmatpush1.bf16.msra.mxu0 0
        %2931 = vmatprep.subr.bf16.mxu0 0
        %2932 = vmatpush1.bf16.msra.mxu0 0
        %2933 = vmatprep.subr.bf16.mxu0 0
        %2934 = vmatpush1.bf16.msra.mxu0 0
        %2935 = vmatprep.subr.bf16.mxu0 0
        %2936 = vmatpush1.bf16.msra.mxu0 0
        %2937 = vmatprep.subr.bf16.mxu0 0
        %2938 = vmatpush1.bf16.msra.mxu0 0
        %2939 = vmatprep.subr.bf16.mxu0 0
        %2940 = vmatpush1.bf16.msra.mxu0 0
        %2941 = vmatprep.subr.bf16.mxu0 0
        %2942 = vmatpush1.bf16.msra.mxu0 0
        %2943 = vmatprep.subr.bf16.mxu0 0
        %2944 = vmatpush1.bf16.msra.mxu0 0
        %2945 = vmatprep.subr.bf16.mxu0 0
        %2946 = vmatpush1.bf16.msra.mxu0 0
        %2947 = vmatprep.subr.bf16.mxu0 0
        %2948 = vmatpush1.bf16.msra.mxu0 0
        %2949 = vmatprep.subr.bf16.mxu0 0
        %2950 = vmatpush1.bf16.msra.mxu0 0
        %2951 = vmatprep.subr.bf16.mxu0 0
        %2952 = vmatpush1.bf16.msra.mxu0 0
        %2953 = vmatprep.mubr.bf16.mxu0 0
        %2954 = vmatmul.mubr.bf16.gmra.mrb[0].mxu0 %v2919
        %v2955 = vpop.f32.mrb[0].mxu0
        %v2956 = vadd.f32 0.0, %v2955
        %v2957 = vpop.f32.mrb[0].mxu0
        %v2958 = vpop.f32.mrb[0].mxu0
        %v2959 = vpop.f32.mrb[0].mxu0
        %2960 = vdwg.mxu0
        %v2961 = vpack.c.bf16 %v2956, %v2956
        %v2963 = vsel %vm902, %v2869, 0
        %v2966 = vsel %vm902, %v2915, 0
        %2968 = vmatprep.subr.bf16.mxu0 0
        %2969 = vmatpush1.bf16.xpose.msra.mxu0 %v2966
        %2970 = vmatprep.subr.bf16.mxu0 0
        %2971 = vmatpush1.bf16.xpose.msra.mxu0 0
        %2972 = vmatprep.subr.bf16.mxu0 0
        %2973 = vmatpush1.bf16.xpose.msra.mxu0 0
        %2974 = vmatprep.subr.bf16.mxu0 0
        %2975 = vmatpush1.bf16.xpose.msra.mxu0 0
        %2976 = vmatprep.subr.bf16.mxu0 0
        %2977 = vmatpush1.bf16.xpose.msra.mxu0 0
        %2978 = vmatprep.subr.bf16.mxu0 0
        %2979 = vmatpush1.bf16.xpose.msra.mxu0 0
        %2980 = vmatprep.subr.bf16.mxu0 0
        %2981 = vmatpush1.bf16.xpose.msra.mxu0 0
        %2982 = vmatprep.subr.bf16.mxu0 0
        %2983 = vmatpush1.bf16.xpose.msra.mxu0 0
        %2984 = vmatprep.subr.bf16.mxu0 0
        %2985 = vmatpush1.bf16.xpose.msra.mxu0 0
        %2986 = vmatprep.subr.bf16.mxu0 0
        %2987 = vmatpush1.bf16.xpose.msra.mxu0 0
        %2988 = vmatprep.subr.bf16.mxu0 0
        %2989 = vmatpush1.bf16.xpose.msra.mxu0 0
        %2990 = vmatprep.subr.bf16.mxu0 0
        %2991 = vmatpush1.bf16.xpose.msra.mxu0 0
        %2992 = vmatprep.subr.bf16.mxu0 0
        %2993 = vmatpush1.bf16.xpose.msra.mxu0 0
        %2994 = vmatprep.subr.bf16.mxu0 0
        %2995 = vmatpush1.bf16.xpose.msra.mxu0 0
        %2996 = vmatprep.subr.bf16.mxu0 0
        %2997 = vmatpush1.bf16.xpose.msra.mxu0 0
        %2998 = vmatprep.subr.bf16.mxu0 0
        %2999 = vmatpush1.bf16.xpose.msra.mxu0 0
        %3000 = vmatprep.mubr.bf16.mxu0 0
        %3001 = vmatmul.mubr.bf16.gmra.mrb[0].mxu0 %v2963
        %v3002 = vpop.f32.mrb[0].mxu0
        %v3003 = vadd.f32 %v900, %v3002
        %v3004 = vpop.f32.mrb[0].mxu0
        %v3005 = vpop.f32.mrb[0].mxu0
        %v3006 = vpop.f32.mrb[0].mxu0
        %3007 = vdwg.mxu0
        %v3008 = vsel %vm902, %v3003, -inf
        %3009 = vmax.xlane.f32.xlu0 %v3008
        %v3010 = vpop.xlane.xlu0 %3009
        %v3011 = vsub.f32 %v3003, %v3010
        %v3012 = vmul.f32 %v3011, 1.442695
        %v3013 = vpow.pop %v3012
        %v3014 = vsel %vm902, %v3013, 0.0
        %3015 = vadd.xlane.f32.xlu0 %v3014
        %v3016 = vpop.xlane.xlu0 %3015
        %v3017 = vrcp.pop %v3016
        %v3018 = vmul.f32 %v3013, %v3017
        %v3019 = vpack.c.bf16 %v3018, %v3018
        %v3021 = vsel %vm902, %v3019, 0
        %v3024 = vsel %vm906, %v2961, 0
        %3026 = vmatprep.subr.bf16.mxu0 0
        %3027 = vmatpush1.bf16.msra.mxu0 %v3024
        %3028 = vmatprep.subr.bf16.mxu0 0
        %3029 = vmatpush1.bf16.msra.mxu0 0
        %3030 = vmatprep.subr.bf16.mxu0 0
        %3031 = vmatpush1.bf16.msra.mxu0 0
        %3032 = vmatprep.subr.bf16.mxu0 0
        %3033 = vmatpush1.bf16.msra.mxu0 0
        %3034 = vmatprep.subr.bf16.mxu0 0
        %3035 = vmatpush1.bf16.msra.mxu0 0
        %3036 = vmatprep.subr.bf16.mxu0 0
        %3037 = vmatpush1.bf16.msra.mxu0 0
        %3038 = vmatprep.subr.bf16.mxu0 0
        %3039 = vmatpush1.bf16.msra.mxu0 0
        %3040 = vmatprep.subr.bf16.mxu0 0
        %3041 = vmatpush1.bf16.msra.mxu0 0
        %3042 = vmatprep.subr.bf16.mxu0 0
        %3043 = vmatpush1.bf16.msra.mxu0 0
        %3044 = vmatprep.subr.bf16.mxu0 0
        %3045 = vmatpush1.bf16.msra.mxu0 0
        %3046 = vmatprep.subr.bf16.mxu0 0
        %3047 = vmatpush1.bf16.msra.mxu0 0
        %3048 = vmatprep.subr.bf16.mxu0 0
        %3049 = vmatpush1.bf16.msra.mxu0 0
        %3050 = vmatprep.subr.bf16.mxu0 0
        %3051 = vmatpush1.bf16.msra.mxu0 0
        %3052 = vmatprep.subr.bf16.mxu0 0
        %3053 = vmatpush1.bf16.msra.mxu0 0
        %3054 = vmatprep.subr.bf16.mxu0 0
        %3055 = vmatpush1.bf16.msra.mxu0 0
        %3056 = vmatprep.subr.bf16.mxu0 0
        %3057 = vmatpush1.bf16.msra.mxu0 0
        %3058 = vmatprep.mubr.bf16.mxu0 0
        %3059 = vmatmul.mubr.bf16.gmra.mrb[0].mxu0 %v3021
        %v3060 = vpop.f32.mrb[0].mxu0
        %v3061 = vadd.f32 0.0, %v3060
        %v3062 = vpop.f32.mrb[0].mxu0
        %v3063 = vpop.f32.mrb[0].mxu0
        %v3064 = vpop.f32.mrb[0].mxu0
        %3065 = vdwg.mxu0
        %v3066 = vpack.c.bf16 %v3061, %v3061
        %v3067 = vld [vmem:[%s15 + $0xc] sm:$0xf]
        %v3069 = vsel %vm902, %v3066, 0
        %v3072 = vsel %vm906, %v3067, 0
        %3074 = vmatprep.subr.bf16.mxu0 0
        %3075 = vmatpush1.bf16.msra.mxu0 %v3072
        %3076 = vmatprep.subr.bf16.mxu0 0
        %3077 = vmatpush1.bf16.msra.mxu0 0
        %3078 = vmatprep.subr.bf16.mxu0 0
        %3079 = vmatpush1.bf16.msra.mxu0 0
        %3080 = vmatprep.subr.bf16.mxu0 0
        %3081 = vmatpush1.bf16.msra.mxu0 0
        %3082 = vmatprep.subr.bf16.mxu0 0
        %3083 = vmatpush1.bf16.msra.mxu0 0
        %3084 = vmatprep.subr.bf16.mxu0 0
        %3085 = vmatpush1.bf16.msra.mxu0 0
        %3086 = vmatprep.subr.bf16.mxu0 0
        %3087 = vmatpush1.bf16.msra.mxu0 0
        %3088 = vmatprep.subr.bf16.mxu0 0
        %3089 = vmatpush1.bf16.msra.mxu0 0
        %3090 = vmatprep.subr.bf16.mxu0 0
        %3091 = vmatpush1.bf16.msra.mxu0 0
        %3092 = vmatprep.subr.bf16.mxu0 0
        %3093 = vmatpush1.bf16.msra.mxu0 0
        %3094 = vmatprep.subr.bf16.mxu0 0
        %3095 = vmatpush1.bf16.msra.mxu0 0
        %3096 = vmatprep.subr.bf16.mxu0 0
        %3097 = vmatpush1.bf16.msra.mxu0 0
        %3098 = vmatprep.subr.bf16.mxu0 0
        %3099 = vmatpush1.bf16.msra.mxu0 0
        %3100 = vmatprep.subr.bf16.mxu0 0
        %3101 = vmatpush1.bf16.msra.mxu0 0
        %3102 = vmatprep.subr.bf16.mxu0 0
        %3103 = vmatpush1.bf16.msra.mxu0 0
        %3104 = vmatprep.subr.bf16.mxu0 0
        %3105 = vmatpush1.bf16.msra.mxu0 0
        %3106 = vmatprep.mubr.bf16.mxu0 0
        %3107 = vmatmul.mubr.bf16.gmra.mrb[0].mxu0 %v3069
        %v3108 = vpop.f32.mrb[0].mxu0
        %v3109 = vadd.f32 0.0, %v3108
        %v3110 = vpop.f32.mrb[0].mxu0
        %v3111 = vpop.f32.mrb[0].mxu0
        %v3112 = vpop.f32.mrb[0].mxu0
        %3113 = vdwg.mxu0
        %v3114 = vadd.f32 %v2823, %v3109
        %v3115 = vld [vmem:[%s16] sm:$0x1]
        %v3117 = vlaneseq
        %v3118 = vshrl.u32 %v3117, 7
        %v3119 = vsub.s32 0, %v3118
        %v3120 = vrot.slane %v3115, %v3119
        %v3122 = vadd.f32 %v3114, %v3120
        %v3123 = vadd.f32 %v3122, %v1938
        %v3124 = vld [vmem:[%s17] sm:$0x1]
        %v3125 = vld [vmem:[%s18] sm:$0x1]
        %v3126 = vsel %vm1910, %v3123, 0.0
        %3127 = vadd.xlane.f32.xlu0 %v3126
        %v3128 = vpop.xlane.xlu0 %3127
        %v3129 = vmul.f32 %v3128, %v1914
        %v3130 = vsub.f32 %v3123, %v3129
        %v3131 = vmul.f32 %v3130, %v3130
        %v3132 = vsel %vm1910, %v3131, 0.0
        %3133 = vadd.xlane.f32.xlu0 %v3132
        %v3134 = vpop.xlane.xlu0 %3133
        %v3135 = vmul.f32 %v3134, %v1914
        %v3136 = vadd.f32 %v3135, 1e-05
        %v3137 = vrsqrt.pop %v3136
        %v3138 = vmul.f32 %v3130, %v3137
        %v3140 = vlaneseq
        %v3141 = vshrl.u32 %v3140, 7
        %v3142 = vsub.s32 0, %v3141
        %v3143 = vrot.slane %v3124, %v3142
        %v3145 = vmul.f32 %v3138, %v3143
        %v3147 = vlaneseq
        %v3148 = vshrl.u32 %v3147, 7
        %v3149 = vsub.s32 0, %v3148
        %v3150 = vrot.slane %v3125, %v3149
        %v3152 = vadd.f32 %v3145, %v3150
        %v3153 = vpack.c.bf16 %v3152, %v3152
        %v3154 = vld [vmem:[%s19] sm:$0xf]
        %v3155 = vld [vmem:[%s19 + $0x4] sm:$0xf]
        %v3156 = vld [vmem:[%s19 + $0x8] sm:$0xf]
        %v3157 = vld [vmem:[%s19 + $0xc] sm:$0xf]
        %v3158 = vld [vmem:[%s20] sm:$0x1]
        %v3160 = vlaneseq
        %v3161 = vshrl.u32 %v3160, 7
        %v3162 = vsub.s32 0, %v3161
        %v3163 = vrot.slane %v3158, %v3162
        %v3169 = vunpack.c.l.b16 %v3154
        %v3170 = vunpack.c.l.b16 %v3155
        %v3171 = vunpack.c.l.b16 %v3156
        %v3172 = vunpack.c.l.b16 %v3157
        %v3173 = vpack.c.b16 %v3170, %v3169
        %v3174 = vpack.c.b16 %v3172, %v3171
        %v3178 = vsel %vm1910, %v3153, 0
        %3180 = vmatprep.subr.bf16.mxu0 0
        %3181 = vmatpush1.bf16.msra.mxu0 %v3173
        %3182 = vmatprep.subr.bf16.mxu0 0
        %3183 = vmatpush1.bf16.msra.mxu0 %v3174
        %3184 = vmatprep.subr.bf16.mxu0 0
        %3185 = vmatpush1.bf16.msra.mxu0 0
        %3186 = vmatprep.subr.bf16.mxu0 0
        %3187 = vmatpush1.bf16.msra.mxu0 0
        %3188 = vmatprep.subr.bf16.mxu0 0
        %3189 = vmatpush1.bf16.msra.mxu0 0
        %3190 = vmatprep.subr.bf16.mxu0 0
        %3191 = vmatpush1.bf16.msra.mxu0 0
        %3192 = vmatprep.subr.bf16.mxu0 0
        %3193 = vmatpush1.bf16.msra.mxu0 0
        %3194 = vmatprep.subr.bf16.mxu0 0
        %3195 = vmatpush1.bf16.msra.mxu0 0
        %3196 = vmatprep.subr.bf16.mxu0 0
        %3197 = vmatpush1.bf16.msra.mxu0 0
        %3198 = vmatprep.subr.bf16.mxu0 0
        %3199 = vmatpush1.bf16.msra.mxu0 0
        %3200 = vmatprep.subr.bf16.mxu0 0
        %3201 = vmatpush1.bf16.msra.mxu0 0
        %3202 = vmatprep.subr.bf16.mxu0 0
        %3203 = vmatpush1.bf16.msra.mxu0 0
        %3204 = vmatprep.subr.bf16.mxu0 0
        %3205 = vmatpush1.bf16.msra.mxu0 0
        %3206 = vmatprep.subr.bf16.mxu0 0
        %3207 = vmatpush1.bf16.msra.mxu0 0
        %3208 = vmatprep.subr.bf16.mxu0 0
        %3209 = vmatpush1.bf16.msra.mxu0 0
        %3210 = vmatprep.subr.bf16.mxu0 0
        %3211 = vmatpush1.bf16.msra.mxu0 0
        %3212 = vmatprep.mubr.bf16.mxu0 0
        %3213 = vmatmul.mubr.bf16.gmra.mrb[0].mxu0 %v3178
        %v3214 = vpop.f32.mrb[0].mxu0
        %v3215 = vadd.f32 %v3163, %v3214
        %v3216 = vpop.f32.mrb[0].mxu0
        %v3217 = vpop.f32.mrb[0].mxu0
        %v3218 = vpop.f32.mrb[0].mxu0
        %3219 = vdwg.mxu0
        %v3220 = vmax.f32 %v3215, 0.0
        %v3221 = vpack.c.bf16 %v3220, %v3220
        %v3222 = vld [vmem:[%s21] sm:$0xf]
        %v3223 = vld [vmem:[%s21 + $0x4] sm:$0xf]
        %v3224 = vld [vmem:[%s21 + $0x8] sm:$0xf]
        %v3225 = vld [vmem:[%s21 + $0xc] sm:$0xf]
        %v3226 = vld [vmem:[%s21 + $0x10] sm:$0xf]
        %v3227 = vld [vmem:[%s21 + $0x14] sm:$0xf]
        %v3228 = vld [vmem:[%s21 + $0x18] sm:$0xf]
        %v3229 = vld [vmem:[%s21 + $0x1c] sm:$0xf]
        %v3230 = vld [vmem:[%s21 + $0x20] sm:$0xf]
        %v3231 = vld [vmem:[%s21 + $0x24] sm:$0xf]
        %v3232 = vld [vmem:[%s21 + $0x28] sm:$0xf]
        %v3233 = vld [vmem:[%s21 + $0x2c] sm:$0xf]
        %v3234 = vld [vmem:[%s21 + $0x30] sm:$0xf]
        %v3235 = vld [vmem:[%s21 + $0x34] sm:$0xf]
        %v3236 = vld [vmem:[%s21 + $0x38] sm:$0xf]
        %v3237 = vld [vmem:[%s21 + $0x3c] sm:$0xf]
        %v3238 = vld [vmem:[%s22] sm:$0x1]
        %v3240 = vlaneseq
        %v3241 = vshrl.u32 %v3240, 7
        %v3242 = vsub.s32 0, %v3241
        %v3243 = vrot.slane %v3238, %v3242
        %v3261 = vunpack.c.l.b16 %v3222
        %v3262 = vunpack.c.l.b16 %v3223
        %v3263 = vunpack.c.l.b16 %v3224
        %v3264 = vunpack.c.l.b16 %v3225
        %v3265 = vunpack.c.l.b16 %v3226
        %v3266 = vunpack.c.l.b16 %v3227
        %v3267 = vunpack.c.l.b16 %v3228
        %v3268 = vunpack.c.l.b16 %v3229
        %v3269 = vunpack.c.l.b16 %v3230
        %v3270 = vunpack.c.l.b16 %v3231
        %v3271 = vunpack.c.l.b16 %v3232
        %v3272 = vunpack.c.l.b16 %v3233
        %v3273 = vunpack.c.l.b16 %v3234
        %v3274 = vunpack.c.l.b16 %v3235
        %v3275 = vunpack.c.l.b16 %v3236
        %v3276 = vunpack.c.l.b16 %v3237
        %v3277 = vpack.c.b16 %v3262, %v3261
        %v3278 = vpack.c.b16 %v3264, %v3263
        %v3279 = vpack.c.b16 %v3266, %v3265
        %v3280 = vpack.c.b16 %v3268, %v3267
        %v3281 = vpack.c.b16 %v3270, %v3269
        %v3282 = vpack.c.b16 %v3272, %v3271
        %v3283 = vpack.c.b16 %v3274, %v3273
        %v3284 = vpack.c.b16 %v3276, %v3275
        %3293 = vmatprep.subr.bf16.mxu0 0
        %3294 = vmatpush1.bf16.msra.mxu0 %v3277
        %3295 = vmatprep.subr.bf16.mxu0 0
        %3296 = vmatpush1.bf16.msra.mxu0 %v3278
        %3297 = vmatprep.subr.bf16.mxu0 0
        %3298 = vmatpush1.bf16.msra.mxu0 %v3279
        %3299 = vmatprep.subr.bf16.mxu0 0
        %3300 = vmatpush1.bf16.msra.mxu0 %v3280
        %3301 = vmatprep.subr.bf16.mxu0 0
        %3302 = vmatpush1.bf16.msra.mxu0 %v3281
        %3303 = vmatprep.subr.bf16.mxu0 0
        %3304 = vmatpush1.bf16.msra.mxu0 %v3282
        %3305 = vmatprep.subr.bf16.mxu0 0
        %3306 = vmatpush1.bf16.msra.mxu0 %v3283
        %3307 = vmatprep.subr.bf16.mxu0 0
        %3308 = vmatpush1.bf16.msra.mxu0 %v3284
        %3309 = vmatprep.subr.bf16.mxu0 0
        %3310 = vmatpush1.bf16.msra.mxu0 0
        %3311 = vmatprep.subr.bf16.mxu0 0
        %3312 = vmatpush1.bf16.msra.mxu0 0
        %3313 = vmatprep.subr.bf16.mxu0 0
        %3314 = vmatpush1.bf16.msra.mxu0 0
        %3315 = vmatprep.subr.bf16.mxu0 0
        %3316 = vmatpush1.bf16.msra.mxu0 0
        %3317 = vmatprep.subr.bf16.mxu0 0
        %3318 = vmatpush1.bf16.msra.mxu0 0
        %3319 = vmatprep.subr.bf16.mxu0 0
        %3320 = vmatpush1.bf16.msra.mxu0 0
        %3321 = vmatprep.subr.bf16.mxu0 0
        %3322 = vmatpush1.bf16.msra.mxu0 0
        %3323 = vmatprep.subr.bf16.mxu0 0
        %3324 = vmatpush1.bf16.msra.mxu0 0
        %3325 = vmatprep.mubr.bf16.mxu0 0
        %3326 = vmatmul.mubr.bf16.gmra.mrb[0].mxu0 %v3221
        %v3327 = vpop.f32.mrb[0].mxu0
        %v3328 = vadd.f32 %v3243, %v3327
        %v3329 = vpop.f32.mrb[0].mxu0
        %v3330 = vpop.f32.mrb[0].mxu0
        %v3331 = vpop.f32.mrb[0].mxu0
        %3332 = vdwg.mxu0
        %v3333 = vadd.f32 %v3328, %v3152
        %v3334 = vld [vmem:[%s23] sm:$0x1]
        %v3335 = vld [vmem:[%s24] sm:$0x1]
        %v3336 = vsel %vm1910, %v3333, 0.0
        %3337 = vadd.xlane.f32.xlu0 %v3336
        %v3338 = vpop.xlane.xlu0 %3337
        %v3339 = vmul.f32 %v3338, %v1914
        %v3340 = vsub.f32 %v3333, %v3339
        %v3341 = vmul.f32 %v3340, %v3340
        %v3342 = vsel %vm1910, %v3341, 0.0
        %3343 = vadd.xlane.f32.xlu0 %v3342
        %v3344 = vpop.xlane.xlu0 %3343
        %v3345 = vmul.f32 %v3344, %v1914
        %v3346 = vadd.f32 %v3345, 1e-05
        %v3347 = vrsqrt.pop %v3346
        %v3348 = vmul.f32 %v3340, %v3347
        %v3350 = vlaneseq
        %v3351 = vshrl.u32 %v3350, 7
        %v3352 = vsub.s32 0, %v3351
        %v3353 = vrot.slane %v3334, %v3352
        %v3355 = vmul.f32 %v3348, %v3353
        %v3357 = vlaneseq
        %v3358 = vshrl.u32 %v3357, 7
        %v3359 = vsub.s32 0, %v3358
        %v3360 = vrot.slane %v3335, %v3359
        %v3362 = vadd.f32 %v3355, %v3360
        %3363 = vst.msk [vmem:[%s858] sm:$0xff] %vm1910, %v3362
        %s3364 = sand.u32 %s622, 1
        %s3365 = scalar_lea.sflag [#allocation3], %s3364
        %s3366 = sand.u32 %s622, 1
        %s3367 = smul.addr %s3366, 8
        %s3368 = scalar_lea.vmem [#allocation2], %s3367
        // Predicated region
        $region121: #{decoder_block.1} parent=119 // pred_check
          %p3369 = pneg %p632
        $region122: #{decoder_block.1} parent=119 // pred_check_branch
          %3371 = sbr.rel (%p3369) target = $region124
        $region123: #{decoder_block.1} parent=119 // pred_region
          %s3373 = ssub.s32 128, 128
          %3374 = vsyncadd %s3365, %s3373
          %s3375 = sadd.s32 %s44, %s43
          %s3376 = smul.addr %s3375, 128
          %s3377 = scalar_lea.hbm %s25, %s3376
          %s3379 = sshll.u32 %s3368, 4
          %s3380 = int_to_ptr.vmem [resolvable:$true] %s3379
          %3382 = dma.vmem_to_hbm [thread:$0]  %s3380, 128, %s3377, %s3365
        $region124: #{decoder_block.1} parent=119 // pred_fallthru
          _
      $region120: #{decoder_block.1} parent=5 // pred_fallthru
        _
      %p3383 = scmp.le.s32.totalorder 2, %s34
      // Predicated region
      $region125: #{decoder_block.1} parent=5 // pred_check
        %p3384 = pneg %p3383
      $region126: #{decoder_block.1} parent=5 // pred_check_branch
        %3386 = sbr.rel (%p3384) target = $region128
      $region127: #{decoder_block.1} parent=5 // pred_region
        %s3387 = ssub.s32 %s34, 2
        // Predicated region
        $region129: #{decoder_block.1} parent=127 // pred_check
          %p3388 = pneg %p638
        $region130: #{decoder_block.1} parent=127 // pred_check_branch
          %3390 = sbr.rel (%p3388) target = $region132
        $region131: #{decoder_block.1} parent=127 // pred_region
          %s3391 = sand.u32 %s623, 1
          %s3392 = scalar_lea.sflag [#allocation3], %s3391
          %s3393 = sand.u32 %s623, 1
          %s3394 = smul.addr %s3393, 8
          %s3395 = scalar_lea.vmem [#allocation2], %s3394
          %3396 = dma.done %s3392, 128
        $region132: #{decoder_block.1} parent=127 // pred_fallthru
          _
      $region128: #{decoder_block.1} parent=5 // pred_fallthru
        _
    $region6: #{decoder_block.1} parent=1 // loop_footer
      %s38 = sadd.s32 1, %s34
    $region7: #{decoder_block.1} parent=1 // loop_footer_branch
      %33 = sbr.rel target = $region3
    $region8: #{decoder_block.1} parent=1 // loop_exit
      _
    %3397 = vsyncpa [#allocation3], 1
    %s3398 = scalar_lea.sflag [#allocation3], 1
    %3399 = vsyncpa %s3398, 1

</llo_original>
